<compile_context>
chip_gen: v6e
topology: v6e:2x2x1
jax: 0.10.0
libtpu: 0.0.40
codegen_flags: <defaults>
</compile_context>

<pallas_src>
import functools

import jax
import jax.numpy as jnp
from jax.experimental import pallas as pl
from jax.experimental.pallas import tpu as pltpu


# ------------------------------ shared helpers -------------------------------
def _lrelu_clamp(x):
    # LReLU: clamp(leaky_relu(x, 1/3), -3, 3)
    return jnp.clip(jnp.where(x >= 0.0, x, x * (1.0 / 3.0)), -3.0, 3.0)


def _lstm_scan(gates_x, w_hh, out_sc, T, B, H):
    """Recurrence-only LSTM.  gates_x (T*B, 4H) already holds x @ W_ih + (b_ih+b_hh).
    Writes the per-step hidden state into out_sc (T*B, H) VMEM scratch."""
    h = jnp.zeros((B, H), jnp.float32)
    c = jnp.zeros((B, H), jnp.float32)
    for t in range(T):  # T is small & static -> fully unrolled, all indices static
        g = gates_x[t * B:(t + 1) * B, :] + jnp.dot(
            h, w_hh, preferred_element_type=jnp.float32)
        sig = jax.nn.sigmoid(g)          # one full-width (B, 4H) pass
        tnh = jnp.tanh(g)                # one full-width (B, 4H) pass
        i_g = sig[:, 0 * H:1 * H]
        f_g = sig[:, 1 * H:2 * H]
        g_g = tnh[:, 2 * H:3 * H]
        o_g = sig[:, 3 * H:4 * H]
        c = f_g * c + i_g * g_g
        h = o_g * jnp.tanh(c)
        out_sc[t * B:(t + 1) * B, :] = h


def _full_spec(shape):
    nd = len(shape)
    return pl.BlockSpec(shape, lambda i, _nd=nd: (0,) * _nd)


# ---------------- fused bidirectional (fwd + bwd) LSTM stack kernel ----------
def _birnn_stack_kernel(x_ref, emb_w_ref, emb_b_ref, *rest, T, B, H, n_layer):
    layer_refs = rest[:3 * n_layer]
    out_ref = rest[3 * n_layer]          # (1, T*B, H)
    seq_sc = rest[3 * n_layer + 1]       # VMEM (T*B, H)

    # input embedding (nn.Linear) fused here: the (T*B, d_emb) activation never
    # round-trips HBM.
    cur = jnp.dot(x_ref[0], emb_w_ref[...],
                  preferred_element_type=jnp.float32) + emb_b_ref[...]

    for l in range(n_layer):
        w_ih = layer_refs[3 * l][0]      # (Din_l, 4H)   pre-transposed
        w_hh = layer_refs[3 * l + 1][0]  # (H, 4H)       pre-transposed, orthogonal
        b = layer_refs[3 * l + 2][0]     # (1, 4H)       = b_ih + b_hh
        # hoisted input projection: one big matmul instead of T tiny ones
        gates_x = jnp.dot(cur, w_ih, preferred_element_type=jnp.float32) + b
        _lstm_scan(gates_x, w_hh, seq_sc, T, B, H)
        cur = seq_sc[...]

    out_ref[0] = cur                     # single lane-dense slab store per direction


def birnn_stack(x_flat, y_rev_flat, emb_w, emb_b, rnn_layers, T, B, H):
    N, d_data = x_flat.shape
    n_layer = len(rnn_layers)
    xy = jnp.stack([x_flat, y_rev_flat], axis=0)            # (2, N, d_data)

    args = [xy, emb_w, emb_b]
    in_specs = [
        pl.BlockSpec((1, N, d_data), lambda d: (d, 0, 0)),
        pl.BlockSpec(emb_w.shape, lambda d: (0, 0)),
        pl.BlockSpec(emb_b.shape, lambda d: (0, 0)),
    ]
    for (w_ih_s, w_hh_s, b_s) in rnn_layers:                # stacked (2, ...) weights
        for w in (w_ih_s, w_hh_s, b_s):
            args.append(w)
            in_specs.append(pl.BlockSpec((1,) + w.shape[1:], lambda d: (d, 0, 0)))

    kernel = functools.partial(_birnn_stack_kernel, T=T, B=B, H=H, n_layer=n_layer)

    d_emb = emb_w.shape[1]
    flops = 2 * 2 * N * (d_data * d_emb
                         + sum(w.shape[1] * w.shape[2] for (w, _, _) in rnn_layers)
                         + n_layer * H * 4 * H)
    bytes_acc = 4 * (int(xy.size) + int(emb_w.size) + int(emb_b.size) + 2 * N * H
                     + sum(int(a.size) + int(b2.size) + int(c.size)
                           for (a, b2, c) in rnn_layers))

    return pl.pallas_call(
        kernel,
        out_shape=jax.ShapeDtypeStruct((2, N, H), jnp.float32),
        grid=(2,),
        in_specs=in_specs,
        out_specs=pl.BlockSpec((1, N, H), lambda d: (d, 0, 0)),
        scratch_shapes=[pltpu.VMEM((N, H), jnp.float32)],
        compiler_params=pltpu.CompilerParams(
            # v7x: one direction per TensorCore; v5e/v6e: plain 2-step loop.
            dimension_semantics=("parallel",)),
        cost_estimate=pl.CostEstimate(
            flops=flops,
            transcendentals=2 * n_layer * N * 4 * H * 2,
            bytes_accessed=bytes_acc),
    )(*args)


# ---------- fused prior MLP + post MLP + reparameterize + latent LSTM --------
def _head_lat_kernel(fwd_ref, bwd_ref, eps_ref,
                     pw1_ref, pb1_ref, pw2_ref, pb2_ref,
                     qw1b_ref, qw1f_ref, qb1_ref, qw2_ref, qb2_ref,
                     lwa_ref, lwz_ref, lb_ref, lwhh_ref,
                     pp_ref, pq_ref, z_ref, out_ref,
                     lat_sc, *, T, B, H, d_lat):
    fwd = fwd_ref[...]
    bwd = bwd_ref[...]

    # prior: clamp(Linear(LReLU(Linear(fwd))), -8, 8)
    h1 = _lrelu_clamp(jnp.dot(fwd, pw1_ref[...], preferred_element_type=jnp.float32)
                      + pb1_ref[...])
    pp = jnp.clip(jnp.dot(h1, pw2_ref[...], preferred_element_type=jnp.float32)
                  + pb2_ref[...], -8.0, 8.0)
    pp_ref[...] = pp

    # posterior on cat([bwd, fwd]) via split weights (no concatenate)
    h2 = _lrelu_clamp(jnp.dot(bwd, qw1b_ref[...], preferred_element_type=jnp.float32)
                      + jnp.dot(fwd, qw1f_ref[...], preferred_element_type=jnp.float32)
                      + qb1_ref[...])
    pq = jnp.clip(jnp.dot(h2, qw2_ref[...], preferred_element_type=jnp.float32)
                  + qb2_ref[...], -8.0, 8.0)
    pq_ref[...] = pq

    mu_post = pq[:, 0:d_lat]
    theta_post = pq[:, d_lat:2 * d_lat]

    # reparameterize: z = eps * exp(0.5 * logvar) + mu
    z = eps_ref[...] * jnp.exp(0.5 * theta_post) + mu_post
    z_ref[...] = z

    # latent LSTM on cat([fwd, z]) via split weights; input projection hoisted
    gates_x = (jnp.dot(fwd, lwa_ref[...], preferred_element_type=jnp.float32)
               + jnp.dot(z, lwz_ref[...], preferred_element_type=jnp.float32)
               + lb_ref[...])
    _lstm_scan(gates_x, lwhh_ref[...], lat_sc, T, B, H)
    out_ref[...] = lat_sc[...]


def head_lat(fwd_flat, bwd_flat, eps_flat, p, T, B, H, d_lat):
    N = fwd_flat.shape[0]
    args = [fwd_flat, bwd_flat, eps_flat,
            p["prior_w1"], p["prior_b1"], p["prior_w2"], p["prior_b2"],
            p["post_w1_bwd"], p["post_w1_fwd"], p["post_b1"], p["post_w2"], p["post_b2"],
            p["lat_wih_fwd"], p["lat_wih_z"], p["lat_b"], p["lat_whh"]]
    out_shape = (
        jax.ShapeDtypeStruct((N, 2 * d_lat), jnp.float32),   # prior params
        jax.ShapeDtypeStruct((N, 2 * d_lat), jnp.float32),   # posterior params
        jax.ShapeDtypeStruct((N, d_lat), jnp.float32),       # z
        jax.ShapeDtypeStruct((N, H), jnp.float32),            # latent-rnn output
    )
    kernel = functools.partial(_head_lat_kernel, T=T, B=B, H=H, d_lat=d_lat)
    return pl.pallas_call(
        kernel,
        out_shape=out_shape,
        grid=(1,),
        in_specs=[_full_spec(a.shape) for a in args],
        out_specs=tuple(_full_spec(s.shape) for s in out_shape),
        scratch_shapes=[pltpu.VMEM((N, H), jnp.float32)],
        compiler_params=pltpu.CompilerParams(dimension_semantics=("arbitrary",)),
    )(*args)


# -------------------------------- parameters ---------------------------------
def _normal(key, shape, scale=0.1):
    return scale * jax.random.normal(key, shape, jnp.float32)


def init_params(key, d_data, d_emb, d_mlp, d_rnn, d_lat, n_layer):
    keys = list(jax.random.split(key, 32))
    ki = iter(keys)

    def lstm_layer_params(k, d_in, d_h):
        k1, k2, k3, k4 = jax.random.split(k, 4)
        w_ih_t = _normal(k1, (d_in, 4 * d_h))                        # (Din, 4H)
        q, _ = jnp.linalg.qr(jax.random.normal(k2, (4 * d_h, d_h), jnp.float32))
        w_hh_t = q.T                                                 # orthogonal, (H, 4H)
        b = _normal(k3, (1, 4 * d_h)) + _normal(k4, (1, 4 * d_h))    # b_ih + b_hh
        return w_ih_t, w_hh_t, b

    p = {}
    # inp_emb: Linear(d_data, d_emb), pre-transposed (Din, Dout)
    p["emb_w"] = _normal(next(ki), (d_data, d_emb))
    p["emb_b"] = _normal(next(ki), (1, d_emb))

    # fwd / bwd stacks, stored stacked along a direction axis (0 = fwd, 1 = bwd)
    p["rnn_layers"] = []
    for l in range(n_layer):
        d_in = d_emb if l == 0 else d_rnn
        f = lstm_layer_params(next(ki), d_in, d_rnn)
        bw = lstm_layer_params(next(ki), d_in, d_rnn)
        p["rnn_layers"].append(tuple(jnp.stack([a, b2], axis=0)
                                     for a, b2 in zip(f, bw)))

    # prior MLP
    p["prior_w1"] = _normal(next(ki), (d_rnn, d_mlp))
    p["prior_b1"] = _normal(next(ki), (1, d_mlp))
    p["prior_w2"] = _normal(next(ki), (d_mlp, 2 * d_lat))
    p["prior_b2"] = _normal(next(ki), (1, 2 * d_lat))

    # posterior MLP: first Linear takes cat([bwd, fwd]); split its pre-transposed
    # (2*d_rnn, d_mlp) weight into the bwd block (rows 0:d_rnn) and the fwd block.
    post_w1 = _normal(next(ki), (2 * d_rnn, d_mlp))
    p["post_w1_bwd"] = post_w1[:d_rnn]
    p["post_w1_fwd"] = post_w1[d_rnn:]
    p["post_b1"] = _normal(next(ki), (1, d_mlp))
    p["post_w2"] = _normal(next(ki), (d_mlp, 2 * d_lat))
    p["post_b2"] = _normal(next(ki), (1, 2 * d_lat))

    # latent LSTM: input is cat([fwd, z]); split W_ih rows into fwd / z blocks.
    lat_wih, lat_whh, lat_b = lstm_layer_params(next(ki), d_rnn + d_lat, d_rnn)
    p["lat_wih_fwd"] = lat_wih[:d_rnn]
    p["lat_wih_z"] = lat_wih[d_rnn:]
    p["lat_whh"] = lat_whh
    p["lat_b"] = lat_b
    return p


# -------------------------------- srnn_forward --------------------------------
def srnn_forward(params, x, y, eps):
    """x, y: (T, B, d_data); eps: (T, B, d_lat).  hidden=None case (zero init)."""
    T, B, d_data = x.shape
    N = T * B
    H = params["lat_whh"].shape[0]
    d_lat = eps.shape[-1]

    x_flat = x.reshape(N, d_data)
    # backward_pass: flip(y) -> LSTM stack -> flip(output).  The input flip is
    # absorbed into the stacking copy we need anyway; the output flip is one tiny
    # XLA op on (T, B, H).
    y_rev_flat = jnp.flip(y, axis=0).reshape(N, d_data)

    both = birnn_stack(x_flat, y_rev_flat, params["emb_w"], params["emb_b"],
                       params["rnn_layers"], T, B, H)
    fwd_flat = both[0]                                                 # (N, H)
    bwd_flat = jnp.flip(both[1].reshape(T, B, H), axis=0).reshape(N, H)

    pp, pq, z_flat, out_flat = head_lat(fwd_flat, bwd_flat,
                                        eps.reshape(N, d_lat),
                                        params, T, B, H, d_lat)

    mu_prior, logvar_prior = jnp.split(pp.reshape(T, B, 2 * d_lat), 2, axis=-1)
    mu_post, theta_post = jnp.split(pq.reshape(T, B, 2 * d_lat), 2, axis=-1)
    z = z_flat.reshape(T, B, d_lat)
    output = out_flat.reshape(T, B, H)          # self.drop is identity (dropout=0.0)
    return z, output, mu_prior, logvar_prior, mu_post, theta_post


# ------------------------------------ main ------------------------------------
if __name__ == "__main__":
    d_data, d_emb, d_mlp, d_rnn, d_lat, n_layer = 16, 16, 32, 32, 8, 2
    T, B = 8, 2

    root = jax.random.PRNGKey(0)
    k_params, k_x, k_y, k_eps = jax.random.split(root, 4)

    params = init_params(k_params, d_data, d_emb, d_mlp, d_rnn, d_lat, n_layer)
    x = jax.random.normal(k_x, (T, B, d_data), jnp.float32)
    y = jax.random.normal(k_y, (T, B, d_data), jnp.float32)
    eps = jax.random.normal(k_eps, (T, B, d_lat), jnp.float32)

    fwd_fn = jax.jit(srnn_forward)
    outs = fwd_fn(params, x, y, eps)
    outs = jax.block_until_ready(outs)

    z, output, mu_prior, logvar_prior, mu_post, theta_post = outs
    assert z.shape == (T, B, d_lat)
    assert output.shape == (T, B, d_rnn)
    assert mu_prior.shape == (T, B, d_lat)
    assert logvar_prior.shape == (T, B, d_lat)
    assert mu_post.shape == (T, B, d_lat)
    assert theta_post.shape == (T, B, d_lat)
    assert all(bool(jnp.all(jnp.isfinite(o))) for o in outs)

    print("KERNEL_OK")
</pallas_src>

<mosaic_0001>
module attributes {stable_mosaic.version = 11 : i64} {
  func.func @_birnn_stack_kernel(%arg0: i32, %arg1: memref<1x16x16xf32, #tpu.memory_space<vmem>>, %arg2: memref<16x16xf32, #tpu.memory_space<vmem>>, %arg3: memref<1x16xf32, #tpu.memory_space<vmem>>, %arg4: memref<1x16x128xf32, #tpu.memory_space<vmem>>, %arg5: memref<1x32x128xf32, #tpu.memory_space<vmem>>, %arg6: memref<1x1x128xf32, #tpu.memory_space<vmem>>, %arg7: memref<1x32x128xf32, #tpu.memory_space<vmem>>, %arg8: memref<1x32x128xf32, #tpu.memory_space<vmem>>, %arg9: memref<1x1x128xf32, #tpu.memory_space<vmem>>, %arg10: memref<1x16x32xf32, #tpu.memory_space<vmem>>, %arg11: memref<16x32xf32, #tpu.memory_space<vmem>>) attributes {dimension_semantics = [#tpu.dimension_semantics<parallel>], iteration_bounds = array<i64: 2>, scalar_prefetch = 0 : i64, scratch_operands = 1 : i64, tpu.core_type = #tpu.core_type<tc>, window_params = [{transform_indices = @transform_0, window_bounds = array<i64: 1, 16, 16>}, {pipeline_mode = #tpu.pipeline_mode<synchronous>, transform_indices = @transform_1, window_bounds = array<i64: 16, 16>}, {pipeline_mode = #tpu.pipeline_mode<synchronous>, transform_indices = @transform_2, window_bounds = array<i64: 1, 16>}, {transform_indices = @transform_3, window_bounds = array<i64: 1, 16, 128>}, {transform_indices = @transform_4, window_bounds = array<i64: 1, 32, 128>}, {transform_indices = @transform_5, window_bounds = array<i64: 1, 1, 128>}, {transform_indices = @transform_6, window_bounds = array<i64: 1, 32, 128>}, {transform_indices = @transform_7, window_bounds = array<i64: 1, 32, 128>}, {transform_indices = @transform_8, window_bounds = array<i64: 1, 1, 128>}, {transform_indices = @transform_9, window_bounds = array<i64: 1, 16, 32>}]} {
    %c0 = arith.constant 0 : index
    %c0_0 = arith.constant 0 : index
    %c0_1 = arith.constant 0 : index
    %0 = vector.load %arg1[%c0, %c0_0, %c0_1] : memref<1x16x16xf32, #tpu.memory_space<vmem>>, vector<1x16x16xf32>
    %1 = vector.shape_cast %0 : vector<1x16x16xf32> to vector<16x16xf32>
    %c0_2 = arith.constant 0 : index
    %c0_3 = arith.constant 0 : index
    %2 = vector.load %arg2[%c0_2, %c0_3] : memref<16x16xf32, #tpu.memory_space<vmem>>, vector<16x16xf32>
    %cst = arith.constant dense<0.000000e+00> : vector<16x16xf32>
    %3 = tpu.matmul %1, %2, %cst {dimension_numbers = #tpu.dot_dimension_numbers<[1], [0], [0], [1], [0, 0, 1, 1], [], []>} : vector<16x16xf32>, vector<16x16xf32>, vector<16x16xf32> -> vector<16x16xf32>
    %c0_4 = arith.constant 0 : index
    %c0_5 = arith.constant 0 : index
    %4 = vector.load %arg3[%c0_4, %c0_5] : memref<1x16xf32, #tpu.memory_space<vmem>>, vector<1x16xf32>
    %5 = vector.broadcast %4 : vector<1x16xf32> to vector<16x16xf32>
    %6 = arith.addf %3, %5 : vector<16x16xf32>
    %c0_6 = arith.constant 0 : index
    %c0_7 = arith.constant 0 : index
    %c0_8 = arith.constant 0 : index
    %7 = vector.load %arg4[%c0_6, %c0_7, %c0_8] : memref<1x16x128xf32, #tpu.memory_space<vmem>>, vector<1x16x128xf32>
    %8 = vector.shape_cast %7 : vector<1x16x128xf32> to vector<16x128xf32>
    %c0_9 = arith.constant 0 : index
    %c0_10 = arith.constant 0 : index
    %c0_11 = arith.constant 0 : index
    %9 = vector.load %arg5[%c0_9, %c0_10, %c0_11] : memref<1x32x128xf32, #tpu.memory_space<vmem>>, vector<1x32x128xf32>
    %10 = vector.shape_cast %9 : vector<1x32x128xf32> to vector<32x128xf32>
    %c0_12 = arith.constant 0 : index
    %c0_13 = arith.constant 0 : index
    %c0_14 = arith.constant 0 : index
    %11 = vector.load %arg6[%c0_12, %c0_13, %c0_14] : memref<1x1x128xf32, #tpu.memory_space<vmem>>, vector<1x1x128xf32>
    %12 = vector.shape_cast %11 : vector<1x1x128xf32> to vector<1x128xf32>
    %cst_15 = arith.constant dense<0.000000e+00> : vector<16x128xf32>
    %13 = tpu.matmul %6, %8, %cst_15 {dimension_numbers = #tpu.dot_dimension_numbers<[1], [0], [0], [1], [0, 0, 1, 1], [], []>} : vector<16x16xf32>, vector<16x128xf32>, vector<16x128xf32> -> vector<16x128xf32>
    %14 = vector.broadcast %12 : vector<1x128xf32> to vector<16x128xf32>
    %15 = arith.addf %13, %14 : vector<16x128xf32>
    %cst_16 = arith.constant 0.000000e+00 : f32
    %16 = vector.broadcast %cst_16 : f32 to vector<2x32xf32>
    %cst_17 = arith.constant 0.000000e+00 : f32
    %17 = vector.broadcast %cst_17 : f32 to vector<2x32xf32>
    %18 = vector.extract_strided_slice %15 {offsets = [0, 0], sizes = [2, 128], strides = [1, 1]} : vector<16x128xf32> to vector<2x128xf32>
    %cst_18 = arith.constant dense<0.000000e+00> : vector<2x128xf32>
    %19 = tpu.matmul %16, %10, %cst_18 {dimension_numbers = #tpu.dot_dimension_numbers<[1], [0], [0], [1], [0, 0, 1, 1], [], []>} : vector<2x32xf32>, vector<32x128xf32>, vector<2x128xf32> -> vector<2x128xf32>
    %20 = arith.addf %18, %19 : vector<2x128xf32>
    %21 = arith.negf %20 : vector<2x128xf32>
    %22 = math.exp %21 : vector<2x128xf32>
    %cst_19 = arith.constant 1.000000e+00 : f32
    %23 = vector.broadcast %cst_19 : f32 to vector<2x128xf32>
    %24 = arith.addf %23, %22 : vector<2x128xf32>
    %25 = arith.divf %23, %24 : vector<2x128xf32>
    %26 = math.tanh %20 : vector<2x128xf32>
    %27 = vector.extract_strided_slice %25 {offsets = [0, 0], sizes = [2, 32], strides = [1, 1]} : vector<2x128xf32> to vector<2x32xf32>
    %28 = vector.extract_strided_slice %25 {offsets = [0, 32], sizes = [2, 32], strides = [1, 1]} : vector<2x128xf32> to vector<2x32xf32>
    %29 = vector.extract_strided_slice %26 {offsets = [0, 64], sizes = [2, 32], strides = [1, 1]} : vector<2x128xf32> to vector<2x32xf32>
    %30 = vector.extract_strided_slice %25 {offsets = [0, 96], sizes = [2, 32], strides = [1, 1]} : vector<2x128xf32> to vector<2x32xf32>
    %31 = arith.mulf %28, %17 : vector<2x32xf32>
    %32 = arith.mulf %27, %29 : vector<2x32xf32>
    %33 = arith.addf %31, %32 : vector<2x32xf32>
    %34 = math.tanh %33 : vector<2x32xf32>
    %35 = arith.mulf %30, %34 : vector<2x32xf32>
    %c0_20 = arith.constant 0 : index
    %c0_21 = arith.constant 0 : index
    %36 = vector.load %arg11[%c0_20, %c0_21] : memref<16x32xf32, #tpu.memory_space<vmem>>, vector<2x32xf32>
    tpu.vector_store %arg11[%c0_20, %c0_21], %35 {strides = array<i32>} : memref<16x32xf32, #tpu.memory_space<vmem>>, vector<2x32xf32>,
    %37 = vector.extract_strided_slice %15 {offsets = [2, 0], sizes = [2, 128], strides = [1, 1]} : vector<16x128xf32> to vector<2x128xf32>
    %cst_22 = arith.constant dense<0.000000e+00> : vector<2x128xf32>
    %38 = tpu.matmul %35, %10, %cst_22 {dimension_numbers = #tpu.dot_dimension_numbers<[1], [0], [0], [1], [0, 0, 1, 1], [], []>} : vector<2x32xf32>, vector<32x128xf32>, vector<2x128xf32> -> vector<2x128xf32>
    %39 = arith.addf %37, %38 : vector<2x128xf32>
    %40 = arith.negf %39 : vector<2x128xf32>
    %41 = math.exp %40 : vector<2x128xf32>
    %cst_23 = arith.constant 1.000000e+00 : f32
    %42 = vector.broadcast %cst_23 : f32 to vector<2x128xf32>
    %43 = arith.addf %42, %41 : vector<2x128xf32>
    %44 = arith.divf %42, %43 : vector<2x128xf32>
    %45 = math.tanh %39 : vector<2x128xf32>
    %46 = vector.extract_strided_slice %44 {offsets = [0, 0], sizes = [2, 32], strides = [1, 1]} : vector<2x128xf32> to vector<2x32xf32>
    %47 = vector.extract_strided_slice %44 {offsets = [0, 32], sizes = [2, 32], strides = [1, 1]} : vector<2x128xf32> to vector<2x32xf32>
    %48 = vector.extract_strided_slice %45 {offsets = [0, 64], sizes = [2, 32], strides = [1, 1]} : vector<2x128xf32> to vector<2x32xf32>
    %49 = vector.extract_strided_slice %44 {offsets = [0, 96], sizes = [2, 32], strides = [1, 1]} : vector<2x128xf32> to vector<2x32xf32>
    %50 = arith.mulf %47, %33 : vector<2x32xf32>
    %51 = arith.mulf %46, %48 : vector<2x32xf32>
    %52 = arith.addf %50, %51 : vector<2x32xf32>
    %53 = math.tanh %52 : vector<2x32xf32>
    %54 = arith.mulf %49, %53 : vector<2x32xf32>
    %c2 = arith.constant 2 : index
    %c0_24 = arith.constant 0 : index
    %55 = vector.load %arg11[%c2, %c0_24] : memref<16x32xf32, #tpu.memory_space<vmem>>, vector<2x32xf32>
    tpu.vector_store %arg11[%c2, %c0_24], %54 {strides = array<i32>} : memref<16x32xf32, #tpu.memory_space<vmem>>, vector<2x32xf32>,
    %56 = vector.extract_strided_slice %15 {offsets = [4, 0], sizes = [2, 128], strides = [1, 1]} : vector<16x128xf32> to vector<2x128xf32>
    %cst_25 = arith.constant dense<0.000000e+00> : vector<2x128xf32>
    %57 = tpu.matmul %54, %10, %cst_25 {dimension_numbers = #tpu.dot_dimension_numbers<[1], [0], [0], [1], [0, 0, 1, 1], [], []>} : vector<2x32xf32>, vector<32x128xf32>, vector<2x128xf32> -> vector<2x128xf32>
    %58 = arith.addf %56, %57 : vector<2x128xf32>
    %59 = arith.negf %58 : vector<2x128xf32>
    %60 = math.exp %59 : vector<2x128xf32>
    %cst_26 = arith.constant 1.000000e+00 : f32
    %61 = vector.broadcast %cst_26 : f32 to vector<2x128xf32>
    %62 = arith.addf %61, %60 : vector<2x128xf32>
    %63 = arith.divf %61, %62 : vector<2x128xf32>
    %64 = math.tanh %58 : vector<2x128xf32>
    %65 = vector.extract_strided_slice %63 {offsets = [0, 0], sizes = [2, 32], strides = [1, 1]} : vector<2x128xf32> to vector<2x32xf32>
    %66 = vector.extract_strided_slice %63 {offsets = [0, 32], sizes = [2, 32], strides = [1, 1]} : vector<2x128xf32> to vector<2x32xf32>
    %67 = vector.extract_strided_slice %64 {offsets = [0, 64], sizes = [2, 32], strides = [1, 1]} : vector<2x128xf32> to vector<2x32xf32>
    %68 = vector.extract_strided_slice %63 {offsets = [0, 96], sizes = [2, 32], strides = [1, 1]} : vector<2x128xf32> to vector<2x32xf32>
    %69 = arith.mulf %66, %52 : vector<2x32xf32>
    %70 = arith.mulf %65, %67 : vector<2x32xf32>
    %71 = arith.addf %69, %70 : vector<2x32xf32>
    %72 = math.tanh %71 : vector<2x32xf32>
    %73 = arith.mulf %68, %72 : vector<2x32xf32>
    %c4 = arith.constant 4 : index
    %c0_27 = arith.constant 0 : index
    %74 = vector.load %arg11[%c4, %c0_27] : memref<16x32xf32, #tpu.memory_space<vmem>>, vector<2x32xf32>
    tpu.vector_store %arg11[%c4, %c0_27], %73 {strides = array<i32>} : memref<16x32xf32, #tpu.memory_space<vmem>>, vector<2x32xf32>,
    %75 = vector.extract_strided_slice %15 {offsets = [6, 0], sizes = [2, 128], strides = [1, 1]} : vector<16x128xf32> to vector<2x128xf32>
    %cst_28 = arith.constant dense<0.000000e+00> : vector<2x128xf32>
    %76 = tpu.matmul %73, %10, %cst_28 {dimension_numbers = #tpu.dot_dimension_numbers<[1], [0], [0], [1], [0, 0, 1, 1], [], []>} : vector<2x32xf32>, vector<32x128xf32>, vector<2x128xf32> -> vector<2x128xf32>
    %77 = arith.addf %75, %76 : vector<2x128xf32>
    %78 = arith.negf %77 : vector<2x128xf32>
    %79 = math.exp %78 : vector<2x128xf32>
    %cst_29 = arith.constant 1.000000e+00 : f32
    %80 = vector.broadcast %cst_29 : f32 to vector<2x128xf32>
    %81 = arith.addf %80, %79 : vector<2x128xf32>
    %82 = arith.divf %80, %81 : vector<2x128xf32>
    %83 = math.tanh %77 : vector<2x128xf32>
    %84 = vector.extract_strided_slice %82 {offsets = [0, 0], sizes = [2, 32], strides = [1, 1]} : vector<2x128xf32> to vector<2x32xf32>
    %85 = vector.extract_strided_slice %82 {offsets = [0, 32], sizes = [2, 32], strides = [1, 1]} : vector<2x128xf32> to vector<2x32xf32>
    %86 = vector.extract_strided_slice %83 {offsets = [0, 64], sizes = [2, 32], strides = [1, 1]} : vector<2x128xf32> to vector<2x32xf32>
    %87 = vector.extract_strided_slice %82 {offsets = [0, 96], sizes = [2, 32], strides = [1, 1]} : vector<2x128xf32> to vector<2x32xf32>
    %88 = arith.mulf %85, %71 : vector<2x32xf32>
    %89 = arith.mulf %84, %86 : vector<2x32xf32>
    %90 = arith.addf %88, %89 : vector<2x32xf32>
    %91 = math.tanh %90 : vector<2x32xf32>
    %92 = arith.mulf %87, %91 : vector<2x32xf32>
    %c6 = arith.constant 6 : index
    %c0_30 = arith.constant 0 : index
    %93 = vector.load %arg11[%c6, %c0_30] : memref<16x32xf32, #tpu.memory_space<vmem>>, vector<2x32xf32>
    tpu.vector_store %arg11[%c6, %c0_30], %92 {strides = array<i32>} : memref<16x32xf32, #tpu.memory_space<vmem>>, vector<2x32xf32>,
    %94 = vector.extract_strided_slice %15 {offsets = [8, 0], sizes = [2, 128], strides = [1, 1]} : vector<16x128xf32> to vector<2x128xf32>
    %cst_31 = arith.constant dense<0.000000e+00> : vector<2x128xf32>
    %95 = tpu.matmul %92, %10, %cst_31 {dimension_numbers = #tpu.dot_dimension_numbers<[1], [0], [0], [1], [0, 0, 1, 1], [], []>} : vector<2x32xf32>, vector<32x128xf32>, vector<2x128xf32> -> vector<2x128xf32>
    %96 = arith.addf %94, %95 : vector<2x128xf32>
    %97 = arith.negf %96 : vector<2x128xf32>
    %98 = math.exp %97 : vector<2x128xf32>
    %cst_32 = arith.constant 1.000000e+00 : f32
    %99 = vector.broadcast %cst_32 : f32 to vector<2x128xf32>
    %100 = arith.addf %99, %98 : vector<2x128xf32>
    %101 = arith.divf %99, %100 : vector<2x128xf32>
    %102 = math.tanh %96 : vector<2x128xf32>
    %103 = vector.extract_strided_slice %101 {offsets = [0, 0], sizes = [2, 32], strides = [1, 1]} : vector<2x128xf32> to vector<2x32xf32>
    %104 = vector.extract_strided_slice %101 {offsets = [0, 32], sizes = [2, 32], strides = [1, 1]} : vector<2x128xf32> to vector<2x32xf32>
    %105 = vector.extract_strided_slice %102 {offsets = [0, 64], sizes = [2, 32], strides = [1, 1]} : vector<2x128xf32> to vector<2x32xf32>
    %106 = vector.extract_strided_slice %101 {offsets = [0, 96], sizes = [2, 32], strides = [1, 1]} : vector<2x128xf32> to vector<2x32xf32>
    %107 = arith.mulf %104, %90 : vector<2x32xf32>
    %108 = arith.mulf %103, %105 : vector<2x32xf32>
    %109 = arith.addf %107, %108 : vector<2x32xf32>
    %110 = math.tanh %109 : vector<2x32xf32>
    %111 = arith.mulf %106, %110 : vector<2x32xf32>
    %c8 = arith.constant 8 : index
    %c0_33 = arith.constant 0 : index
    %112 = vector.load %arg11[%c8, %c0_33] : memref<16x32xf32, #tpu.memory_space<vmem>>, vector<2x32xf32>
    tpu.vector_store %arg11[%c8, %c0_33], %111 {strides = array<i32>} : memref<16x32xf32, #tpu.memory_space<vmem>>, vector<2x32xf32>,
    %113 = vector.extract_strided_slice %15 {offsets = [10, 0], sizes = [2, 128], strides = [1, 1]} : vector<16x128xf32> to vector<2x128xf32>
    %cst_34 = arith.constant dense<0.000000e+00> : vector<2x128xf32>
    %114 = tpu.matmul %111, %10, %cst_34 {dimension_numbers = #tpu.dot_dimension_numbers<[1], [0], [0], [1], [0, 0, 1, 1], [], []>} : vector<2x32xf32>, vector<32x128xf32>, vector<2x128xf32> -> vector<2x128xf32>
    %115 = arith.addf %113, %114 : vector<2x128xf32>
    %116 = arith.negf %115 : vector<2x128xf32>
    %117 = math.exp %116 : vector<2x128xf32>
    %cst_35 = arith.constant 1.000000e+00 : f32
    %118 = vector.broadcast %cst_35 : f32 to vector<2x128xf32>
    %119 = arith.addf %118, %117 : vector<2x128xf32>
    %120 = arith.divf %118, %119 : vector<2x128xf32>
    %121 = math.tanh %115 : vector<2x128xf32>
    %122 = vector.extract_strided_slice %120 {offsets = [0, 0], sizes = [2, 32], strides = [1, 1]} : vector<2x128xf32> to vector<2x32xf32>
    %123 = vector.extract_strided_slice %120 {offsets = [0, 32], sizes = [2, 32], strides = [1, 1]} : vector<2x128xf32> to vector<2x32xf32>
    %124 = vector.extract_strided_slice %121 {offsets = [0, 64], sizes = [2, 32], strides = [1, 1]} : vector<2x128xf32> to vector<2x32xf32>
    %125 = vector.extract_strided_slice %120 {offsets = [0, 96], sizes = [2, 32], strides = [1, 1]} : vector<2x128xf32> to vector<2x32xf32>
    %126 = arith.mulf %123, %109 : vector<2x32xf32>
    %127 = arith.mulf %122, %124 : vector<2x32xf32>
    %128 = arith.addf %126, %127 : vector<2x32xf32>
    %129 = math.tanh %128 : vector<2x32xf32>
    %130 = arith.mulf %125, %129 : vector<2x32xf32>
    %c10 = arith.constant 10 : index
    %c0_36 = arith.constant 0 : index
    %131 = vector.load %arg11[%c10, %c0_36] : memref<16x32xf32, #tpu.memory_space<vmem>>, vector<2x32xf32>
    tpu.vector_store %arg11[%c10, %c0_36], %130 {strides = array<i32>} : memref<16x32xf32, #tpu.memory_space<vmem>>, vector<2x32xf32>,
    %132 = vector.extract_strided_slice %15 {offsets = [12, 0], sizes = [2, 128], strides = [1, 1]} : vector<16x128xf32> to vector<2x128xf32>
    %cst_37 = arith.constant dense<0.000000e+00> : vector<2x128xf32>
    %133 = tpu.matmul %130, %10, %cst_37 {dimension_numbers = #tpu.dot_dimension_numbers<[1], [0], [0], [1], [0, 0, 1, 1], [], []>} : vector<2x32xf32>, vector<32x128xf32>, vector<2x128xf32> -> vector<2x128xf32>
    %134 = arith.addf %132, %133 : vector<2x128xf32>
    %135 = arith.negf %134 : vector<2x128xf32>
    %136 = math.exp %135 : vector<2x128xf32>
    %cst_38 = arith.constant 1.000000e+00 : f32
    %137 = vector.broadcast %cst_38 : f32 to vector<2x128xf32>
    %138 = arith.addf %137, %136 : vector<2x128xf32>
    %139 = arith.divf %137, %138 : vector<2x128xf32>
    %140 = math.tanh %134 : vector<2x128xf32>
    %141 = vector.extract_strided_slice %139 {offsets = [0, 0], sizes = [2, 32], strides = [1, 1]} : vector<2x128xf32> to vector<2x32xf32>
    %142 = vector.extract_strided_slice %139 {offsets = [0, 32], sizes = [2, 32], strides = [1, 1]} : vector<2x128xf32> to vector<2x32xf32>
    %143 = vector.extract_strided_slice %140 {offsets = [0, 64], sizes = [2, 32], strides = [1, 1]} : vector<2x128xf32> to vector<2x32xf32>
    %144 = vector.extract_strided_slice %139 {offsets = [0, 96], sizes = [2, 32], strides = [1, 1]} : vector<2x128xf32> to vector<2x32xf32>
    %145 = arith.mulf %142, %128 : vector<2x32xf32>
    %146 = arith.mulf %141, %143 : vector<2x32xf32>
    %147 = arith.addf %145, %146 : vector<2x32xf32>
    %148 = math.tanh %147 : vector<2x32xf32>
    %149 = arith.mulf %144, %148 : vector<2x32xf32>
    %c12 = arith.constant 12 : index
    %c0_39 = arith.constant 0 : index
    %150 = vector.load %arg11[%c12, %c0_39] : memref<16x32xf32, #tpu.memory_space<vmem>>, vector<2x32xf32>
    tpu.vector_store %arg11[%c12, %c0_39], %149 {strides = array<i32>} : memref<16x32xf32, #tpu.memory_space<vmem>>, vector<2x32xf32>,
    %151 = vector.extract_strided_slice %15 {offsets = [14, 0], sizes = [2, 128], strides = [1, 1]} : vector<16x128xf32> to vector<2x128xf32>
    %cst_40 = arith.constant dense<0.000000e+00> : vector<2x128xf32>
    %152 = tpu.matmul %149, %10, %cst_40 {dimension_numbers = #tpu.dot_dimension_numbers<[1], [0], [0], [1], [0, 0, 1, 1], [], []>} : vector<2x32xf32>, vector<32x128xf32>, vector<2x128xf32> -> vector<2x128xf32>
    %153 = arith.addf %151, %152 : vector<2x128xf32>
    %154 = arith.negf %153 : vector<2x128xf32>
    %155 = math.exp %154 : vector<2x128xf32>
    %cst_41 = arith.constant 1.000000e+00 : f32
    %156 = vector.broadcast %cst_41 : f32 to vector<2x128xf32>
    %157 = arith.addf %156, %155 : vector<2x128xf32>
    %158 = arith.divf %156, %157 : vector<2x128xf32>
    %159 = math.tanh %153 : vector<2x128xf32>
    %160 = vector.extract_strided_slice %158 {offsets = [0, 0], sizes = [2, 32], strides = [1, 1]} : vector<2x128xf32> to vector<2x32xf32>
    %161 = vector.extract_strided_slice %158 {offsets = [0, 32], sizes = [2, 32], strides = [1, 1]} : vector<2x128xf32> to vector<2x32xf32>
    %162 = vector.extract_strided_slice %159 {offsets = [0, 64], sizes = [2, 32], strides = [1, 1]} : vector<2x128xf32> to vector<2x32xf32>
    %163 = vector.extract_strided_slice %158 {offsets = [0, 96], sizes = [2, 32], strides = [1, 1]} : vector<2x128xf32> to vector<2x32xf32>
    %164 = arith.mulf %161, %147 : vector<2x32xf32>
    %165 = arith.mulf %160, %162 : vector<2x32xf32>
    %166 = arith.addf %164, %165 : vector<2x32xf32>
    %167 = math.tanh %166 : vector<2x32xf32>
    %168 = arith.mulf %163, %167 : vector<2x32xf32>
    %c14 = arith.constant 14 : index
    %c0_42 = arith.constant 0 : index
    %169 = vector.load %arg11[%c14, %c0_42] : memref<16x32xf32, #tpu.memory_space<vmem>>, vector<2x32xf32>
    tpu.vector_store %arg11[%c14, %c0_42], %168 {strides = array<i32>} : memref<16x32xf32, #tpu.memory_space<vmem>>, vector<2x32xf32>,
    %c0_43 = arith.constant 0 : index
    %c0_44 = arith.constant 0 : index
    %170 = vector.load %arg11[%c0_43, %c0_44] : memref<16x32xf32, #tpu.memory_space<vmem>>, vector<16x32xf32>
    %c0_45 = arith.constant 0 : index
    %c0_46 = arith.constant 0 : index
    %c0_47 = arith.constant 0 : index
    %171 = vector.load %arg7[%c0_45, %c0_46, %c0_47] : memref<1x32x128xf32, #tpu.memory_space<vmem>>, vector<1x32x128xf32>
    %172 = vector.shape_cast %171 : vector<1x32x128xf32> to vector<32x128xf32>
    %c0_48 = arith.constant 0 : index
    %c0_49 = arith.constant 0 : index
    %c0_50 = arith.constant 0 : index
    %173 = vector.load %arg8[%c0_48, %c0_49, %c0_50] : memref<1x32x128xf32, #tpu.memory_space<vmem>>, vector<1x32x128xf32>
    %174 = vector.shape_cast %173 : vector<1x32x128xf32> to vector<32x128xf32>
    %c0_51 = arith.constant 0 : index
    %c0_52 = arith.constant 0 : index
    %c0_53 = arith.constant 0 : index
    %175 = vector.load %arg9[%c0_51, %c0_52, %c0_53] : memref<1x1x128xf32, #tpu.memory_space<vmem>>, vector<1x1x128xf32>
    %176 = vector.shape_cast %175 : vector<1x1x128xf32> to vector<1x128xf32>
    %cst_54 = arith.constant dense<0.000000e+00> : vector<16x128xf32>
    %177 = tpu.matmul %170, %172, %cst_54 {dimension_numbers = #tpu.dot_dimension_numbers<[1], [0], [0], [1], [0, 0, 1, 1], [], []>} : vector<16x32xf32>, vector<32x128xf32>, vector<16x128xf32> -> vector<16x128xf32>
    %178 = vector.broadcast %176 : vector<1x128xf32> to vector<16x128xf32>
    %179 = arith.addf %177, %178 : vector<16x128xf32>
    %cst_55 = arith.constant 0.000000e+00 : f32
    %180 = vector.broadcast %cst_55 : f32 to vector<2x32xf32>
    %cst_56 = arith.constant 0.000000e+00 : f32
    %181 = vector.broadcast %cst_56 : f32 to vector<2x32xf32>
    %182 = vector.extract_strided_slice %179 {offsets = [0, 0], sizes = [2, 128], strides = [1, 1]} : vector<16x128xf32> to vector<2x128xf32>
    %cst_57 = arith.constant dense<0.000000e+00> : vector<2x128xf32>
    %183 = tpu.matmul %180, %174, %cst_57 {dimension_numbers = #tpu.dot_dimension_numbers<[1], [0], [0], [1], [0, 0, 1, 1], [], []>} : vector<2x32xf32>, vector<32x128xf32>, vector<2x128xf32> -> vector<2x128xf32>
    %184 = arith.addf %182, %183 : vector<2x128xf32>
    %185 = arith.negf %184 : vector<2x128xf32>
    %186 = math.exp %185 : vector<2x128xf32>
    %cst_58 = arith.constant 1.000000e+00 : f32
    %187 = vector.broadcast %cst_58 : f32 to vector<2x128xf32>
    %188 = arith.addf %187, %186 : vector<2x128xf32>
    %189 = arith.divf %187, %188 : vector<2x128xf32>
    %190 = math.tanh %184 : vector<2x128xf32>
    %191 = vector.extract_strided_slice %189 {offsets = [0, 0], sizes = [2, 32], strides = [1, 1]} : vector<2x128xf32> to vector<2x32xf32>
    %192 = vector.extract_strided_slice %189 {offsets = [0, 32], sizes = [2, 32], strides = [1, 1]} : vector<2x128xf32> to vector<2x32xf32>
    %193 = vector.extract_strided_slice %190 {offsets = [0, 64], sizes = [2, 32], strides = [1, 1]} : vector<2x128xf32> to vector<2x32xf32>
    %194 = vector.extract_strided_slice %189 {offsets = [0, 96], sizes = [2, 32], strides = [1, 1]} : vector<2x128xf32> to vector<2x32xf32>
    %195 = arith.mulf %192, %181 : vector<2x32xf32>
    %196 = arith.mulf %191, %193 : vector<2x32xf32>
    %197 = arith.addf %195, %196 : vector<2x32xf32>
    %198 = math.tanh %197 : vector<2x32xf32>
    %199 = arith.mulf %194, %198 : vector<2x32xf32>
    %c0_59 = arith.constant 0 : index
    %c0_60 = arith.constant 0 : index
    %200 = vector.load %arg11[%c0_59, %c0_60] : memref<16x32xf32, #tpu.memory_space<vmem>>, vector<2x32xf32>
    tpu.vector_store %arg11[%c0_59, %c0_60], %199 {strides = array<i32>} : memref<16x32xf32, #tpu.memory_space<vmem>>, vector<2x32xf32>,
    %201 = vector.extract_strided_slice %179 {offsets = [2, 0], sizes = [2, 128], strides = [1, 1]} : vector<16x128xf32> to vector<2x128xf32>
    %cst_61 = arith.constant dense<0.000000e+00> : vector<2x128xf32>
    %202 = tpu.matmul %199, %174, %cst_61 {dimension_numbers = #tpu.dot_dimension_numbers<[1], [0], [0], [1], [0, 0, 1, 1], [], []>} : vector<2x32xf32>, vector<32x128xf32>, vector<2x128xf32> -> vector<2x128xf32>
    %203 = arith.addf %201, %202 : vector<2x128xf32>
    %204 = arith.negf %203 : vector<2x128xf32>
    %205 = math.exp %204 : vector<2x128xf32>
    %cst_62 = arith.constant 1.000000e+00 : f32
    %206 = vector.broadcast %cst_62 : f32 to vector<2x128xf32>
    %207 = arith.addf %206, %205 : vector<2x128xf32>
    %208 = arith.divf %206, %207 : vector<2x128xf32>
    %209 = math.tanh %203 : vector<2x128xf32>
    %210 = vector.extract_strided_slice %208 {offsets = [0, 0], sizes = [2, 32], strides = [1, 1]} : vector<2x128xf32> to vector<2x32xf32>
    %211 = vector.extract_strided_slice %208 {offsets = [0, 32], sizes = [2, 32], strides = [1, 1]} : vector<2x128xf32> to vector<2x32xf32>
    %212 = vector.extract_strided_slice %209 {offsets = [0, 64], sizes = [2, 32], strides = [1, 1]} : vector<2x128xf32> to vector<2x32xf32>
    %213 = vector.extract_strided_slice %208 {offsets = [0, 96], sizes = [2, 32], strides = [1, 1]} : vector<2x128xf32> to vector<2x32xf32>
    %214 = arith.mulf %211, %197 : vector<2x32xf32>
    %215 = arith.mulf %210, %212 : vector<2x32xf32>
    %216 = arith.addf %214, %215 : vector<2x32xf32>
    %217 = math.tanh %216 : vector<2x32xf32>
    %218 = arith.mulf %213, %217 : vector<2x32xf32>
    %c2_63 = arith.constant 2 : index
    %c0_64 = arith.constant 0 : index
    %219 = vector.load %arg11[%c2_63, %c0_64] : memref<16x32xf32, #tpu.memory_space<vmem>>, vector<2x32xf32>
    tpu.vector_store %arg11[%c2_63, %c0_64], %218 {strides = array<i32>} : memref<16x32xf32, #tpu.memory_space<vmem>>, vector<2x32xf32>,
    %220 = vector.extract_strided_slice %179 {offsets = [4, 0], sizes = [2, 128], strides = [1, 1]} : vector<16x128xf32> to vector<2x128xf32>
    %cst_65 = arith.constant dense<0.000000e+00> : vector<2x128xf32>
    %221 = tpu.matmul %218, %174, %cst_65 {dimension_numbers = #tpu.dot_dimension_numbers<[1], [0], [0], [1], [0, 0, 1, 1], [], []>} : vector<2x32xf32>, vector<32x128xf32>, vector<2x128xf32> -> vector<2x128xf32>
    %222 = arith.addf %220, %221 : vector<2x128xf32>
    %223 = arith.negf %222 : vector<2x128xf32>
    %224 = math.exp %223 : vector<2x128xf32>
    %cst_66 = arith.constant 1.000000e+00 : f32
    %225 = vector.broadcast %cst_66 : f32 to vector<2x128xf32>
    %226 = arith.addf %225, %224 : vector<2x128xf32>
    %227 = arith.divf %225, %226 : vector<2x128xf32>
    %228 = math.tanh %222 : vector<2x128xf32>
    %229 = vector.extract_strided_slice %227 {offsets = [0, 0], sizes = [2, 32], strides = [1, 1]} : vector<2x128xf32> to vector<2x32xf32>
    %230 = vector.extract_strided_slice %227 {offsets = [0, 32], sizes = [2, 32], strides = [1, 1]} : vector<2x128xf32> to vector<2x32xf32>
    %231 = vector.extract_strided_slice %228 {offsets = [0, 64], sizes = [2, 32], strides = [1, 1]} : vector<2x128xf32> to vector<2x32xf32>
    %232 = vector.extract_strided_slice %227 {offsets = [0, 96], sizes = [2, 32], strides = [1, 1]} : vector<2x128xf32> to vector<2x32xf32>
    %233 = arith.mulf %230, %216 : vector<2x32xf32>
    %234 = arith.mulf %229, %231 : vector<2x32xf32>
    %235 = arith.addf %233, %234 : vector<2x32xf32>
    %236 = math.tanh %235 : vector<2x32xf32>
    %237 = arith.mulf %232, %236 : vector<2x32xf32>
    %c4_67 = arith.constant 4 : index
    %c0_68 = arith.constant 0 : index
    %238 = vector.load %arg11[%c4_67, %c0_68] : memref<16x32xf32, #tpu.memory_space<vmem>>, vector<2x32xf32>
    tpu.vector_store %arg11[%c4_67, %c0_68], %237 {strides = array<i32>} : memref<16x32xf32, #tpu.memory_space<vmem>>, vector<2x32xf32>,
    %239 = vector.extract_strided_slice %179 {offsets = [6, 0], sizes = [2, 128], strides = [1, 1]} : vector<16x128xf32> to vector<2x128xf32>
    %cst_69 = arith.constant dense<0.000000e+00> : vector<2x128xf32>
    %240 = tpu.matmul %237, %174, %cst_69 {dimension_numbers = #tpu.dot_dimension_numbers<[1], [0], [0], [1], [0, 0, 1, 1], [], []>} : vector<2x32xf32>, vector<32x128xf32>, vector<2x128xf32> -> vector<2x128xf32>
    %241 = arith.addf %239, %240 : vector<2x128xf32>
    %242 = arith.negf %241 : vector<2x128xf32>
    %243 = math.exp %242 : vector<2x128xf32>
    %cst_70 = arith.constant 1.000000e+00 : f32
    %244 = vector.broadcast %cst_70 : f32 to vector<2x128xf32>
    %245 = arith.addf %244, %243 : vector<2x128xf32>
    %246 = arith.divf %244, %245 : vector<2x128xf32>
    %247 = math.tanh %241 : vector<2x128xf32>
    %248 = vector.extract_strided_slice %246 {offsets = [0, 0], sizes = [2, 32], strides = [1, 1]} : vector<2x128xf32> to vector<2x32xf32>
    %249 = vector.extract_strided_slice %246 {offsets = [0, 32], sizes = [2, 32], strides = [1, 1]} : vector<2x128xf32> to vector<2x32xf32>
    %250 = vector.extract_strided_slice %247 {offsets = [0, 64], sizes = [2, 32], strides = [1, 1]} : vector<2x128xf32> to vector<2x32xf32>
    %251 = vector.extract_strided_slice %246 {offsets = [0, 96], sizes = [2, 32], strides = [1, 1]} : vector<2x128xf32> to vector<2x32xf32>
    %252 = arith.mulf %249, %235 : vector<2x32xf32>
    %253 = arith.mulf %248, %250 : vector<2x32xf32>
    %254 = arith.addf %252, %253 : vector<2x32xf32>
    %255 = math.tanh %254 : vector<2x32xf32>
    %256 = arith.mulf %251, %255 : vector<2x32xf32>
    %c6_71 = arith.constant 6 : index
    %c0_72 = arith.constant 0 : index
    %257 = vector.load %arg11[%c6_71, %c0_72] : memref<16x32xf32, #tpu.memory_space<vmem>>, vector<2x32xf32>
    tpu.vector_store %arg11[%c6_71, %c0_72], %256 {strides = array<i32>} : memref<16x32xf32, #tpu.memory_space<vmem>>, vector<2x32xf32>,
    %258 = vector.extract_strided_slice %179 {offsets = [8, 0], sizes = [2, 128], strides = [1, 1]} : vector<16x128xf32> to vector<2x128xf32>
    %cst_73 = arith.constant dense<0.000000e+00> : vector<2x128xf32>
    %259 = tpu.matmul %256, %174, %cst_73 {dimension_numbers = #tpu.dot_dimension_numbers<[1], [0], [0], [1], [0, 0, 1, 1], [], []>} : vector<2x32xf32>, vector<32x128xf32>, vector<2x128xf32> -> vector<2x128xf32>
    %260 = arith.addf %258, %259 : vector<2x128xf32>
    %261 = arith.negf %260 : vector<2x128xf32>
    %262 = math.exp %261 : vector<2x128xf32>
    %cst_74 = arith.constant 1.000000e+00 : f32
    %263 = vector.broadcast %cst_74 : f32 to vector<2x128xf32>
    %264 = arith.addf %263, %262 : vector<2x128xf32>
    %265 = arith.divf %263, %264 : vector<2x128xf32>
    %266 = math.tanh %260 : vector<2x128xf32>
    %267 = vector.extract_strided_slice %265 {offsets = [0, 0], sizes = [2, 32], strides = [1, 1]} : vector<2x128xf32> to vector<2x32xf32>
    %268 = vector.extract_strided_slice %265 {offsets = [0, 32], sizes = [2, 32], strides = [1, 1]} : vector<2x128xf32> to vector<2x32xf32>
    %269 = vector.extract_strided_slice %266 {offsets = [0, 64], sizes = [2, 32], strides = [1, 1]} : vector<2x128xf32> to vector<2x32xf32>
    %270 = vector.extract_strided_slice %265 {offsets = [0, 96], sizes = [2, 32], strides = [1, 1]} : vector<2x128xf32> to vector<2x32xf32>
    %271 = arith.mulf %268, %254 : vector<2x32xf32>
    %272 = arith.mulf %267, %269 : vector<2x32xf32>
    %273 = arith.addf %271, %272 : vector<2x32xf32>
    %274 = math.tanh %273 : vector<2x32xf32>
    %275 = arith.mulf %270, %274 : vector<2x32xf32>
    %c8_75 = arith.constant 8 : index
    %c0_76 = arith.constant 0 : index
    %276 = vector.load %arg11[%c8_75, %c0_76] : memref<16x32xf32, #tpu.memory_space<vmem>>, vector<2x32xf32>
    tpu.vector_store %arg11[%c8_75, %c0_76], %275 {strides = array<i32>} : memref<16x32xf32, #tpu.memory_space<vmem>>, vector<2x32xf32>,
    %277 = vector.extract_strided_slice %179 {offsets = [10, 0], sizes = [2, 128], strides = [1, 1]} : vector<16x128xf32> to vector<2x128xf32>
    %cst_77 = arith.constant dense<0.000000e+00> : vector<2x128xf32>
    %278 = tpu.matmul %275, %174, %cst_77 {dimension_numbers = #tpu.dot_dimension_numbers<[1], [0], [0], [1], [0, 0, 1, 1], [], []>} : vector<2x32xf32>, vector<32x128xf32>, vector<2x128xf32> -> vector<2x128xf32>
    %279 = arith.addf %277, %278 : vector<2x128xf32>
    %280 = arith.negf %279 : vector<2x128xf32>
    %281 = math.exp %280 : vector<2x128xf32>
    %cst_78 = arith.constant 1.000000e+00 : f32
    %282 = vector.broadcast %cst_78 : f32 to vector<2x128xf32>
    %283 = arith.addf %282, %281 : vector<2x128xf32>
    %284 = arith.divf %282, %283 : vector<2x128xf32>
    %285 = math.tanh %279 : vector<2x128xf32>
    %286 = vector.extract_strided_slice %284 {offsets = [0, 0], sizes = [2, 32], strides = [1, 1]} : vector<2x128xf32> to vector<2x32xf32>
    %287 = vector.extract_strided_slice %284 {offsets = [0, 32], sizes = [2, 32], strides = [1, 1]} : vector<2x128xf32> to vector<2x32xf32>
    %288 = vector.extract_strided_slice %285 {offsets = [0, 64], sizes = [2, 32], strides = [1, 1]} : vector<2x128xf32> to vector<2x32xf32>
    %289 = vector.extract_strided_slice %284 {offsets = [0, 96], sizes = [2, 32], strides = [1, 1]} : vector<2x128xf32> to vector<2x32xf32>
    %290 = arith.mulf %287, %273 : vector<2x32xf32>
    %291 = arith.mulf %286, %288 : vector<2x32xf32>
    %292 = arith.addf %290, %291 : vector<2x32xf32>
    %293 = math.tanh %292 : vector<2x32xf32>
    %294 = arith.mulf %289, %293 : vector<2x32xf32>
    %c10_79 = arith.constant 10 : index
    %c0_80 = arith.constant 0 : index
    %295 = vector.load %arg11[%c10_79, %c0_80] : memref<16x32xf32, #tpu.memory_space<vmem>>, vector<2x32xf32>
    tpu.vector_store %arg11[%c10_79, %c0_80], %294 {strides = array<i32>} : memref<16x32xf32, #tpu.memory_space<vmem>>, vector<2x32xf32>,
    %296 = vector.extract_strided_slice %179 {offsets = [12, 0], sizes = [2, 128], strides = [1, 1]} : vector<16x128xf32> to vector<2x128xf32>
    %cst_81 = arith.constant dense<0.000000e+00> : vector<2x128xf32>
    %297 = tpu.matmul %294, %174, %cst_81 {dimension_numbers = #tpu.dot_dimension_numbers<[1], [0], [0], [1], [0, 0, 1, 1], [], []>} : vector<2x32xf32>, vector<32x128xf32>, vector<2x128xf32> -> vector<2x128xf32>
    %298 = arith.addf %296, %297 : vector<2x128xf32>
    %299 = arith.negf %298 : vector<2x128xf32>
    %300 = math.exp %299 : vector<2x128xf32>
    %cst_82 = arith.constant 1.000000e+00 : f32
    %301 = vector.broadcast %cst_82 : f32 to vector<2x128xf32>
    %302 = arith.addf %301, %300 : vector<2x128xf32>
    %303 = arith.divf %301, %302 : vector<2x128xf32>
    %304 = math.tanh %298 : vector<2x128xf32>
    %305 = vector.extract_strided_slice %303 {offsets = [0, 0], sizes = [2, 32], strides = [1, 1]} : vector<2x128xf32> to vector<2x32xf32>
    %306 = vector.extract_strided_slice %303 {offsets = [0, 32], sizes = [2, 32], strides = [1, 1]} : vector<2x128xf32> to vector<2x32xf32>
    %307 = vector.extract_strided_slice %304 {offsets = [0, 64], sizes = [2, 32], strides = [1, 1]} : vector<2x128xf32> to vector<2x32xf32>
    %308 = vector.extract_strided_slice %303 {offsets = [0, 96], sizes = [2, 32], strides = [1, 1]} : vector<2x128xf32> to vector<2x32xf32>
    %309 = arith.mulf %306, %292 : vector<2x32xf32>
    %310 = arith.mulf %305, %307 : vector<2x32xf32>
    %311 = arith.addf %309, %310 : vector<2x32xf32>
    %312 = math.tanh %311 : vector<2x32xf32>
    %313 = arith.mulf %308, %312 : vector<2x32xf32>
    %c12_83 = arith.constant 12 : index
    %c0_84 = arith.constant 0 : index
    %314 = vector.load %arg11[%c12_83, %c0_84] : memref<16x32xf32, #tpu.memory_space<vmem>>, vector<2x32xf32>
    tpu.vector_store %arg11[%c12_83, %c0_84], %313 {strides = array<i32>} : memref<16x32xf32, #tpu.memory_space<vmem>>, vector<2x32xf32>,
    %315 = vector.extract_strided_slice %179 {offsets = [14, 0], sizes = [2, 128], strides = [1, 1]} : vector<16x128xf32> to vector<2x128xf32>
    %cst_85 = arith.constant dense<0.000000e+00> : vector<2x128xf32>
    %316 = tpu.matmul %313, %174, %cst_85 {dimension_numbers = #tpu.dot_dimension_numbers<[1], [0], [0], [1], [0, 0, 1, 1], [], []>} : vector<2x32xf32>, vector<32x128xf32>, vector<2x128xf32> -> vector<2x128xf32>
    %317 = arith.addf %315, %316 : vector<2x128xf32>
    %318 = arith.negf %317 : vector<2x128xf32>
    %319 = math.exp %318 : vector<2x128xf32>
    %cst_86 = arith.constant 1.000000e+00 : f32
    %320 = vector.broadcast %cst_86 : f32 to vector<2x128xf32>
    %321 = arith.addf %320, %319 : vector<2x128xf32>
    %322 = arith.divf %320, %321 : vector<2x128xf32>
    %323 = math.tanh %317 : vector<2x128xf32>
    %324 = vector.extract_strided_slice %322 {offsets = [0, 0], sizes = [2, 32], strides = [1, 1]} : vector<2x128xf32> to vector<2x32xf32>
    %325 = vector.extract_strided_slice %322 {offsets = [0, 32], sizes = [2, 32], strides = [1, 1]} : vector<2x128xf32> to vector<2x32xf32>
    %326 = vector.extract_strided_slice %323 {offsets = [0, 64], sizes = [2, 32], strides = [1, 1]} : vector<2x128xf32> to vector<2x32xf32>
    %327 = vector.extract_strided_slice %322 {offsets = [0, 96], sizes = [2, 32], strides = [1, 1]} : vector<2x128xf32> to vector<2x32xf32>
    %328 = arith.mulf %325, %311 : vector<2x32xf32>
    %329 = arith.mulf %324, %326 : vector<2x32xf32>
    %330 = arith.addf %328, %329 : vector<2x32xf32>
    %331 = math.tanh %330 : vector<2x32xf32>
    %332 = arith.mulf %327, %331 : vector<2x32xf32>
    %c14_87 = arith.constant 14 : index
    %c0_88 = arith.constant 0 : index
    %333 = vector.load %arg11[%c14_87, %c0_88] : memref<16x32xf32, #tpu.memory_space<vmem>>, vector<2x32xf32>
    tpu.vector_store %arg11[%c14_87, %c0_88], %332 {strides = array<i32>} : memref<16x32xf32, #tpu.memory_space<vmem>>, vector<2x32xf32>,
    %c0_89 = arith.constant 0 : index
    %c0_90 = arith.constant 0 : index
    %334 = vector.load %arg11[%c0_89, %c0_90] : memref<16x32xf32, #tpu.memory_space<vmem>>, vector<16x32xf32>
    %c0_91 = arith.constant 0 : index
    %c0_92 = arith.constant 0 : index
    %c0_93 = arith.constant 0 : index
    %335 = vector.load %arg10[%c0_91, %c0_92, %c0_93] : memref<1x16x32xf32, #tpu.memory_space<vmem>>, vector<1x16x32xf32>
    %336 = vector.shape_cast %335 : vector<1x16x32xf32> to vector<16x32xf32>
    %337 = vector.shape_cast %334 : vector<16x32xf32> to vector<1x16x32xf32>
    tpu.vector_store %arg10[%c0_91, %c0_92, %c0_93], %337 {strides = array<i32>} : memref<1x16x32xf32, #tpu.memory_space<vmem>>, vector<1x16x32xf32>,
    return
  }
  func.func @transform_0(%arg0: i32) -> (i32, i32, i32) {
    %c0_i32 = arith.constant 0 : i32
    %c0_i32_0 = arith.constant 0 : i32
    %c0_i32_1 = arith.constant 0 : i32
    return %arg0, %c0_i32, %c0_i32_0 : i32, i32, i32
  }
  func.func @transform_1(%arg0: i32) -> (i32, i32) {
    %c0_i32 = arith.constant 0 : i32
    %c0_i32_0 = arith.constant 0 : i32
    %c0_i32_1 = arith.constant 0 : i32
    return %c0_i32, %c0_i32_0 : i32, i32
  }
  func.func @transform_2(%arg0: i32) -> (i32, i32) {
    %c0_i32 = arith.constant 0 : i32
    %c0_i32_0 = arith.constant 0 : i32
    %c0_i32_1 = arith.constant 0 : i32
    return %c0_i32, %c0_i32_0 : i32, i32
  }
  func.func @transform_3(%arg0: i32) -> (i32, i32, i32) {
    %c0_i32 = arith.constant 0 : i32
    %c0_i32_0 = arith.constant 0 : i32
    %c0_i32_1 = arith.constant 0 : i32
    return %arg0, %c0_i32, %c0_i32_0 : i32, i32, i32
  }
  func.func @transform_4(%arg0: i32) -> (i32, i32, i32) {
    %c0_i32 = arith.constant 0 : i32
    %c0_i32_0 = arith.constant 0 : i32
    %c0_i32_1 = arith.constant 0 : i32
    return %arg0, %c0_i32, %c0_i32_0 : i32, i32, i32
  }
  func.func @transform_5(%arg0: i32) -> (i32, i32, i32) {
    %c0_i32 = arith.constant 0 : i32
    %c0_i32_0 = arith.constant 0 : i32
    %c0_i32_1 = arith.constant 0 : i32
    return %arg0, %c0_i32, %c0_i32_0 : i32, i32, i32
  }
  func.func @transform_6(%arg0: i32) -> (i32, i32, i32) {
    %c0_i32 = arith.constant 0 : i32
    %c0_i32_0 = arith.constant 0 : i32
    %c0_i32_1 = arith.constant 0 : i32
    return %arg0, %c0_i32, %c0_i32_0 : i32, i32, i32
  }
  func.func @transform_7(%arg0: i32) -> (i32, i32, i32) {
    %c0_i32 = arith.constant 0 : i32
    %c0_i32_0 = arith.constant 0 : i32
    %c0_i32_1 = arith.constant 0 : i32
    return %arg0, %c0_i32, %c0_i32_0 : i32, i32, i32
  }
  func.func @transform_8(%arg0: i32) -> (i32, i32, i32) {
    %c0_i32 = arith.constant 0 : i32
    %c0_i32_0 = arith.constant 0 : i32
    %c0_i32_1 = arith.constant 0 : i32
    return %arg0, %c0_i32, %c0_i32_0 : i32, i32, i32
  }
  func.func @transform_9(%arg0: i32) -> (i32, i32, i32) {
    %c0_i32 = arith.constant 0 : i32
    %c0_i32_0 = arith.constant 0 : i32
    %c0_i32_1 = arith.constant 0 : i32
    return %arg0, %c0_i32, %c0_i32_0 : i32, i32, i32
  }
}

module attributes {stable_mosaic.version = 11 : i64} {
  func.func @_head_lat_kernel(%arg0: i32, %arg1: memref<16x32xf32, #tpu.memory_space<vmem>>, %arg2: memref<16x32xf32, #tpu.memory_space<vmem>>, %arg3: memref<16x8xf32, #tpu.memory_space<vmem>>, %arg4: memref<32x32xf32, #tpu.memory_space<vmem>>, %arg5: memref<1x32xf32, #tpu.memory_space<vmem>>, %arg6: memref<32x16xf32, #tpu.memory_space<vmem>>, %arg7: memref<1x16xf32, #tpu.memory_space<vmem>>, %arg8: memref<32x32xf32, #tpu.memory_space<vmem>>, %arg9: memref<32x32xf32, #tpu.memory_space<vmem>>, %arg10: memref<1x32xf32, #tpu.memory_space<vmem>>, %arg11: memref<32x16xf32, #tpu.memory_space<vmem>>, %arg12: memref<1x16xf32, #tpu.memory_space<vmem>>, %arg13: memref<32x128xf32, #tpu.memory_space<vmem>>, %arg14: memref<8x128xf32, #tpu.memory_space<vmem>>, %arg15: memref<1x128xf32, #tpu.memory_space<vmem>>, %arg16: memref<32x128xf32, #tpu.memory_space<vmem>>, %arg17: memref<16x16xf32, #tpu.memory_space<vmem>>, %arg18: memref<16x16xf32, #tpu.memory_space<vmem>>, %arg19: memref<16x8xf32, #tpu.memory_space<vmem>>, %arg20: memref<16x32xf32, #tpu.memory_space<vmem>>, %arg21: memref<16x32xf32, #tpu.memory_space<vmem>>) attributes {dimension_semantics = [#tpu.dimension_semantics<arbitrary>], iteration_bounds = array<i64: 1>, scalar_prefetch = 0 : i64, scratch_operands = 1 : i64, tpu.core_type = #tpu.core_type<tc>, window_params = [{pipeline_mode = #tpu.pipeline_mode<synchronous>, transform_indices = @transform_0, window_bounds = array<i64: 16, 32>}, {pipeline_mode = #tpu.pipeline_mode<synchronous>, transform_indices = @transform_1, window_bounds = array<i64: 16, 32>}, {pipeline_mode = #tpu.pipeline_mode<synchronous>, transform_indices = @transform_2, window_bounds = array<i64: 16, 8>}, {pipeline_mode = #tpu.pipeline_mode<synchronous>, transform_indices = @transform_3, window_bounds = array<i64: 32, 32>}, {pipeline_mode = #tpu.pipeline_mode<synchronous>, transform_indices = @transform_4, window_bounds = array<i64: 1, 32>}, {pipeline_mode = #tpu.pipeline_mode<synchronous>, transform_indices = @transform_5, window_bounds = array<i64: 32, 16>}, {pipeline_mode = #tpu.pipeline_mode<synchronous>, transform_indices = @transform_6, window_bounds = array<i64: 1, 16>}, {pipeline_mode = #tpu.pipeline_mode<synchronous>, transform_indices = @transform_7, window_bounds = array<i64: 32, 32>}, {pipeline_mode = #tpu.pipeline_mode<synchronous>, transform_indices = @transform_8, window_bounds = array<i64: 32, 32>}, {pipeline_mode = #tpu.pipeline_mode<synchronous>, transform_indices = @transform_9, window_bounds = array<i64: 1, 32>}, {pipeline_mode = #tpu.pipeline_mode<synchronous>, transform_indices = @transform_10, window_bounds = array<i64: 32, 16>}, {pipeline_mode = #tpu.pipeline_mode<synchronous>, transform_indices = @transform_11, window_bounds = array<i64: 1, 16>}, {pipeline_mode = #tpu.pipeline_mode<synchronous>, transform_indices = @transform_12, window_bounds = array<i64: 32, 128>}, {pipeline_mode = #tpu.pipeline_mode<synchronous>, transform_indices = @transform_13, window_bounds = array<i64: 8, 128>}, {pipeline_mode = #tpu.pipeline_mode<synchronous>, transform_indices = @transform_14, window_bounds = array<i64: 1, 128>}, {pipeline_mode = #tpu.pipeline_mode<synchronous>, transform_indices = @transform_15, window_bounds = array<i64: 32, 128>}, {pipeline_mode = #tpu.pipeline_mode<synchronous>, transform_indices = @transform_16, window_bounds = array<i64: 16, 16>}, {pipeline_mode = #tpu.pipeline_mode<synchronous>, transform_indices = @transform_17, window_bounds = array<i64: 16, 16>}, {pipeline_mode = #tpu.pipeline_mode<synchronous>, transform_indices = @transform_18, window_bounds = array<i64: 16, 8>}, {pipeline_mode = #tpu.pipeline_mode<synchronous>, transform_indices = @transform_19, window_bounds = array<i64: 16, 32>}]} {
    %c0 = arith.constant 0 : index
    %c0_0 = arith.constant 0 : index
    %0 = vector.load %arg1[%c0, %c0_0] : memref<16x32xf32, #tpu.memory_space<vmem>>, vector<16x32xf32>
    %c0_1 = arith.constant 0 : index
    %c0_2 = arith.constant 0 : index
    %1 = vector.load %arg2[%c0_1, %c0_2] : memref<16x32xf32, #tpu.memory_space<vmem>>, vector<16x32xf32>
    %c0_3 = arith.constant 0 : index
    %c0_4 = arith.constant 0 : index
    %2 = vector.load %arg4[%c0_3, %c0_4] : memref<32x32xf32, #tpu.memory_space<vmem>>, vector<32x32xf32>
    %cst = arith.constant dense<0.000000e+00> : vector<16x32xf32>
    %3 = tpu.matmul %0, %2, %cst {dimension_numbers = #tpu.dot_dimension_numbers<[1], [0], [0], [1], [0, 0, 1, 1], [], []>} : vector<16x32xf32>, vector<32x32xf32>, vector<16x32xf32> -> vector<16x32xf32>
    %c0_5 = arith.constant 0 : index
    %c0_6 = arith.constant 0 : index
    %4 = vector.load %arg5[%c0_5, %c0_6] : memref<1x32xf32, #tpu.memory_space<vmem>>, vector<1x32xf32>
    %5 = vector.broadcast %4 : vector<1x32xf32> to vector<16x32xf32>
    %6 = arith.addf %3, %5 : vector<16x32xf32>
    %cst_7 = arith.constant 0.000000e+00 : f32
    %7 = vector.broadcast %cst_7 : f32 to vector<16x32xf32>
    %8 = arith.cmpf oge, %6, %7 : vector<16x32xf32>
    %cst_8 = arith.constant 0.333333343 : f32
    %9 = vector.broadcast %cst_8 : f32 to vector<16x32xf32>
    %10 = arith.mulf %6, %9 : vector<16x32xf32>
    %11 = arith.select %8, %6, %10 : vector<16x32xi1>, vector<16x32xf32>
    %cst_9 = arith.constant -3.000000e+00 : f32
    %cst_10 = arith.constant 3.000000e+00 : f32
    %12 = vector.broadcast %cst_9 : f32 to vector<16x32xf32>
    %13 = arith.maximumf %12, %11 : vector<16x32xf32>
    %14 = vector.broadcast %cst_10 : f32 to vector<16x32xf32>
    %15 = arith.minimumf %14, %13 : vector<16x32xf32>
    %c0_11 = arith.constant 0 : index
    %c0_12 = arith.constant 0 : index
    %16 = vector.load %arg6[%c0_11, %c0_12] : memref<32x16xf32, #tpu.memory_space<vmem>>, vector<32x16xf32>
    %cst_13 = arith.constant dense<0.000000e+00> : vector<16x16xf32>
    %17 = tpu.matmul %15, %16, %cst_13 {dimension_numbers = #tpu.dot_dimension_numbers<[1], [0], [0], [1], [0, 0, 1, 1], [], []>} : vector<16x32xf32>, vector<32x16xf32>, vector<16x16xf32> -> vector<16x16xf32>
    %c0_14 = arith.constant 0 : index
    %c0_15 = arith.constant 0 : index
    %18 = vector.load %arg7[%c0_14, %c0_15] : memref<1x16xf32, #tpu.memory_space<vmem>>, vector<1x16xf32>
    %19 = vector.broadcast %18 : vector<1x16xf32> to vector<16x16xf32>
    %20 = arith.addf %17, %19 : vector<16x16xf32>
    %cst_16 = arith.constant -8.000000e+00 : f32
    %cst_17 = arith.constant 8.000000e+00 : f32
    %21 = vector.broadcast %cst_16 : f32 to vector<16x16xf32>
    %22 = arith.maximumf %21, %20 : vector<16x16xf32>
    %23 = vector.broadcast %cst_17 : f32 to vector<16x16xf32>
    %24 = arith.minimumf %23, %22 : vector<16x16xf32>
    %c0_18 = arith.constant 0 : index
    %c0_19 = arith.constant 0 : index
    %25 = vector.load %arg17[%c0_18, %c0_19] : memref<16x16xf32, #tpu.memory_space<vmem>>, vector<16x16xf32>
    tpu.vector_store %arg17[%c0_18, %c0_19], %24 {strides = array<i32>} : memref<16x16xf32, #tpu.memory_space<vmem>>, vector<16x16xf32>,
    %c0_20 = arith.constant 0 : index
    %c0_21 = arith.constant 0 : index
    %26 = vector.load %arg8[%c0_20, %c0_21] : memref<32x32xf32, #tpu.memory_space<vmem>>, vector<32x32xf32>
    %cst_22 = arith.constant dense<0.000000e+00> : vector<16x32xf32>
    %27 = tpu.matmul %1, %26, %cst_22 {dimension_numbers = #tpu.dot_dimension_numbers<[1], [0], [0], [1], [0, 0, 1, 1], [], []>} : vector<16x32xf32>, vector<32x32xf32>, vector<16x32xf32> -> vector<16x32xf32>
    %c0_23 = arith.constant 0 : index
    %c0_24 = arith.constant 0 : index
    %28 = vector.load %arg9[%c0_23, %c0_24] : memref<32x32xf32, #tpu.memory_space<vmem>>, vector<32x32xf32>
    %cst_25 = arith.constant dense<0.000000e+00> : vector<16x32xf32>
    %29 = tpu.matmul %0, %28, %cst_25 {dimension_numbers = #tpu.dot_dimension_numbers<[1], [0], [0], [1], [0, 0, 1, 1], [], []>} : vector<16x32xf32>, vector<32x32xf32>, vector<16x32xf32> -> vector<16x32xf32>
    %30 = arith.addf %27, %29 : vector<16x32xf32>
    %c0_26 = arith.constant 0 : index
    %c0_27 = arith.constant 0 : index
    %31 = vector.load %arg10[%c0_26, %c0_27] : memref<1x32xf32, #tpu.memory_space<vmem>>, vector<1x32xf32>
    %32 = vector.broadcast %31 : vector<1x32xf32> to vector<16x32xf32>
    %33 = arith.addf %30, %32 : vector<16x32xf32>
    %cst_28 = arith.constant 0.000000e+00 : f32
    %34 = vector.broadcast %cst_28 : f32 to vector<16x32xf32>
    %35 = arith.cmpf oge, %33, %34 : vector<16x32xf32>
    %cst_29 = arith.constant 0.333333343 : f32
    %36 = vector.broadcast %cst_29 : f32 to vector<16x32xf32>
    %37 = arith.mulf %33, %36 : vector<16x32xf32>
    %38 = arith.select %35, %33, %37 : vector<16x32xi1>, vector<16x32xf32>
    %cst_30 = arith.constant -3.000000e+00 : f32
    %cst_31 = arith.constant 3.000000e+00 : f32
    %39 = vector.broadcast %cst_30 : f32 to vector<16x32xf32>
    %40 = arith.maximumf %39, %38 : vector<16x32xf32>
    %41 = vector.broadcast %cst_31 : f32 to vector<16x32xf32>
    %42 = arith.minimumf %41, %40 : vector<16x32xf32>
    %c0_32 = arith.constant 0 : index
    %c0_33 = arith.constant 0 : index
    %43 = vector.load %arg11[%c0_32, %c0_33] : memref<32x16xf32, #tpu.memory_space<vmem>>, vector<32x16xf32>
    %cst_34 = arith.constant dense<0.000000e+00> : vector<16x16xf32>
    %44 = tpu.matmul %42, %43, %cst_34 {dimension_numbers = #tpu.dot_dimension_numbers<[1], [0], [0], [1], [0, 0, 1, 1], [], []>} : vector<16x32xf32>, vector<32x16xf32>, vector<16x16xf32> -> vector<16x16xf32>
    %c0_35 = arith.constant 0 : index
    %c0_36 = arith.constant 0 : index
    %45 = vector.load %arg12[%c0_35, %c0_36] : memref<1x16xf32, #tpu.memory_space<vmem>>, vector<1x16xf32>
    %46 = vector.broadcast %45 : vector<1x16xf32> to vector<16x16xf32>
    %47 = arith.addf %44, %46 : vector<16x16xf32>
    %cst_37 = arith.constant -8.000000e+00 : f32
    %cst_38 = arith.constant 8.000000e+00 : f32
    %48 = vector.broadcast %cst_37 : f32 to vector<16x16xf32>
    %49 = arith.maximumf %48, %47 : vector<16x16xf32>
    %50 = vector.broadcast %cst_38 : f32 to vector<16x16xf32>
    %51 = arith.minimumf %50, %49 : vector<16x16xf32>
    %c0_39 = arith.constant 0 : index
    %c0_40 = arith.constant 0 : index
    %52 = vector.load %arg18[%c0_39, %c0_40] : memref<16x16xf32, #tpu.memory_space<vmem>>, vector<16x16xf32>
    tpu.vector_store %arg18[%c0_39, %c0_40], %51 {strides = array<i32>} : memref<16x16xf32, #tpu.memory_space<vmem>>, vector<16x16xf32>,
    %53 = vector.extract_strided_slice %51 {offsets = [0, 0], sizes = [16, 8], strides = [1, 1]} : vector<16x16xf32> to vector<16x8xf32>
    %54 = vector.extract_strided_slice %51 {offsets = [0, 8], sizes = [16, 8], strides = [1, 1]} : vector<16x16xf32> to vector<16x8xf32>
    %c0_41 = arith.constant 0 : index
    %c0_42 = arith.constant 0 : index
    %55 = vector.load %arg3[%c0_41, %c0_42] : memref<16x8xf32, #tpu.memory_space<vmem>>, vector<16x8xf32>
    %cst_43 = arith.constant 5.000000e-01 : f32
    %56 = vector.broadcast %cst_43 : f32 to vector<16x8xf32>
    %57 = arith.mulf %56, %54 : vector<16x8xf32>
    %58 = math.exp %57 : vector<16x8xf32>
    %59 = arith.mulf %55, %58 : vector<16x8xf32>
    %60 = arith.addf %59, %53 : vector<16x8xf32>
    %c0_44 = arith.constant 0 : index
    %c0_45 = arith.constant 0 : index
    %61 = vector.load %arg19[%c0_44, %c0_45] : memref<16x8xf32, #tpu.memory_space<vmem>>, vector<16x8xf32>
    tpu.vector_store %arg19[%c0_44, %c0_45], %60 {strides = array<i32>} : memref<16x8xf32, #tpu.memory_space<vmem>>, vector<16x8xf32>,
    %c0_46 = arith.constant 0 : index
    %c0_47 = arith.constant 0 : index
    %62 = vector.load %arg13[%c0_46, %c0_47] : memref<32x128xf32, #tpu.memory_space<vmem>>, vector<32x128xf32>
    %cst_48 = arith.constant dense<0.000000e+00> : vector<16x128xf32>
    %63 = tpu.matmul %0, %62, %cst_48 {dimension_numbers = #tpu.dot_dimension_numbers<[1], [0], [0], [1], [0, 0, 1, 1], [], []>} : vector<16x32xf32>, vector<32x128xf32>, vector<16x128xf32> -> vector<16x128xf32>
    %c0_49 = arith.constant 0 : index
    %c0_50 = arith.constant 0 : index
    %64 = vector.load %arg14[%c0_49, %c0_50] : memref<8x128xf32, #tpu.memory_space<vmem>>, vector<8x128xf32>
    %cst_51 = arith.constant dense<0.000000e+00> : vector<16x128xf32>
    %65 = tpu.matmul %60, %64, %cst_51 {dimension_numbers = #tpu.dot_dimension_numbers<[1], [0], [0], [1], [0, 0, 1, 1], [], []>} : vector<16x8xf32>, vector<8x128xf32>, vector<16x128xf32> -> vector<16x128xf32>
    %66 = arith.addf %63, %65 : vector<16x128xf32>
    %c0_52 = arith.constant 0 : index
    %c0_53 = arith.constant 0 : index
    %67 = vector.load %arg15[%c0_52, %c0_53] : memref<1x128xf32, #tpu.memory_space<vmem>>, vector<1x128xf32>
    %68 = vector.broadcast %67 : vector<1x128xf32> to vector<16x128xf32>
    %69 = arith.addf %66, %68 : vector<16x128xf32>
    %c0_54 = arith.constant 0 : index
    %c0_55 = arith.constant 0 : index
    %70 = vector.load %arg16[%c0_54, %c0_55] : memref<32x128xf32, #tpu.memory_space<vmem>>, vector<32x128xf32>
    %cst_56 = arith.constant 0.000000e+00 : f32
    %71 = vector.broadcast %cst_56 : f32 to vector<2x32xf32>
    %cst_57 = arith.constant 0.000000e+00 : f32
    %72 = vector.broadcast %cst_57 : f32 to vector<2x32xf32>
    %73 = vector.extract_strided_slice %69 {offsets = [0, 0], sizes = [2, 128], strides = [1, 1]} : vector<16x128xf32> to vector<2x128xf32>
    %cst_58 = arith.constant dense<0.000000e+00> : vector<2x128xf32>
    %74 = tpu.matmul %71, %70, %cst_58 {dimension_numbers = #tpu.dot_dimension_numbers<[1], [0], [0], [1], [0, 0, 1, 1], [], []>} : vector<2x32xf32>, vector<32x128xf32>, vector<2x128xf32> -> vector<2x128xf32>
    %75 = arith.addf %73, %74 : vector<2x128xf32>
    %76 = arith.negf %75 : vector<2x128xf32>
    %77 = math.exp %76 : vector<2x128xf32>
    %cst_59 = arith.constant 1.000000e+00 : f32
    %78 = vector.broadcast %cst_59 : f32 to vector<2x128xf32>
    %79 = arith.addf %78, %77 : vector<2x128xf32>
    %80 = arith.divf %78, %79 : vector<2x128xf32>
    %81 = math.tanh %75 : vector<2x128xf32>
    %82 = vector.extract_strided_slice %80 {offsets = [0, 0], sizes = [2, 32], strides = [1, 1]} : vector<2x128xf32> to vector<2x32xf32>
    %83 = vector.extract_strided_slice %80 {offsets = [0, 32], sizes = [2, 32], strides = [1, 1]} : vector<2x128xf32> to vector<2x32xf32>
    %84 = vector.extract_strided_slice %81 {offsets = [0, 64], sizes = [2, 32], strides = [1, 1]} : vector<2x128xf32> to vector<2x32xf32>
    %85 = vector.extract_strided_slice %80 {offsets = [0, 96], sizes = [2, 32], strides = [1, 1]} : vector<2x128xf32> to vector<2x32xf32>
    %86 = arith.mulf %83, %72 : vector<2x32xf32>
    %87 = arith.mulf %82, %84 : vector<2x32xf32>
    %88 = arith.addf %86, %87 : vector<2x32xf32>
    %89 = math.tanh %88 : vector<2x32xf32>
    %90 = arith.mulf %85, %89 : vector<2x32xf32>
    %c0_60 = arith.constant 0 : index
    %c0_61 = arith.constant 0 : index
    %91 = vector.load %arg21[%c0_60, %c0_61] : memref<16x32xf32, #tpu.memory_space<vmem>>, vector<2x32xf32>
    tpu.vector_store %arg21[%c0_60, %c0_61], %90 {strides = array<i32>} : memref<16x32xf32, #tpu.memory_space<vmem>>, vector<2x32xf32>,
    %92 = vector.extract_strided_slice %69 {offsets = [2, 0], sizes = [2, 128], strides = [1, 1]} : vector<16x128xf32> to vector<2x128xf32>
    %cst_62 = arith.constant dense<0.000000e+00> : vector<2x128xf32>
    %93 = tpu.matmul %90, %70, %cst_62 {dimension_numbers = #tpu.dot_dimension_numbers<[1], [0], [0], [1], [0, 0, 1, 1], [], []>} : vector<2x32xf32>, vector<32x128xf32>, vector<2x128xf32> -> vector<2x128xf32>
    %94 = arith.addf %92, %93 : vector<2x128xf32>
    %95 = arith.negf %94 : vector<2x128xf32>
    %96 = math.exp %95 : vector<2x128xf32>
    %cst_63 = arith.constant 1.000000e+00 : f32
    %97 = vector.broadcast %cst_63 : f32 to vector<2x128xf32>
    %98 = arith.addf %97, %96 : vector<2x128xf32>
    %99 = arith.divf %97, %98 : vector<2x128xf32>
    %100 = math.tanh %94 : vector<2x128xf32>
    %101 = vector.extract_strided_slice %99 {offsets = [0, 0], sizes = [2, 32], strides = [1, 1]} : vector<2x128xf32> to vector<2x32xf32>
    %102 = vector.extract_strided_slice %99 {offsets = [0, 32], sizes = [2, 32], strides = [1, 1]} : vector<2x128xf32> to vector<2x32xf32>
    %103 = vector.extract_strided_slice %100 {offsets = [0, 64], sizes = [2, 32], strides = [1, 1]} : vector<2x128xf32> to vector<2x32xf32>
    %104 = vector.extract_strided_slice %99 {offsets = [0, 96], sizes = [2, 32], strides = [1, 1]} : vector<2x128xf32> to vector<2x32xf32>
    %105 = arith.mulf %102, %88 : vector<2x32xf32>
    %106 = arith.mulf %101, %103 : vector<2x32xf32>
    %107 = arith.addf %105, %106 : vector<2x32xf32>
    %108 = math.tanh %107 : vector<2x32xf32>
    %109 = arith.mulf %104, %108 : vector<2x32xf32>
    %c2 = arith.constant 2 : index
    %c0_64 = arith.constant 0 : index
    %110 = vector.load %arg21[%c2, %c0_64] : memref<16x32xf32, #tpu.memory_space<vmem>>, vector<2x32xf32>
    tpu.vector_store %arg21[%c2, %c0_64], %109 {strides = array<i32>} : memref<16x32xf32, #tpu.memory_space<vmem>>, vector<2x32xf32>,
    %111 = vector.extract_strided_slice %69 {offsets = [4, 0], sizes = [2, 128], strides = [1, 1]} : vector<16x128xf32> to vector<2x128xf32>
    %cst_65 = arith.constant dense<0.000000e+00> : vector<2x128xf32>
    %112 = tpu.matmul %109, %70, %cst_65 {dimension_numbers = #tpu.dot_dimension_numbers<[1], [0], [0], [1], [0, 0, 1, 1], [], []>} : vector<2x32xf32>, vector<32x128xf32>, vector<2x128xf32> -> vector<2x128xf32>
    %113 = arith.addf %111, %112 : vector<2x128xf32>
    %114 = arith.negf %113 : vector<2x128xf32>
    %115 = math.exp %114 : vector<2x128xf32>
    %cst_66 = arith.constant 1.000000e+00 : f32
    %116 = vector.broadcast %cst_66 : f32 to vector<2x128xf32>
    %117 = arith.addf %116, %115 : vector<2x128xf32>
    %118 = arith.divf %116, %117 : vector<2x128xf32>
    %119 = math.tanh %113 : vector<2x128xf32>
    %120 = vector.extract_strided_slice %118 {offsets = [0, 0], sizes = [2, 32], strides = [1, 1]} : vector<2x128xf32> to vector<2x32xf32>
    %121 = vector.extract_strided_slice %118 {offsets = [0, 32], sizes = [2, 32], strides = [1, 1]} : vector<2x128xf32> to vector<2x32xf32>
    %122 = vector.extract_strided_slice %119 {offsets = [0, 64], sizes = [2, 32], strides = [1, 1]} : vector<2x128xf32> to vector<2x32xf32>
    %123 = vector.extract_strided_slice %118 {offsets = [0, 96], sizes = [2, 32], strides = [1, 1]} : vector<2x128xf32> to vector<2x32xf32>
    %124 = arith.mulf %121, %107 : vector<2x32xf32>
    %125 = arith.mulf %120, %122 : vector<2x32xf32>
    %126 = arith.addf %124, %125 : vector<2x32xf32>
    %127 = math.tanh %126 : vector<2x32xf32>
    %128 = arith.mulf %123, %127 : vector<2x32xf32>
    %c4 = arith.constant 4 : index
    %c0_67 = arith.constant 0 : index
    %129 = vector.load %arg21[%c4, %c0_67] : memref<16x32xf32, #tpu.memory_space<vmem>>, vector<2x32xf32>
    tpu.vector_store %arg21[%c4, %c0_67], %128 {strides = array<i32>} : memref<16x32xf32, #tpu.memory_space<vmem>>, vector<2x32xf32>,
    %130 = vector.extract_strided_slice %69 {offsets = [6, 0], sizes = [2, 128], strides = [1, 1]} : vector<16x128xf32> to vector<2x128xf32>
    %cst_68 = arith.constant dense<0.000000e+00> : vector<2x128xf32>
    %131 = tpu.matmul %128, %70, %cst_68 {dimension_numbers = #tpu.dot_dimension_numbers<[1], [0], [0], [1], [0, 0, 1, 1], [], []>} : vector<2x32xf32>, vector<32x128xf32>, vector<2x128xf32> -> vector<2x128xf32>
    %132 = arith.addf %130, %131 : vector<2x128xf32>
    %133 = arith.negf %132 : vector<2x128xf32>
    %134 = math.exp %133 : vector<2x128xf32>
    %cst_69 = arith.constant 1.000000e+00 : f32
    %135 = vector.broadcast %cst_69 : f32 to vector<2x128xf32>
    %136 = arith.addf %135, %134 : vector<2x128xf32>
    %137 = arith.divf %135, %136 : vector<2x128xf32>
    %138 = math.tanh %132 : vector<2x128xf32>
    %139 = vector.extract_strided_slice %137 {offsets = [0, 0], sizes = [2, 32], strides = [1, 1]} : vector<2x128xf32> to vector<2x32xf32>
    %140 = vector.extract_strided_slice %137 {offsets = [0, 32], sizes = [2, 32], strides = [1, 1]} : vector<2x128xf32> to vector<2x32xf32>
    %141 = vector.extract_strided_slice %138 {offsets = [0, 64], sizes = [2, 32], strides = [1, 1]} : vector<2x128xf32> to vector<2x32xf32>
    %142 = vector.extract_strided_slice %137 {offsets = [0, 96], sizes = [2, 32], strides = [1, 1]} : vector<2x128xf32> to vector<2x32xf32>
    %143 = arith.mulf %140, %126 : vector<2x32xf32>
    %144 = arith.mulf %139, %141 : vector<2x32xf32>
    %145 = arith.addf %143, %144 : vector<2x32xf32>
    %146 = math.tanh %145 : vector<2x32xf32>
    %147 = arith.mulf %142, %146 : vector<2x32xf32>
    %c6 = arith.constant 6 : index
    %c0_70 = arith.constant 0 : index
    %148 = vector.load %arg21[%c6, %c0_70] : memref<16x32xf32, #tpu.memory_space<vmem>>, vector<2x32xf32>
    tpu.vector_store %arg21[%c6, %c0_70], %147 {strides = array<i32>} : memref<16x32xf32, #tpu.memory_space<vmem>>, vector<2x32xf32>,
    %149 = vector.extract_strided_slice %69 {offsets = [8, 0], sizes = [2, 128], strides = [1, 1]} : vector<16x128xf32> to vector<2x128xf32>
    %cst_71 = arith.constant dense<0.000000e+00> : vector<2x128xf32>
    %150 = tpu.matmul %147, %70, %cst_71 {dimension_numbers = #tpu.dot_dimension_numbers<[1], [0], [0], [1], [0, 0, 1, 1], [], []>} : vector<2x32xf32>, vector<32x128xf32>, vector<2x128xf32> -> vector<2x128xf32>
    %151 = arith.addf %149, %150 : vector<2x128xf32>
    %152 = arith.negf %151 : vector<2x128xf32>
    %153 = math.exp %152 : vector<2x128xf32>
    %cst_72 = arith.constant 1.000000e+00 : f32
    %154 = vector.broadcast %cst_72 : f32 to vector<2x128xf32>
    %155 = arith.addf %154, %153 : vector<2x128xf32>
    %156 = arith.divf %154, %155 : vector<2x128xf32>
    %157 = math.tanh %151 : vector<2x128xf32>
    %158 = vector.extract_strided_slice %156 {offsets = [0, 0], sizes = [2, 32], strides = [1, 1]} : vector<2x128xf32> to vector<2x32xf32>
    %159 = vector.extract_strided_slice %156 {offsets = [0, 32], sizes = [2, 32], strides = [1, 1]} : vector<2x128xf32> to vector<2x32xf32>
    %160 = vector.extract_strided_slice %157 {offsets = [0, 64], sizes = [2, 32], strides = [1, 1]} : vector<2x128xf32> to vector<2x32xf32>
    %161 = vector.extract_strided_slice %156 {offsets = [0, 96], sizes = [2, 32], strides = [1, 1]} : vector<2x128xf32> to vector<2x32xf32>
    %162 = arith.mulf %159, %145 : vector<2x32xf32>
    %163 = arith.mulf %158, %160 : vector<2x32xf32>
    %164 = arith.addf %162, %163 : vector<2x32xf32>
    %165 = math.tanh %164 : vector<2x32xf32>
    %166 = arith.mulf %161, %165 : vector<2x32xf32>
    %c8 = arith.constant 8 : index
    %c0_73 = arith.constant 0 : index
    %167 = vector.load %arg21[%c8, %c0_73] : memref<16x32xf32, #tpu.memory_space<vmem>>, vector<2x32xf32>
    tpu.vector_store %arg21[%c8, %c0_73], %166 {strides = array<i32>} : memref<16x32xf32, #tpu.memory_space<vmem>>, vector<2x32xf32>,
    %168 = vector.extract_strided_slice %69 {offsets = [10, 0], sizes = [2, 128], strides = [1, 1]} : vector<16x128xf32> to vector<2x128xf32>
    %cst_74 = arith.constant dense<0.000000e+00> : vector<2x128xf32>
    %169 = tpu.matmul %166, %70, %cst_74 {dimension_numbers = #tpu.dot_dimension_numbers<[1], [0], [0], [1], [0, 0, 1, 1], [], []>} : vector<2x32xf32>, vector<32x128xf32>, vector<2x128xf32> -> vector<2x128xf32>
    %170 = arith.addf %168, %169 : vector<2x128xf32>
    %171 = arith.negf %170 : vector<2x128xf32>
    %172 = math.exp %171 : vector<2x128xf32>
    %cst_75 = arith.constant 1.000000e+00 : f32
    %173 = vector.broadcast %cst_75 : f32 to vector<2x128xf32>
    %174 = arith.addf %173, %172 : vector<2x128xf32>
    %175 = arith.divf %173, %174 : vector<2x128xf32>
    %176 = math.tanh %170 : vector<2x128xf32>
    %177 = vector.extract_strided_slice %175 {offsets = [0, 0], sizes = [2, 32], strides = [1, 1]} : vector<2x128xf32> to vector<2x32xf32>
    %178 = vector.extract_strided_slice %175 {offsets = [0, 32], sizes = [2, 32], strides = [1, 1]} : vector<2x128xf32> to vector<2x32xf32>
    %179 = vector.extract_strided_slice %176 {offsets = [0, 64], sizes = [2, 32], strides = [1, 1]} : vector<2x128xf32> to vector<2x32xf32>
    %180 = vector.extract_strided_slice %175 {offsets = [0, 96], sizes = [2, 32], strides = [1, 1]} : vector<2x128xf32> to vector<2x32xf32>
    %181 = arith.mulf %178, %164 : vector<2x32xf32>
    %182 = arith.mulf %177, %179 : vector<2x32xf32>
    %183 = arith.addf %181, %182 : vector<2x32xf32>
    %184 = math.tanh %183 : vector<2x32xf32>
    %185 = arith.mulf %180, %184 : vector<2x32xf32>
    %c10 = arith.constant 10 : index
    %c0_76 = arith.constant 0 : index
    %186 = vector.load %arg21[%c10, %c0_76] : memref<16x32xf32, #tpu.memory_space<vmem>>, vector<2x32xf32>
    tpu.vector_store %arg21[%c10, %c0_76], %185 {strides = array<i32>} : memref<16x32xf32, #tpu.memory_space<vmem>>, vector<2x32xf32>,
    %187 = vector.extract_strided_slice %69 {offsets = [12, 0], sizes = [2, 128], strides = [1, 1]} : vector<16x128xf32> to vector<2x128xf32>
    %cst_77 = arith.constant dense<0.000000e+00> : vector<2x128xf32>
    %188 = tpu.matmul %185, %70, %cst_77 {dimension_numbers = #tpu.dot_dimension_numbers<[1], [0], [0], [1], [0, 0, 1, 1], [], []>} : vector<2x32xf32>, vector<32x128xf32>, vector<2x128xf32> -> vector<2x128xf32>
    %189 = arith.addf %187, %188 : vector<2x128xf32>
    %190 = arith.negf %189 : vector<2x128xf32>
    %191 = math.exp %190 : vector<2x128xf32>
    %cst_78 = arith.constant 1.000000e+00 : f32
    %192 = vector.broadcast %cst_78 : f32 to vector<2x128xf32>
    %193 = arith.addf %192, %191 : vector<2x128xf32>
    %194 = arith.divf %192, %193 : vector<2x128xf32>
    %195 = math.tanh %189 : vector<2x128xf32>
    %196 = vector.extract_strided_slice %194 {offsets = [0, 0], sizes = [2, 32], strides = [1, 1]} : vector<2x128xf32> to vector<2x32xf32>
    %197 = vector.extract_strided_slice %194 {offsets = [0, 32], sizes = [2, 32], strides = [1, 1]} : vector<2x128xf32> to vector<2x32xf32>
    %198 = vector.extract_strided_slice %195 {offsets = [0, 64], sizes = [2, 32], strides = [1, 1]} : vector<2x128xf32> to vector<2x32xf32>
    %199 = vector.extract_strided_slice %194 {offsets = [0, 96], sizes = [2, 32], strides = [1, 1]} : vector<2x128xf32> to vector<2x32xf32>
    %200 = arith.mulf %197, %183 : vector<2x32xf32>
    %201 = arith.mulf %196, %198 : vector<2x32xf32>
    %202 = arith.addf %200, %201 : vector<2x32xf32>
    %203 = math.tanh %202 : vector<2x32xf32>
    %204 = arith.mulf %199, %203 : vector<2x32xf32>
    %c12 = arith.constant 12 : index
    %c0_79 = arith.constant 0 : index
    %205 = vector.load %arg21[%c12, %c0_79] : memref<16x32xf32, #tpu.memory_space<vmem>>, vector<2x32xf32>
    tpu.vector_store %arg21[%c12, %c0_79], %204 {strides = array<i32>} : memref<16x32xf32, #tpu.memory_space<vmem>>, vector<2x32xf32>,
    %206 = vector.extract_strided_slice %69 {offsets = [14, 0], sizes = [2, 128], strides = [1, 1]} : vector<16x128xf32> to vector<2x128xf32>
    %cst_80 = arith.constant dense<0.000000e+00> : vector<2x128xf32>
    %207 = tpu.matmul %204, %70, %cst_80 {dimension_numbers = #tpu.dot_dimension_numbers<[1], [0], [0], [1], [0, 0, 1, 1], [], []>} : vector<2x32xf32>, vector<32x128xf32>, vector<2x128xf32> -> vector<2x128xf32>
    %208 = arith.addf %206, %207 : vector<2x128xf32>
    %209 = arith.negf %208 : vector<2x128xf32>
    %210 = math.exp %209 : vector<2x128xf32>
    %cst_81 = arith.constant 1.000000e+00 : f32
    %211 = vector.broadcast %cst_81 : f32 to vector<2x128xf32>
    %212 = arith.addf %211, %210 : vector<2x128xf32>
    %213 = arith.divf %211, %212 : vector<2x128xf32>
    %214 = math.tanh %208 : vector<2x128xf32>
    %215 = vector.extract_strided_slice %213 {offsets = [0, 0], sizes = [2, 32], strides = [1, 1]} : vector<2x128xf32> to vector<2x32xf32>
    %216 = vector.extract_strided_slice %213 {offsets = [0, 32], sizes = [2, 32], strides = [1, 1]} : vector<2x128xf32> to vector<2x32xf32>
    %217 = vector.extract_strided_slice %214 {offsets = [0, 64], sizes = [2, 32], strides = [1, 1]} : vector<2x128xf32> to vector<2x32xf32>
    %218 = vector.extract_strided_slice %213 {offsets = [0, 96], sizes = [2, 32], strides = [1, 1]} : vector<2x128xf32> to vector<2x32xf32>
    %219 = arith.mulf %216, %202 : vector<2x32xf32>
    %220 = arith.mulf %215, %217 : vector<2x32xf32>
    %221 = arith.addf %219, %220 : vector<2x32xf32>
    %222 = math.tanh %221 : vector<2x32xf32>
    %223 = arith.mulf %218, %222 : vector<2x32xf32>
    %c14 = arith.constant 14 : index
    %c0_82 = arith.constant 0 : index
    %224 = vector.load %arg21[%c14, %c0_82] : memref<16x32xf32, #tpu.memory_space<vmem>>, vector<2x32xf32>
    tpu.vector_store %arg21[%c14, %c0_82], %223 {strides = array<i32>} : memref<16x32xf32, #tpu.memory_space<vmem>>, vector<2x32xf32>,
    %c0_83 = arith.constant 0 : index
    %c0_84 = arith.constant 0 : index
    %225 = vector.load %arg21[%c0_83, %c0_84] : memref<16x32xf32, #tpu.memory_space<vmem>>, vector<16x32xf32>
    %c0_85 = arith.constant 0 : index
    %c0_86 = arith.constant 0 : index
    %226 = vector.load %arg20[%c0_85, %c0_86] : memref<16x32xf32, #tpu.memory_space<vmem>>, vector<16x32xf32>
    tpu.vector_store %arg20[%c0_85, %c0_86], %225 {strides = array<i32>} : memref<16x32xf32, #tpu.memory_space<vmem>>, vector<16x32xf32>,
    return
  }
  func.func @transform_0(%arg0: i32) -> (i32, i32) {
    %c0_i32 = arith.constant 0 : i32
    %c0_i32_0 = arith.constant 0 : i32
    %c0_i32_1 = arith.constant 0 : i32
    return %c0_i32, %c0_i32_0 : i32, i32
  }
  func.func @transform_1(%arg0: i32) -> (i32, i32) {
    %c0_i32 = arith.constant 0 : i32
    %c0_i32_0 = arith.constant 0 : i32
    %c0_i32_1 = arith.constant 0 : i32
    return %c0_i32, %c0_i32_0 : i32, i32
  }
  func.func @transform_2(%arg0: i32) -> (i32, i32) {
    %c0_i32 = arith.constant 0 : i32
    %c0_i32_0 = arith.constant 0 : i32
    %c0_i32_1 = arith.constant 0 : i32
    return %c0_i32, %c0_i32_0 : i32, i32
  }
  func.func @transform_3(%arg0: i32) -> (i32, i32) {
    %c0_i32 = arith.constant 0 : i32
    %c0_i32_0 = arith.constant 0 : i32
    %c0_i32_1 = arith.constant 0 : i32
    return %c0_i32, %c0_i32_0 : i32, i32
  }
  func.func @transform_4(%arg0: i32) -> (i32, i32) {
    %c0_i32 = arith.constant 0 : i32
    %c0_i32_0 = arith.constant 0 : i32
    %c0_i32_1 = arith.constant 0 : i32
    return %c0_i32, %c0_i32_0 : i32, i32
  }
  func.func @transform_5(%arg0: i32) -> (i32, i32) {
    %c0_i32 = arith.constant 0 : i32
    %c0_i32_0 = arith.constant 0 : i32
    %c0_i32_1 = arith.constant 0 : i32
    return %c0_i32, %c0_i32_0 : i32, i32
  }
  func.func @transform_6(%arg0: i32) -> (i32, i32) {
    %c0_i32 = arith.constant 0 : i32
    %c0_i32_0 = arith.constant 0 : i32
    %c0_i32_1 = arith.constant 0 : i32
    return %c0_i32, %c0_i32_0 : i32, i32
  }
  func.func @transform_7(%arg0: i32) -> (i32, i32) {
    %c0_i32 = arith.constant 0 : i32
    %c0_i32_0 = arith.constant 0 : i32
    %c0_i32_1 = arith.constant 0 : i32
    return %c0_i32, %c0_i32_0 : i32, i32
  }
  func.func @transform_8(%arg0: i32) -> (i32, i32) {
    %c0_i32 = arith.constant 0 : i32
    %c0_i32_0 = arith.constant 0 : i32
    %c0_i32_1 = arith.constant 0 : i32
    return %c0_i32, %c0_i32_0 : i32, i32
  }
  func.func @transform_9(%arg0: i32) -> (i32, i32) {
    %c0_i32 = arith.constant 0 : i32
    %c0_i32_0 = arith.constant 0 : i32
    %c0_i32_1 = arith.constant 0 : i32
    return %c0_i32, %c0_i32_0 : i32, i32
  }
  func.func @transform_10(%arg0: i32) -> (i32, i32) {
    %c0_i32 = arith.constant 0 : i32
    %c0_i32_0 = arith.constant 0 : i32
    %c0_i32_1 = arith.constant 0 : i32
    return %c0_i32, %c0_i32_0 : i32, i32
  }
  func.func @transform_11(%arg0: i32) -> (i32, i32) {
    %c0_i32 = arith.constant 0 : i32
    %c0_i32_0 = arith.constant 0 : i32
    %c0_i32_1 = arith.constant 0 : i32
    return %c0_i32, %c0_i32_0 : i32, i32
  }
  func.func @transform_12(%arg0: i32) -> (i32, i32) {
    %c0_i32 = arith.constant 0 : i32
    %c0_i32_0 = arith.constant 0 : i32
    %c0_i32_1 = arith.constant 0 : i32
    return %c0_i32, %c0_i32_0 : i32, i32
  }
  func.func @transform_13(%arg0: i32) -> (i32, i32) {
    %c0_i32 = arith.constant 0 : i32
    %c0_i32_0 = arith.constant 0 : i32
    %c0_i32_1 = arith.constant 0 : i32
    return %c0_i32, %c0_i32_0 : i32, i32
  }
  func.func @transform_14(%arg0: i32) -> (i32, i32) {
    %c0_i32 = arith.constant 0 : i32
    %c0_i32_0 = arith.constant 0 : i32
    %c0_i32_1 = arith.constant 0 : i32
    return %c0_i32, %c0_i32_0 : i32, i32
  }
  func.func @transform_15(%arg0: i32) -> (i32, i32) {
    %c0_i32 = arith.constant 0 : i32
    %c0_i32_0 = arith.constant 0 : i32
    %c0_i32_1 = arith.constant 0 : i32
    return %c0_i32, %c0_i32_0 : i32, i32
  }
  func.func @transform_16(%arg0: i32) -> (i32, i32) {
    %c0_i32 = arith.constant 0 : i32
    %c0_i32_0 = arith.constant 0 : i32
    %c0_i32_1 = arith.constant 0 : i32
    return %c0_i32, %c0_i32_0 : i32, i32
  }
  func.func @transform_17(%arg0: i32) -> (i32, i32) {
    %c0_i32 = arith.constant 0 : i32
    %c0_i32_0 = arith.constant 0 : i32
    %c0_i32_1 = arith.constant 0 : i32
    return %c0_i32, %c0_i32_0 : i32, i32
  }
  func.func @transform_18(%arg0: i32) -> (i32, i32) {
    %c0_i32 = arith.constant 0 : i32
    %c0_i32_0 = arith.constant 0 : i32
    %c0_i32_1 = arith.constant 0 : i32
    return %c0_i32, %c0_i32_0 : i32, i32
  }
  func.func @transform_19(%arg0: i32) -> (i32, i32) {
    %c0_i32 = arith.constant 0 : i32
    %c0_i32_0 = arith.constant 0 : i32
    %c0_i32_1 = arith.constant 0 : i32
    return %c0_i32, %c0_i32_0 : i32, i32
  }
}

</mosaic_0001>

<llo_original>
// kernel: srnn_forward.3
$region0: #{srnn_forward.3}
  #allocation0 [shape = 'u32[]', space=smem, size = 0x4, offset = 0x4, fixed_abs, tag = 'smem constant byte address 0x4 - core index']
  #allocation1 [shape = 'u32[144,128]{1,0:T(1,128)}', space=vmem, size = 0x12000, scoped, tag = 'internal scratch']
  #allocation2 [shape = 'f32[16,32]{1,0:T(8,128)}', space=vmem, size = 0x2000, scoped, tag = 'scratch operand']
  %s0 = inlined_call_operand.vmem [shape: f32[16,32], index: 0, kind: input, shape index: {}]
  %s1 = inlined_call_operand.vmem [shape: f32[16,32], index: 1, kind: input, shape index: {}]
  %s2 = inlined_call_operand.vmem [shape: f32[16,8], index: 2, kind: input, shape index: {}]
  %s3 = inlined_call_operand.vmem [shape: f32[32,32], index: 3, kind: input, shape index: {}]
  %s4 = inlined_call_operand.vmem [shape: f32[1,32], index: 4, kind: input, shape index: {}]
  %s5 = inlined_call_operand.vmem [shape: f32[32,16], index: 5, kind: input, shape index: {}]
  %s6 = inlined_call_operand.vmem [shape: f32[1,16], index: 6, kind: input, shape index: {}]
  %s7 = inlined_call_operand.vmem [shape: f32[32,32], index: 7, kind: input, shape index: {}]
  %s8 = inlined_call_operand.vmem [shape: f32[32,32], index: 8, kind: input, shape index: {}]
  %s9 = inlined_call_operand.vmem [shape: f32[1,32], index: 9, kind: input, shape index: {}]
  %s10 = inlined_call_operand.vmem [shape: f32[32,16], index: 10, kind: input, shape index: {}]
  %s11 = inlined_call_operand.vmem [shape: f32[1,16], index: 11, kind: input, shape index: {}]
  %s12 = inlined_call_operand.vmem [shape: f32[32,128], index: 12, kind: input, shape index: {}]
  %s13 = inlined_call_operand.vmem [shape: f32[8,128], index: 13, kind: input, shape index: {}]
  %s14 = inlined_call_operand.vmem [shape: f32[1,128], index: 14, kind: input, shape index: {}]
  %s15 = inlined_call_operand.vmem [shape: f32[32,128], index: 15, kind: input, shape index: {}]
  %s16 = inlined_call_operand.vmem [shape: f32[16,16], index: 16, kind: output, shape index: {0}]
  %s17 = inlined_call_operand.vmem [shape: f32[16,16], index: 17, kind: output, shape index: {1}]
  %s18 = inlined_call_operand.hbm [shape: f32[16,8], index: 18, kind: output, shape index: {2}]
  %s19 = inlined_call_operand.hbm [shape: f32[16,32], index: 19, kind: output, shape index: {3}]
  %20 = xla_tuple %s16, %s17, %s18, %s19
  %s21 = sld [smem:[#allocation0]]
  $region98: #{srnn_forward.3} parent=0
    _
  %s23 = ssub.s32 1, %s21
  %s24 = scalar_select 0, %s23, %s21
  $region1: #{srnn_forward.3} parent=0
    #allocation3 [shape = 'u8[8192]{0}', space=vmem, size = 0x2000, scoped, tag = 'output window, operand 2, single buffered']
    #allocation4 [shape = 's32[1]{0}', space=sflag, size = 0x4, scoped, tag = 'scoped memory for srnn_forward.3']
    #allocation5 [shape = 'u8[8192]{0}', space=vmem, size = 0x2000, scoped, tag = 'output window, operand 3, single buffered']
    #allocation6 [shape = 's32[1]{0}', space=sflag, size = 0x4, scoped, tag = 'scoped memory for srnn_forward.3']
    %25 = vsyncpa [#allocation4], 0
    %26 = vsyncpa [#allocation6], 0
    // Predicated region
    $region2: #{srnn_forward.3} parent=1 // pred_check
      _
    $region3: #{srnn_forward.3} parent=1 // pred_check_branch
      %28 = sbr.rel (0) target = $region5
    $region4: #{srnn_forward.3} parent=1 // pred_region
      _
    $region5: #{srnn_forward.3} parent=1 // pred_fallthru
      _
    // Predicated region
    $region6: #{srnn_forward.3} parent=1 // pred_check
      _
    $region7: #{srnn_forward.3} parent=1 // pred_check_branch
      %30 = sbr.rel (0) target = $region9
    $region8: #{srnn_forward.3} parent=1 // pred_region
      _
    $region9: #{srnn_forward.3} parent=1 // pred_fallthru
      _
    // Predicated region
    $region10: #{srnn_forward.3} parent=1 // pred_check
      _
    $region11: #{srnn_forward.3} parent=1 // pred_check_branch
      %32 = sbr.rel (0) target = $region13
    $region12: #{srnn_forward.3} parent=1 // pred_region
      _
    $region13: #{srnn_forward.3} parent=1 // pred_fallthru
      _
    // Predicated region
    $region14: #{srnn_forward.3} parent=1 // pred_check
      _
    $region15: #{srnn_forward.3} parent=1 // pred_check_branch
      %34 = sbr.rel (0) target = $region17
    $region16: #{srnn_forward.3} parent=1 // pred_region
      _
    $region17: #{srnn_forward.3} parent=1 // pred_fallthru
      _
    // Predicated region
    $region18: #{srnn_forward.3} parent=1 // pred_check
      _
    $region19: #{srnn_forward.3} parent=1 // pred_check_branch
      %36 = sbr.rel (0) target = $region21
    $region20: #{srnn_forward.3} parent=1 // pred_region
      _
    $region21: #{srnn_forward.3} parent=1 // pred_fallthru
      _
    // Predicated region
    $region22: #{srnn_forward.3} parent=1 // pred_check
      _
    $region23: #{srnn_forward.3} parent=1 // pred_check_branch
      %38 = sbr.rel (0) target = $region25
    $region24: #{srnn_forward.3} parent=1 // pred_region
      _
    $region25: #{srnn_forward.3} parent=1 // pred_fallthru
      _
    // Predicated region
    $region26: #{srnn_forward.3} parent=1 // pred_check
      _
    $region27: #{srnn_forward.3} parent=1 // pred_check_branch
      %40 = sbr.rel (0) target = $region29
    $region28: #{srnn_forward.3} parent=1 // pred_region
      _
    $region29: #{srnn_forward.3} parent=1 // pred_fallthru
      _
    // Predicated region
    $region30: #{srnn_forward.3} parent=1 // pred_check
      _
    $region31: #{srnn_forward.3} parent=1 // pred_check_branch
      %42 = sbr.rel (0) target = $region33
    $region32: #{srnn_forward.3} parent=1 // pred_region
      _
    $region33: #{srnn_forward.3} parent=1 // pred_fallthru
      _
    // Predicated region
    $region34: #{srnn_forward.3} parent=1 // pred_check
      _
    $region35: #{srnn_forward.3} parent=1 // pred_check_branch
      %44 = sbr.rel (0) target = $region37
    $region36: #{srnn_forward.3} parent=1 // pred_region
      _
    $region37: #{srnn_forward.3} parent=1 // pred_fallthru
      _
    // Predicated region
    $region38: #{srnn_forward.3} parent=1 // pred_check
      _
    $region39: #{srnn_forward.3} parent=1 // pred_check_branch
      %46 = sbr.rel (0) target = $region41
    $region40: #{srnn_forward.3} parent=1 // pred_region
      _
    $region41: #{srnn_forward.3} parent=1 // pred_fallthru
      _
    // Predicated region
    $region42: #{srnn_forward.3} parent=1 // pred_check
      _
    $region43: #{srnn_forward.3} parent=1 // pred_check_branch
      %48 = sbr.rel (0) target = $region45
    $region44: #{srnn_forward.3} parent=1 // pred_region
      _
    $region45: #{srnn_forward.3} parent=1 // pred_fallthru
      _
    // Predicated region
    $region46: #{srnn_forward.3} parent=1 // pred_check
      _
    $region47: #{srnn_forward.3} parent=1 // pred_check_branch
      %50 = sbr.rel (0) target = $region49
    $region48: #{srnn_forward.3} parent=1 // pred_region
      _
    $region49: #{srnn_forward.3} parent=1 // pred_fallthru
      _
    // Predicated region
    $region50: #{srnn_forward.3} parent=1 // pred_check
      _
    $region51: #{srnn_forward.3} parent=1 // pred_check_branch
      %52 = sbr.rel (0) target = $region53
    $region52: #{srnn_forward.3} parent=1 // pred_region
      _
    $region53: #{srnn_forward.3} parent=1 // pred_fallthru
      _
    // Predicated region
    $region54: #{srnn_forward.3} parent=1 // pred_check
      _
    $region55: #{srnn_forward.3} parent=1 // pred_check_branch
      %54 = sbr.rel (0) target = $region57
    $region56: #{srnn_forward.3} parent=1 // pred_region
      _
    $region57: #{srnn_forward.3} parent=1 // pred_fallthru
      _
    // Predicated region
    $region58: #{srnn_forward.3} parent=1 // pred_check
      _
    $region59: #{srnn_forward.3} parent=1 // pred_check_branch
      %56 = sbr.rel (0) target = $region61
    $region60: #{srnn_forward.3} parent=1 // pred_region
      _
    $region61: #{srnn_forward.3} parent=1 // pred_fallthru
      _
    // Predicated region
    $region62: #{srnn_forward.3} parent=1 // pred_check
      _
    $region63: #{srnn_forward.3} parent=1 // pred_check_branch
      %58 = sbr.rel (0) target = $region65
    $region64: #{srnn_forward.3} parent=1 // pred_region
      _
    $region65: #{srnn_forward.3} parent=1 // pred_fallthru
      _
    %v59 = vld [vmem:[%s0] sm:$0xff]
    %v60 = vld [vmem:[%s0 + $0x8] sm:$0xff]
    %v61 = vld [vmem:[%s1] sm:$0xff]
    %v62 = vld [vmem:[%s1 + $0x8] sm:$0xff]
    %v63 = vld [vmem:[%s3] sm:$0xff]
    %v64 = vld [vmem:[%s3 + $0x8] sm:$0xff]
    %v65 = vld [vmem:[%s3 + $0x10] sm:$0xff]
    %v66 = vld [vmem:[%s3 + $0x18] sm:$0xff]
    %v67 = vld [vmem:[%s4] sm:$0x1]
    %v69 = vlaneseq
    %v70 = vshrl.u32 %v69, 7
    %v71 = vsub.s32 0, %v70
    %v72 = vrot.slane %v67, %v71
    %vm74 = vcmask 261120
    %v76 = vsel %vm74, %v59, 0
    %v79 = vsel %vm74, %v60, 0
    %81 = vmatprep.subr.mxu0 0.0
    %82 = vmatpush1.msra.mxu0 0.0
    %83 = vmatprep.subr.mxu0 0.0
    %84 = vmatpush1.msra.mxu0 0.0
    %85 = vmatprep.subr.mxu0 0.0
    %86 = vmatpush1.msra.mxu0 0.0
    %87 = vmatprep.subr.mxu0 0.0
    %88 = vmatpush1.msra.mxu0 0.0
    %89 = vmatprep.subr.mxu0 0.0
    %90 = vmatpush1.msra.mxu0 0.0
    %91 = vmatprep.subr.mxu0 0.0
    %92 = vmatpush1.msra.mxu0 0.0
    %93 = vmatprep.subr.mxu0 0.0
    %94 = vmatpush1.msra.mxu0 0.0
    %95 = vmatprep.subr.mxu0 0.0
    %96 = vmatpush1.msra.mxu0 0.0
    %97 = vmatprep.subr.mxu0 0.0
    %98 = vmatpush1.msra.mxu0 0.0
    %99 = vmatprep.subr.mxu0 0.0
    %100 = vmatpush1.msra.mxu0 0.0
    %101 = vmatprep.subr.mxu0 0.0
    %102 = vmatpush1.msra.mxu0 0.0
    %103 = vmatprep.subr.mxu0 0.0
    %104 = vmatpush1.msra.mxu0 0.0
    %105 = vmatprep.subr.mxu0 0.0
    %106 = vmatpush1.msra.mxu0 %v66
    %107 = vmatprep.subr.mxu0 0.0
    %108 = vmatpush1.msra.mxu0 %v65
    %109 = vmatprep.subr.mxu0 0.0
    %110 = vmatpush1.msra.mxu0 %v64
    %111 = vmatprep.subr.mxu0 0.0
    %112 = vmatpush1.msra.mxu0 %v63
    %113 = vmatprep.subr.mxu0 0.0
    %114 = vmatpush2.msra.mxu0 0.0
    %115 = vmatprep.subr.mxu0 0.0
    %116 = vmatpush2.msra.mxu0 0.0
    %117 = vmatprep.subr.mxu0 0.0
    %118 = vmatpush2.msra.mxu0 0.0
    %119 = vmatprep.subr.mxu0 0.0
    %120 = vmatpush2.msra.mxu0 0.0
    %121 = vmatprep.subr.mxu0 0.0
    %122 = vmatpush2.msra.mxu0 0.0
    %123 = vmatprep.subr.mxu0 0.0
    %124 = vmatpush2.msra.mxu0 0.0
    %125 = vmatprep.subr.mxu0 0.0
    %126 = vmatpush2.msra.mxu0 0.0
    %127 = vmatprep.subr.mxu0 0.0
    %128 = vmatpush2.msra.mxu0 0.0
    %129 = vmatprep.subr.mxu0 0.0
    %130 = vmatpush2.msra.mxu0 0.0
    %131 = vmatprep.subr.mxu0 0.0
    %132 = vmatpush2.msra.mxu0 0.0
    %133 = vmatprep.subr.mxu0 0.0
    %134 = vmatpush2.msra.mxu0 0.0
    %135 = vmatprep.subr.mxu0 0.0
    %136 = vmatpush2.msra.mxu0 0.0
    %137 = vmatprep.subr.mxu0 0.0
    %138 = vmatpush2.msra.mxu0 0.0
    %139 = vmatprep.subr.mxu0 0.0
    %140 = vmatpush2.msra.mxu0 0.0
    %141 = vmatprep.subr.mxu0 0.0
    %142 = vmatpush2.msra.mxu0 0.0
    %143 = vmatprep.subr.mxu0 0.0
    %144 = vmatpush2.msra.mxu0 0.0
    %145 = vmatprep.mubr.f32.mxu0 0.0
    %146 = vmatmul.mubr.f32.gmra.mxu0 %v76
    %v147 = vpop.f32.mrf.mxu0
    %v148 = vadd.f32 %v72, %v147
    %v149 = vpop.f32.mrf.mxu0
    %150 = vmatprep.mubr.f32.mxu0 0.0
    %151 = vmatmul.mubr.f32.gmra.mxu0 %v79
    %v152 = vpop.f32.mrf.mxu0
    %v153 = vadd.f32 %v72, %v152
    %v154 = vpop.f32.mrf.mxu0
    %155 = vdwg.mxu0
    %vm156 = vcmp.ge.f32.partialorder %v148, 0.0
    %vm157 = vcmp.ge.f32.partialorder %v153, 0.0
    %v158 = vmul.f32 %v148, 0.33333334
    %v159 = vmul.f32 %v153, 0.33333334
    %v160 = vsel %vm156, %v148, %v158
    %v161 = vsel %vm157, %v153, %v159
    %v162 = vmax.f32 %v160, -3.0
    %v163 = vmax.f32 %v161, -3.0
    %v164 = vmin.f32 %v162, 3.0
    %v165 = vmin.f32 %v163, 3.0
    %v166 = vld [vmem:[%s5] sm:$0xff]
    %v167 = vld [vmem:[%s5 + $0x8] sm:$0xff]
    %v168 = vld [vmem:[%s5 + $0x10] sm:$0xff]
    %v169 = vld [vmem:[%s5 + $0x18] sm:$0xff]
    %v170 = vld [vmem:[%s6] sm:$0x1]
    %v172 = vlaneseq
    %v173 = vshrl.u32 %v172, 7
    %v174 = vsub.s32 0, %v173
    %v175 = vrot.slane %v170, %v174
    %v178 = vsel %vm74, %v164, 0
    %v181 = vsel %vm74, %v165, 0
    %183 = vmatprep.subr.mxu0 0.0
    %184 = vmatpush1.msra.mxu0 0.0
    %185 = vmatprep.subr.mxu0 0.0
    %186 = vmatpush1.msra.mxu0 0.0
    %187 = vmatprep.subr.mxu0 0.0
    %188 = vmatpush1.msra.mxu0 0.0
    %189 = vmatprep.subr.mxu0 0.0
    %190 = vmatpush1.msra.mxu0 0.0
    %191 = vmatprep.subr.mxu0 0.0
    %192 = vmatpush1.msra.mxu0 0.0
    %193 = vmatprep.subr.mxu0 0.0
    %194 = vmatpush1.msra.mxu0 0.0
    %195 = vmatprep.subr.mxu0 0.0
    %196 = vmatpush1.msra.mxu0 0.0
    %197 = vmatprep.subr.mxu0 0.0
    %198 = vmatpush1.msra.mxu0 0.0
    %199 = vmatprep.subr.mxu0 0.0
    %200 = vmatpush1.msra.mxu0 0.0
    %201 = vmatprep.subr.mxu0 0.0
    %202 = vmatpush1.msra.mxu0 0.0
    %203 = vmatprep.subr.mxu0 0.0
    %204 = vmatpush1.msra.mxu0 0.0
    %205 = vmatprep.subr.mxu0 0.0
    %206 = vmatpush1.msra.mxu0 0.0
    %207 = vmatprep.subr.mxu0 0.0
    %208 = vmatpush1.msra.mxu0 %v169
    %209 = vmatprep.subr.mxu0 0.0
    %210 = vmatpush1.msra.mxu0 %v168
    %211 = vmatprep.subr.mxu0 0.0
    %212 = vmatpush1.msra.mxu0 %v167
    %213 = vmatprep.subr.mxu0 0.0
    %214 = vmatpush1.msra.mxu0 %v166
    %215 = vmatprep.subr.mxu0 0.0
    %216 = vmatpush2.msra.mxu0 0.0
    %217 = vmatprep.subr.mxu0 0.0
    %218 = vmatpush2.msra.mxu0 0.0
    %219 = vmatprep.subr.mxu0 0.0
    %220 = vmatpush2.msra.mxu0 0.0
    %221 = vmatprep.subr.mxu0 0.0
    %222 = vmatpush2.msra.mxu0 0.0
    %223 = vmatprep.subr.mxu0 0.0
    %224 = vmatpush2.msra.mxu0 0.0
    %225 = vmatprep.subr.mxu0 0.0
    %226 = vmatpush2.msra.mxu0 0.0
    %227 = vmatprep.subr.mxu0 0.0
    %228 = vmatpush2.msra.mxu0 0.0
    %229 = vmatprep.subr.mxu0 0.0
    %230 = vmatpush2.msra.mxu0 0.0
    %231 = vmatprep.subr.mxu0 0.0
    %232 = vmatpush2.msra.mxu0 0.0
    %233 = vmatprep.subr.mxu0 0.0
    %234 = vmatpush2.msra.mxu0 0.0
    %235 = vmatprep.subr.mxu0 0.0
    %236 = vmatpush2.msra.mxu0 0.0
    %237 = vmatprep.subr.mxu0 0.0
    %238 = vmatpush2.msra.mxu0 0.0
    %239 = vmatprep.subr.mxu0 0.0
    %240 = vmatpush2.msra.mxu0 0.0
    %241 = vmatprep.subr.mxu0 0.0
    %242 = vmatpush2.msra.mxu0 0.0
    %243 = vmatprep.subr.mxu0 0.0
    %244 = vmatpush2.msra.mxu0 0.0
    %245 = vmatprep.subr.mxu0 0.0
    %246 = vmatpush2.msra.mxu0 0.0
    %247 = vmatprep.mubr.f32.mxu0 0.0
    %248 = vmatmul.mubr.f32.gmra.mxu0 %v178
    %v249 = vpop.f32.mrf.mxu0
    %v250 = vadd.f32 %v175, %v249
    %v251 = vpop.f32.mrf.mxu0
    %252 = vmatprep.mubr.f32.mxu0 0.0
    %253 = vmatmul.mubr.f32.gmra.mxu0 %v181
    %v254 = vpop.f32.mrf.mxu0
    %v255 = vadd.f32 %v175, %v254
    %v256 = vpop.f32.mrf.mxu0
    %257 = vdwg.mxu0
    %v258 = vmax.f32 %v250, -8.0
    %v259 = vmax.f32 %v255, -8.0
    %v260 = vmin.f32 %v258, 8.0
    %v261 = vmin.f32 %v259, 8.0
    %vm262 = vcmask 130048
    %263 = vst.msk [vmem:[%s16] sm:$0xff] %vm262, %v260
    %264 = vst.msk [vmem:[%s16 + $0x8] sm:$0xff] %vm262, %v261
    %v265 = vld [vmem:[%s7] sm:$0xff]
    %v266 = vld [vmem:[%s7 + $0x8] sm:$0xff]
    %v267 = vld [vmem:[%s7 + $0x10] sm:$0xff]
    %v268 = vld [vmem:[%s7 + $0x18] sm:$0xff]
    %v269 = vld [vmem:[%s8] sm:$0xff]
    %v270 = vld [vmem:[%s8 + $0x8] sm:$0xff]
    %v271 = vld [vmem:[%s8 + $0x10] sm:$0xff]
    %v272 = vld [vmem:[%s8 + $0x18] sm:$0xff]
    %273 = vmatprep.subr.mxu0 0.0
    %274 = vmatpush1.msra.mxu0 0.0
    %275 = vmatprep.subr.mxu0 0.0
    %276 = vmatpush1.msra.mxu0 0.0
    %277 = vmatprep.subr.mxu0 0.0
    %278 = vmatpush1.msra.mxu0 0.0
    %279 = vmatprep.subr.mxu0 0.0
    %280 = vmatpush1.msra.mxu0 0.0
    %281 = vmatprep.subr.mxu0 0.0
    %282 = vmatpush1.msra.mxu0 0.0
    %283 = vmatprep.subr.mxu0 0.0
    %284 = vmatpush1.msra.mxu0 0.0
    %285 = vmatprep.subr.mxu0 0.0
    %286 = vmatpush1.msra.mxu0 0.0
    %287 = vmatprep.subr.mxu0 0.0
    %288 = vmatpush1.msra.mxu0 0.0
    %289 = vmatprep.subr.mxu0 0.0
    %290 = vmatpush1.msra.mxu0 0.0
    %291 = vmatprep.subr.mxu0 0.0
    %292 = vmatpush1.msra.mxu0 0.0
    %293 = vmatprep.subr.mxu0 0.0
    %294 = vmatpush1.msra.mxu0 0.0
    %295 = vmatprep.subr.mxu0 0.0
    %296 = vmatpush1.msra.mxu0 0.0
    %297 = vmatprep.subr.mxu0 0.0
    %298 = vmatpush1.msra.mxu0 %v272
    %299 = vmatprep.subr.mxu0 0.0
    %300 = vmatpush1.msra.mxu0 %v271
    %301 = vmatprep.subr.mxu0 0.0
    %302 = vmatpush1.msra.mxu0 %v270
    %303 = vmatprep.subr.mxu0 0.0
    %304 = vmatpush1.msra.mxu0 %v269
    %305 = vmatprep.subr.mxu0 0.0
    %306 = vmatpush2.msra.mxu0 0.0
    %307 = vmatprep.subr.mxu0 0.0
    %308 = vmatpush2.msra.mxu0 0.0
    %309 = vmatprep.subr.mxu0 0.0
    %310 = vmatpush2.msra.mxu0 0.0
    %311 = vmatprep.subr.mxu0 0.0
    %312 = vmatpush2.msra.mxu0 0.0
    %313 = vmatprep.subr.mxu0 0.0
    %314 = vmatpush2.msra.mxu0 0.0
    %315 = vmatprep.subr.mxu0 0.0
    %316 = vmatpush2.msra.mxu0 0.0
    %317 = vmatprep.subr.mxu0 0.0
    %318 = vmatpush2.msra.mxu0 0.0
    %319 = vmatprep.subr.mxu0 0.0
    %320 = vmatpush2.msra.mxu0 0.0
    %321 = vmatprep.subr.mxu0 0.0
    %322 = vmatpush2.msra.mxu0 0.0
    %323 = vmatprep.subr.mxu0 0.0
    %324 = vmatpush2.msra.mxu0 0.0
    %325 = vmatprep.subr.mxu0 0.0
    %326 = vmatpush2.msra.mxu0 0.0
    %327 = vmatprep.subr.mxu0 0.0
    %328 = vmatpush2.msra.mxu0 0.0
    %329 = vmatprep.subr.mxu0 0.0
    %330 = vmatpush2.msra.mxu0 0.0
    %331 = vmatprep.subr.mxu0 0.0
    %332 = vmatpush2.msra.mxu0 0.0
    %333 = vmatprep.subr.mxu0 0.0
    %334 = vmatpush2.msra.mxu0 0.0
    %335 = vmatprep.subr.mxu0 0.0
    %336 = vmatpush2.msra.mxu0 0.0
    %337 = vmatprep.mubr.f32.mxu0 0.0
    %338 = vmatmul.mubr.f32.gmra.mxu0 %v76
    %v339 = vpop.f32.mrf.mxu0
    %v340 = vadd.f32 0.0, %v339
    %v341 = vpop.f32.mrf.mxu0
    %342 = vmatprep.mubr.f32.mxu0 0.0
    %343 = vmatmul.mubr.f32.gmra.mxu0 %v79
    %v344 = vpop.f32.mrf.mxu0
    %v345 = vadd.f32 0.0, %v344
    %v346 = vpop.f32.mrf.mxu0
    %347 = vdwg.mxu0
    %v349 = vsel %vm74, %v61, 0
    %v352 = vsel %vm74, %v62, 0
    %354 = vmatprep.subr.mxu0 0.0
    %355 = vmatpush1.msra.mxu0 0.0
    %356 = vmatprep.subr.mxu0 0.0
    %357 = vmatpush1.msra.mxu0 0.0
    %358 = vmatprep.subr.mxu0 0.0
    %359 = vmatpush1.msra.mxu0 0.0
    %360 = vmatprep.subr.mxu0 0.0
    %361 = vmatpush1.msra.mxu0 0.0
    %362 = vmatprep.subr.mxu0 0.0
    %363 = vmatpush1.msra.mxu0 0.0
    %364 = vmatprep.subr.mxu0 0.0
    %365 = vmatpush1.msra.mxu0 0.0
    %366 = vmatprep.subr.mxu0 0.0
    %367 = vmatpush1.msra.mxu0 0.0
    %368 = vmatprep.subr.mxu0 0.0
    %369 = vmatpush1.msra.mxu0 0.0
    %370 = vmatprep.subr.mxu0 0.0
    %371 = vmatpush1.msra.mxu0 0.0
    %372 = vmatprep.subr.mxu0 0.0
    %373 = vmatpush1.msra.mxu0 0.0
    %374 = vmatprep.subr.mxu0 0.0
    %375 = vmatpush1.msra.mxu0 0.0
    %376 = vmatprep.subr.mxu0 0.0
    %377 = vmatpush1.msra.mxu0 0.0
    %378 = vmatprep.subr.mxu0 0.0
    %379 = vmatpush1.msra.mxu0 %v268
    %380 = vmatprep.subr.mxu0 0.0
    %381 = vmatpush1.msra.mxu0 %v267
    %382 = vmatprep.subr.mxu0 0.0
    %383 = vmatpush1.msra.mxu0 %v266
    %384 = vmatprep.subr.mxu0 0.0
    %385 = vmatpush1.msra.mxu0 %v265
    %386 = vmatprep.subr.mxu0 0.0
    %387 = vmatpush2.msra.mxu0 0.0
    %388 = vmatprep.subr.mxu0 0.0
    %389 = vmatpush2.msra.mxu0 0.0
    %390 = vmatprep.subr.mxu0 0.0
    %391 = vmatpush2.msra.mxu0 0.0
    %392 = vmatprep.subr.mxu0 0.0
    %393 = vmatpush2.msra.mxu0 0.0
    %394 = vmatprep.subr.mxu0 0.0
    %395 = vmatpush2.msra.mxu0 0.0
    %396 = vmatprep.subr.mxu0 0.0
    %397 = vmatpush2.msra.mxu0 0.0
    %398 = vmatprep.subr.mxu0 0.0
    %399 = vmatpush2.msra.mxu0 0.0
    %400 = vmatprep.subr.mxu0 0.0
    %401 = vmatpush2.msra.mxu0 0.0
    %402 = vmatprep.subr.mxu0 0.0
    %403 = vmatpush2.msra.mxu0 0.0
    %404 = vmatprep.subr.mxu0 0.0
    %405 = vmatpush2.msra.mxu0 0.0
    %406 = vmatprep.subr.mxu0 0.0
    %407 = vmatpush2.msra.mxu0 0.0
    %408 = vmatprep.subr.mxu0 0.0
    %409 = vmatpush2.msra.mxu0 0.0
    %410 = vmatprep.subr.mxu0 0.0
    %411 = vmatpush2.msra.mxu0 0.0
    %412 = vmatprep.subr.mxu0 0.0
    %413 = vmatpush2.msra.mxu0 0.0
    %414 = vmatprep.subr.mxu0 0.0
    %415 = vmatpush2.msra.mxu0 0.0
    %416 = vmatprep.subr.mxu0 0.0
    %417 = vmatpush2.msra.mxu0 0.0
    %418 = vmatprep.mubr.f32.mxu0 0.0
    %419 = vmatmul.mubr.f32.gmra.mxu0 %v349
    %v420 = vpop.f32.mrf.mxu0
    %v421 = vadd.f32 %v340, %v420
    %v422 = vpop.f32.mrf.mxu0
    %423 = vmatprep.mubr.f32.mxu0 0.0
    %424 = vmatmul.mubr.f32.gmra.mxu0 %v352
    %v425 = vpop.f32.mrf.mxu0
    %v426 = vadd.f32 %v345, %v425
    %v427 = vpop.f32.mrf.mxu0
    %428 = vdwg.mxu0
    %v429 = vld [vmem:[%s9] sm:$0x1]
    %v431 = vlaneseq
    %v432 = vshrl.u32 %v431, 7
    %v433 = vsub.s32 0, %v432
    %v434 = vrot.slane %v429, %v433
    %v436 = vadd.f32 %v421, %v434
    %v437 = vadd.f32 %v426, %v434
    %vm438 = vcmp.ge.f32.partialorder %v436, 0.0
    %vm439 = vcmp.ge.f32.partialorder %v437, 0.0
    %v440 = vmul.f32 %v436, 0.33333334
    %v441 = vmul.f32 %v437, 0.33333334
    %v442 = vsel %vm438, %v436, %v440
    %v443 = vsel %vm439, %v437, %v441
    %v444 = vmax.f32 %v442, -3.0
    %v445 = vmax.f32 %v443, -3.0
    %v446 = vmin.f32 %v444, 3.0
    %v447 = vmin.f32 %v445, 3.0
    %v448 = vld [vmem:[%s10] sm:$0xff]
    %v449 = vld [vmem:[%s10 + $0x8] sm:$0xff]
    %v450 = vld [vmem:[%s10 + $0x10] sm:$0xff]
    %v451 = vld [vmem:[%s10 + $0x18] sm:$0xff]
    %v452 = vld [vmem:[%s11] sm:$0x1]
    %v454 = vlaneseq
    %v455 = vshrl.u32 %v454, 7
    %v456 = vsub.s32 0, %v455
    %v457 = vrot.slane %v452, %v456
    %v460 = vsel %vm74, %v446, 0
    %v463 = vsel %vm74, %v447, 0
    %465 = vmatprep.subr.mxu0 0.0
    %466 = vmatpush1.msra.mxu0 0.0
    %467 = vmatprep.subr.mxu0 0.0
    %468 = vmatpush1.msra.mxu0 0.0
    %469 = vmatprep.subr.mxu0 0.0
    %470 = vmatpush1.msra.mxu0 0.0
    %471 = vmatprep.subr.mxu0 0.0
    %472 = vmatpush1.msra.mxu0 0.0
    %473 = vmatprep.subr.mxu0 0.0
    %474 = vmatpush1.msra.mxu0 0.0
    %475 = vmatprep.subr.mxu0 0.0
    %476 = vmatpush1.msra.mxu0 0.0
    %477 = vmatprep.subr.mxu0 0.0
    %478 = vmatpush1.msra.mxu0 0.0
    %479 = vmatprep.subr.mxu0 0.0
    %480 = vmatpush1.msra.mxu0 0.0
    %481 = vmatprep.subr.mxu0 0.0
    %482 = vmatpush1.msra.mxu0 0.0
    %483 = vmatprep.subr.mxu0 0.0
    %484 = vmatpush1.msra.mxu0 0.0
    %485 = vmatprep.subr.mxu0 0.0
    %486 = vmatpush1.msra.mxu0 0.0
    %487 = vmatprep.subr.mxu0 0.0
    %488 = vmatpush1.msra.mxu0 0.0
    %489 = vmatprep.subr.mxu0 0.0
    %490 = vmatpush1.msra.mxu0 %v451
    %491 = vmatprep.subr.mxu0 0.0
    %492 = vmatpush1.msra.mxu0 %v450
    %493 = vmatprep.subr.mxu0 0.0
    %494 = vmatpush1.msra.mxu0 %v449
    %495 = vmatprep.subr.mxu0 0.0
    %496 = vmatpush1.msra.mxu0 %v448
    %497 = vmatprep.subr.mxu0 0.0
    %498 = vmatpush2.msra.mxu0 0.0
    %499 = vmatprep.subr.mxu0 0.0
    %500 = vmatpush2.msra.mxu0 0.0
    %501 = vmatprep.subr.mxu0 0.0
    %502 = vmatpush2.msra.mxu0 0.0
    %503 = vmatprep.subr.mxu0 0.0
    %504 = vmatpush2.msra.mxu0 0.0
    %505 = vmatprep.subr.mxu0 0.0
    %506 = vmatpush2.msra.mxu0 0.0
    %507 = vmatprep.subr.mxu0 0.0
    %508 = vmatpush2.msra.mxu0 0.0
    %509 = vmatprep.subr.mxu0 0.0
    %510 = vmatpush2.msra.mxu0 0.0
    %511 = vmatprep.subr.mxu0 0.0
    %512 = vmatpush2.msra.mxu0 0.0
    %513 = vmatprep.subr.mxu0 0.0
    %514 = vmatpush2.msra.mxu0 0.0
    %515 = vmatprep.subr.mxu0 0.0
    %516 = vmatpush2.msra.mxu0 0.0
    %517 = vmatprep.subr.mxu0 0.0
    %518 = vmatpush2.msra.mxu0 0.0
    %519 = vmatprep.subr.mxu0 0.0
    %520 = vmatpush2.msra.mxu0 0.0
    %521 = vmatprep.subr.mxu0 0.0
    %522 = vmatpush2.msra.mxu0 0.0
    %523 = vmatprep.subr.mxu0 0.0
    %524 = vmatpush2.msra.mxu0 0.0
    %525 = vmatprep.subr.mxu0 0.0
    %526 = vmatpush2.msra.mxu0 0.0
    %527 = vmatprep.subr.mxu0 0.0
    %528 = vmatpush2.msra.mxu0 0.0
    %529 = vmatprep.mubr.f32.mxu0 0.0
    %530 = vmatmul.mubr.f32.gmra.mxu0 %v460
    %v531 = vpop.f32.mrf.mxu0
    %v532 = vadd.f32 %v457, %v531
    %v533 = vpop.f32.mrf.mxu0
    %534 = vmatprep.mubr.f32.mxu0 0.0
    %535 = vmatmul.mubr.f32.gmra.mxu0 %v463
    %v536 = vpop.f32.mrf.mxu0
    %v537 = vadd.f32 %v457, %v536
    %v538 = vpop.f32.mrf.mxu0
    %539 = vdwg.mxu0
    %v540 = vmax.f32 %v532, -8.0
    %v541 = vmax.f32 %v537, -8.0
    %v542 = vmin.f32 %v540, 8.0
    %v543 = vmin.f32 %v541, 8.0
    %544 = vst.msk [vmem:[%s17] sm:$0xff] %vm262, %v542
    %545 = vst.msk [vmem:[%s17 + $0x8] sm:$0xff] %vm262, %v543
    %v546 = vld [vmem:[%s2] sm:$0xff]
    %v547 = vld [vmem:[%s2 + $0x8] sm:$0xff]
    %v548 = vmul.f32 %v542, 0.5
    %v549 = vmul.f32 %v543, 0.5
    %v550 = vmul.f32 %v548, 1.442695
    %v551 = vpow.pop %v550
    %v552 = vmul.f32 %v549, 1.442695
    %v553 = vpow.pop %v552
    %556 = vrot.lane.b32.xlu0 %v551, 120
    %v557 = vpop.permute.xlu0 %556
    %558 = vrot.lane.b32.xlu0 %v553, 120
    %v559 = vpop.permute.xlu0 %558
    %v562 = vmul.f32 %v546, %v557
    %v563 = vmul.f32 %v547, %v559
    %v564 = vadd.f32 %v562, %v542
    %v565 = vadd.f32 %v563, %v543
    %vm566 = vcmask 64512
    %567 = vst.msk [vmem:[#allocation3] sm:$0xff] %vm566, %v564
    %568 = vst.msk [vmem:[#allocation3 + $0x8] sm:$0xff] %vm566, %v565
    %v569 = vld [vmem:[%s12] sm:$0xff]
    %v570 = vld [vmem:[%s12 + $0x8] sm:$0xff]
    %v571 = vld [vmem:[%s12 + $0x10] sm:$0xff]
    %v572 = vld [vmem:[%s12 + $0x18] sm:$0xff]
    %v573 = vld [vmem:[%s13] sm:$0xff]
    %v575 = vsel %vm566, %v564, 0
    %v578 = vsel %vm566, %v565, 0
    %580 = vmatprep.subr.mxu0 0.0
    %581 = vmatpush1.msra.mxu0 0.0
    %582 = vmatprep.subr.mxu0 0.0
    %583 = vmatpush1.msra.mxu0 0.0
    %584 = vmatprep.subr.mxu0 0.0
    %585 = vmatpush1.msra.mxu0 0.0
    %586 = vmatprep.subr.mxu0 0.0
    %587 = vmatpush1.msra.mxu0 0.0
    %588 = vmatprep.subr.mxu0 0.0
    %589 = vmatpush1.msra.mxu0 0.0
    %590 = vmatprep.subr.mxu0 0.0
    %591 = vmatpush1.msra.mxu0 0.0
    %592 = vmatprep.subr.mxu0 0.0
    %593 = vmatpush1.msra.mxu0 0.0
    %594 = vmatprep.subr.mxu0 0.0
    %595 = vmatpush1.msra.mxu0 0.0
    %596 = vmatprep.subr.mxu0 0.0
    %597 = vmatpush1.msra.mxu0 0.0
    %598 = vmatprep.subr.mxu0 0.0
    %599 = vmatpush1.msra.mxu0 0.0
    %600 = vmatprep.subr.mxu0 0.0
    %601 = vmatpush1.msra.mxu0 0.0
    %602 = vmatprep.subr.mxu0 0.0
    %603 = vmatpush1.msra.mxu0 0.0
    %604 = vmatprep.subr.mxu0 0.0
    %605 = vmatpush1.msra.mxu0 0.0
    %606 = vmatprep.subr.mxu0 0.0
    %607 = vmatpush1.msra.mxu0 0.0
    %608 = vmatprep.subr.mxu0 0.0
    %609 = vmatpush1.msra.mxu0 0.0
    %610 = vmatprep.subr.mxu0 0.0
    %611 = vmatpush1.msra.mxu0 %v573
    %612 = vmatprep.subr.mxu0 0.0
    %613 = vmatpush2.msra.mxu0 0.0
    %614 = vmatprep.subr.mxu0 0.0
    %615 = vmatpush2.msra.mxu0 0.0
    %616 = vmatprep.subr.mxu0 0.0
    %617 = vmatpush2.msra.mxu0 0.0
    %618 = vmatprep.subr.mxu0 0.0
    %619 = vmatpush2.msra.mxu0 0.0
    %620 = vmatprep.subr.mxu0 0.0
    %621 = vmatpush2.msra.mxu0 0.0
    %622 = vmatprep.subr.mxu0 0.0
    %623 = vmatpush2.msra.mxu0 0.0
    %624 = vmatprep.subr.mxu0 0.0
    %625 = vmatpush2.msra.mxu0 0.0
    %626 = vmatprep.subr.mxu0 0.0
    %627 = vmatpush2.msra.mxu0 0.0
    %628 = vmatprep.subr.mxu0 0.0
    %629 = vmatpush2.msra.mxu0 0.0
    %630 = vmatprep.subr.mxu0 0.0
    %631 = vmatpush2.msra.mxu0 0.0
    %632 = vmatprep.subr.mxu0 0.0
    %633 = vmatpush2.msra.mxu0 0.0
    %634 = vmatprep.subr.mxu0 0.0
    %635 = vmatpush2.msra.mxu0 0.0
    %636 = vmatprep.subr.mxu0 0.0
    %637 = vmatpush2.msra.mxu0 0.0
    %638 = vmatprep.subr.mxu0 0.0
    %639 = vmatpush2.msra.mxu0 0.0
    %640 = vmatprep.subr.mxu0 0.0
    %641 = vmatpush2.msra.mxu0 0.0
    %642 = vmatprep.subr.mxu0 0.0
    %643 = vmatpush2.msra.mxu0 0.0
    %644 = vmatprep.mubr.f32.mxu0 0.0
    %645 = vmatmul.mubr.f32.gmra.mxu0 %v575
    %v646 = vpop.f32.mrf.mxu0
    %v647 = vadd.f32 0.0, %v646
    %v648 = vpop.f32.mrf.mxu0
    %649 = vmatprep.mubr.f32.mxu0 0.0
    %650 = vmatmul.mubr.f32.gmra.mxu0 %v578
    %v651 = vpop.f32.mrf.mxu0
    %v652 = vadd.f32 0.0, %v651
    %v653 = vpop.f32.mrf.mxu0
    %654 = vdwg.mxu0
    %655 = vmatprep.subr.mxu0 0.0
    %656 = vmatpush1.msra.mxu0 0.0
    %657 = vmatprep.subr.mxu0 0.0
    %658 = vmatpush1.msra.mxu0 0.0
    %659 = vmatprep.subr.mxu0 0.0
    %660 = vmatpush1.msra.mxu0 0.0
    %661 = vmatprep.subr.mxu0 0.0
    %662 = vmatpush1.msra.mxu0 0.0
    %663 = vmatprep.subr.mxu0 0.0
    %664 = vmatpush1.msra.mxu0 0.0
    %665 = vmatprep.subr.mxu0 0.0
    %666 = vmatpush1.msra.mxu0 0.0
    %667 = vmatprep.subr.mxu0 0.0
    %668 = vmatpush1.msra.mxu0 0.0
    %669 = vmatprep.subr.mxu0 0.0
    %670 = vmatpush1.msra.mxu0 0.0
    %671 = vmatprep.subr.mxu0 0.0
    %672 = vmatpush1.msra.mxu0 0.0
    %673 = vmatprep.subr.mxu0 0.0
    %674 = vmatpush1.msra.mxu0 0.0
    %675 = vmatprep.subr.mxu0 0.0
    %676 = vmatpush1.msra.mxu0 0.0
    %677 = vmatprep.subr.mxu0 0.0
    %678 = vmatpush1.msra.mxu0 0.0
    %679 = vmatprep.subr.mxu0 0.0
    %680 = vmatpush1.msra.mxu0 %v572
    %681 = vmatprep.subr.mxu0 0.0
    %682 = vmatpush1.msra.mxu0 %v571
    %683 = vmatprep.subr.mxu0 0.0
    %684 = vmatpush1.msra.mxu0 %v570
    %685 = vmatprep.subr.mxu0 0.0
    %686 = vmatpush1.msra.mxu0 %v569
    %687 = vmatprep.subr.mxu0 0.0
    %688 = vmatpush2.msra.mxu0 0.0
    %689 = vmatprep.subr.mxu0 0.0
    %690 = vmatpush2.msra.mxu0 0.0
    %691 = vmatprep.subr.mxu0 0.0
    %692 = vmatpush2.msra.mxu0 0.0
    %693 = vmatprep.subr.mxu0 0.0
    %694 = vmatpush2.msra.mxu0 0.0
    %695 = vmatprep.subr.mxu0 0.0
    %696 = vmatpush2.msra.mxu0 0.0
    %697 = vmatprep.subr.mxu0 0.0
    %698 = vmatpush2.msra.mxu0 0.0
    %699 = vmatprep.subr.mxu0 0.0
    %700 = vmatpush2.msra.mxu0 0.0
    %701 = vmatprep.subr.mxu0 0.0
    %702 = vmatpush2.msra.mxu0 0.0
    %703 = vmatprep.subr.mxu0 0.0
    %704 = vmatpush2.msra.mxu0 0.0
    %705 = vmatprep.subr.mxu0 0.0
    %706 = vmatpush2.msra.mxu0 0.0
    %707 = vmatprep.subr.mxu0 0.0
    %708 = vmatpush2.msra.mxu0 0.0
    %709 = vmatprep.subr.mxu0 0.0
    %710 = vmatpush2.msra.mxu0 0.0
    %711 = vmatprep.subr.mxu0 0.0
    %712 = vmatpush2.msra.mxu0 0.0
    %713 = vmatprep.subr.mxu0 0.0
    %714 = vmatpush2.msra.mxu0 0.0
    %715 = vmatprep.subr.mxu0 0.0
    %716 = vmatpush2.msra.mxu0 0.0
    %717 = vmatprep.subr.mxu0 0.0
    %718 = vmatpush2.msra.mxu0 0.0
    %719 = vmatprep.mubr.f32.mxu0 0.0
    %720 = vmatmul.mubr.f32.gmra.mxu0 %v76
    %v721 = vpop.f32.mrf.mxu0
    %v722 = vadd.f32 %v647, %v721
    %v723 = vpop.f32.mrf.mxu0
    %724 = vmatprep.mubr.f32.mxu0 0.0
    %725 = vmatmul.mubr.f32.gmra.mxu0 %v79
    %v726 = vpop.f32.mrf.mxu0
    %v727 = vadd.f32 %v652, %v726
    %v728 = vpop.f32.mrf.mxu0
    %729 = vdwg.mxu0
    %v730 = vld [vmem:[%s14] sm:$0x1]
    %v732 = vlaneseq
    %v733 = vshrl.u32 %v732, 7
    %v734 = vsub.s32 0, %v733
    %v735 = vrot.slane %v730, %v734
    %v737 = vadd.f32 %v722, %v735
    %v738 = vadd.f32 %v727, %v735
    %v739 = vld [vmem:[%s15] sm:$0xff]
    %v740 = vld [vmem:[%s15 + $0x8] sm:$0xff]
    %v741 = vld [vmem:[%s15 + $0x10] sm:$0xff]
    %v742 = vld [vmem:[%s15 + $0x18] sm:$0xff]
    %v744 = vsel %vm74, 0.0, 0
    %746 = vmatprep.subr.mxu0 0.0
    %747 = vmatpush1.msra.mxu0 0.0
    %748 = vmatprep.subr.mxu0 0.0
    %749 = vmatpush1.msra.mxu0 0.0
    %750 = vmatprep.subr.mxu0 0.0
    %751 = vmatpush1.msra.mxu0 0.0
    %752 = vmatprep.subr.mxu0 0.0
    %753 = vmatpush1.msra.mxu0 0.0
    %754 = vmatprep.subr.mxu0 0.0
    %755 = vmatpush1.msra.mxu0 0.0
    %756 = vmatprep.subr.mxu0 0.0
    %757 = vmatpush1.msra.mxu0 0.0
    %758 = vmatprep.subr.mxu0 0.0
    %759 = vmatpush1.msra.mxu0 0.0
    %760 = vmatprep.subr.mxu0 0.0
    %761 = vmatpush1.msra.mxu0 0.0
    %762 = vmatprep.subr.mxu0 0.0
    %763 = vmatpush1.msra.mxu0 0.0
    %764 = vmatprep.subr.mxu0 0.0
    %765 = vmatpush1.msra.mxu0 0.0
    %766 = vmatprep.subr.mxu0 0.0
    %767 = vmatpush1.msra.mxu0 0.0
    %768 = vmatprep.subr.mxu0 0.0
    %769 = vmatpush1.msra.mxu0 0.0
    %770 = vmatprep.subr.mxu0 0.0
    %771 = vmatpush1.msra.mxu0 %v742
    %772 = vmatprep.subr.mxu0 0.0
    %773 = vmatpush1.msra.mxu0 %v741
    %774 = vmatprep.subr.mxu0 0.0
    %775 = vmatpush1.msra.mxu0 %v740
    %776 = vmatprep.subr.mxu0 0.0
    %777 = vmatpush1.msra.mxu0 %v739
    %778 = vmatprep.subr.mxu0 0.0
    %779 = vmatpush2.msra.mxu0 0.0
    %780 = vmatprep.subr.mxu0 0.0
    %781 = vmatpush2.msra.mxu0 0.0
    %782 = vmatprep.subr.mxu0 0.0
    %783 = vmatpush2.msra.mxu0 0.0
    %784 = vmatprep.subr.mxu0 0.0
    %785 = vmatpush2.msra.mxu0 0.0
    %786 = vmatprep.subr.mxu0 0.0
    %787 = vmatpush2.msra.mxu0 0.0
    %788 = vmatprep.subr.mxu0 0.0
    %789 = vmatpush2.msra.mxu0 0.0
    %790 = vmatprep.subr.mxu0 0.0
    %791 = vmatpush2.msra.mxu0 0.0
    %792 = vmatprep.subr.mxu0 0.0
    %793 = vmatpush2.msra.mxu0 0.0
    %794 = vmatprep.subr.mxu0 0.0
    %795 = vmatpush2.msra.mxu0 0.0
    %796 = vmatprep.subr.mxu0 0.0
    %797 = vmatpush2.msra.mxu0 0.0
    %798 = vmatprep.subr.mxu0 0.0
    %799 = vmatpush2.msra.mxu0 0.0
    %800 = vmatprep.subr.mxu0 0.0
    %801 = vmatpush2.msra.mxu0 0.0
    %802 = vmatprep.subr.mxu0 0.0
    %803 = vmatpush2.msra.mxu0 0.0
    %804 = vmatprep.subr.mxu0 0.0
    %805 = vmatpush2.msra.mxu0 0.0
    %806 = vmatprep.subr.mxu0 0.0
    %807 = vmatpush2.msra.mxu0 0.0
    %808 = vmatprep.subr.mxu0 0.0
    %809 = vmatpush2.msra.mxu0 0.0
    %810 = vmatprep.mubr.f32.mxu0 0.0
    %811 = vmatmul.mubr.f32.gmra.mxu0 %v744
    %v812 = vpop.f32.mrf.mxu0
    %v813 = vadd.f32 0.0, %v812
    %v814 = vpop.f32.mrf.mxu0
    %815 = vdwg.mxu0
    %v816 = vadd.f32 %v737, %v813
    %v817 = vxor.u32 %v816, 2147483648
    %v818 = vmul.f32 %v817, 1.442695
    %v819 = vpow.pop %v818
    %v820 = vadd.f32 %v819, 1.0
    %v821 = vrcp.pop %v820
    %v822 = vmul.f32 1.0, %v821
    %v823 = vtanh.pop %v816
    %v824 = vmul.f32 %v822, 0.0
    %826 = vrot.lane.b32.xlu0 %v823, 64
    %v827 = vpop.permute.xlu0 %826
    %v829 = vmul.f32 %v822, %v827
    %831 = vrot.lane.b32.xlu0 %v829, 32
    %v832 = vpop.permute.xlu0 %831
    %v834 = vadd.f32 %v824, %v832
    %v835 = vtanh.pop %v834
    %837 = vrot.lane.b32.xlu0 %v835, 64
    %v838 = vpop.permute.xlu0 %837
    %v840 = vmul.f32 %v822, %v838
    %842 = vrot.lane.b32.xlu0 %v840, 32
    %v843 = vpop.permute.xlu0 %842
    %vm845 = vcmask 254976
    %846 = vst.msk [vmem:[#allocation2] sm:$0x3] %vm845, %v843
    %v847 = vsel %vm74, %v843, 0
    %849 = vmatprep.subr.mxu0 0.0
    %850 = vmatpush1.msra.mxu0 0.0
    %851 = vmatprep.subr.mxu0 0.0
    %852 = vmatpush1.msra.mxu0 0.0
    %853 = vmatprep.subr.mxu0 0.0
    %854 = vmatpush1.msra.mxu0 0.0
    %855 = vmatprep.subr.mxu0 0.0
    %856 = vmatpush1.msra.mxu0 0.0
    %857 = vmatprep.subr.mxu0 0.0
    %858 = vmatpush1.msra.mxu0 0.0
    %859 = vmatprep.subr.mxu0 0.0
    %860 = vmatpush1.msra.mxu0 0.0
    %861 = vmatprep.subr.mxu0 0.0
    %862 = vmatpush1.msra.mxu0 0.0
    %863 = vmatprep.subr.mxu0 0.0
    %864 = vmatpush1.msra.mxu0 0.0
    %865 = vmatprep.subr.mxu0 0.0
    %866 = vmatpush1.msra.mxu0 0.0
    %867 = vmatprep.subr.mxu0 0.0
    %868 = vmatpush1.msra.mxu0 0.0
    %869 = vmatprep.subr.mxu0 0.0
    %870 = vmatpush1.msra.mxu0 0.0
    %871 = vmatprep.subr.mxu0 0.0
    %872 = vmatpush1.msra.mxu0 0.0
    %873 = vmatprep.subr.mxu0 0.0
    %874 = vmatpush1.msra.mxu0 %v742
    %875 = vmatprep.subr.mxu0 0.0
    %876 = vmatpush1.msra.mxu0 %v741
    %877 = vmatprep.subr.mxu0 0.0
    %878 = vmatpush1.msra.mxu0 %v740
    %879 = vmatprep.subr.mxu0 0.0
    %880 = vmatpush1.msra.mxu0 %v739
    %881 = vmatprep.subr.mxu0 0.0
    %882 = vmatpush2.msra.mxu0 0.0
    %883 = vmatprep.subr.mxu0 0.0
    %884 = vmatpush2.msra.mxu0 0.0
    %885 = vmatprep.subr.mxu0 0.0
    %886 = vmatpush2.msra.mxu0 0.0
    %887 = vmatprep.subr.mxu0 0.0
    %888 = vmatpush2.msra.mxu0 0.0
    %889 = vmatprep.subr.mxu0 0.0
    %890 = vmatpush2.msra.mxu0 0.0
    %891 = vmatprep.subr.mxu0 0.0
    %892 = vmatpush2.msra.mxu0 0.0
    %893 = vmatprep.subr.mxu0 0.0
    %894 = vmatpush2.msra.mxu0 0.0
    %895 = vmatprep.subr.mxu0 0.0
    %896 = vmatpush2.msra.mxu0 0.0
    %897 = vmatprep.subr.mxu0 0.0
    %898 = vmatpush2.msra.mxu0 0.0
    %899 = vmatprep.subr.mxu0 0.0
    %900 = vmatpush2.msra.mxu0 0.0
    %901 = vmatprep.subr.mxu0 0.0
    %902 = vmatpush2.msra.mxu0 0.0
    %903 = vmatprep.subr.mxu0 0.0
    %904 = vmatpush2.msra.mxu0 0.0
    %905 = vmatprep.subr.mxu0 0.0
    %906 = vmatpush2.msra.mxu0 0.0
    %907 = vmatprep.subr.mxu0 0.0
    %908 = vmatpush2.msra.mxu0 0.0
    %909 = vmatprep.subr.mxu0 0.0
    %910 = vmatpush2.msra.mxu0 0.0
    %911 = vmatprep.subr.mxu0 0.0
    %912 = vmatpush2.msra.mxu0 0.0
    %913 = vmatprep.mubr.f32.mxu0 0.0
    %914 = vmatmul.mubr.f32.gmra.mxu0 %v847
    %v915 = vpop.f32.mrf.mxu0
    %v916 = vadd.f32 0.0, %v915
    %v917 = vpop.f32.mrf.mxu0
    %918 = vdwg.mxu0
    %v920 = vrot.slane %v916, 6
    %v922 = vadd.f32 %v737, %v920
    %v923 = vxor.u32 %v922, 2147483648
    %v924 = vmul.f32 %v923, 1.442695
    %v925 = vpow.pop %v924
    %v926 = vadd.f32 %v925, 1.0
    %v927 = vrcp.pop %v926
    %v928 = vmul.f32 1.0, %v927
    %v929 = vtanh.pop %v922
    %v931 = vrot.slane %v834, 6
    %v933 = vmul.f32 %v928, %v931
    %935 = vrot.lane.b32.xlu0 %v929, 64
    %v936 = vpop.permute.xlu0 %935
    %v938 = vmul.f32 %v928, %v936
    %940 = vrot.lane.b32.xlu0 %v938, 32
    %v941 = vpop.permute.xlu0 %940
    %v943 = vadd.f32 %v933, %v941
    %v944 = vtanh.pop %v943
    %946 = vrot.lane.b32.xlu0 %v944, 64
    %v947 = vpop.permute.xlu0 %946
    %v949 = vmul.f32 %v928, %v947
    %951 = vrot.lane.b32.xlu0 %v949, 32
    %v952 = vpop.permute.xlu0 %951
    %vm954 = vcmask 257026
    %955 = vst.msk [vmem:[#allocation2] sm:$0xc] %vm954, %v952
    %v956 = vrot.slane %v949, 2
    %957 = vrot.lane.b32.xlu0 %v956, 32
    %v958 = vpop.permute.xlu0 %957
    %v959 = vsel %vm74, %v958, 0
    %961 = vmatprep.subr.mxu0 0.0
    %962 = vmatpush1.msra.mxu0 0.0
    %963 = vmatprep.subr.mxu0 0.0
    %964 = vmatpush1.msra.mxu0 0.0
    %965 = vmatprep.subr.mxu0 0.0
    %966 = vmatpush1.msra.mxu0 0.0
    %967 = vmatprep.subr.mxu0 0.0
    %968 = vmatpush1.msra.mxu0 0.0
    %969 = vmatprep.subr.mxu0 0.0
    %970 = vmatpush1.msra.mxu0 0.0
    %971 = vmatprep.subr.mxu0 0.0
    %972 = vmatpush1.msra.mxu0 0.0
    %973 = vmatprep.subr.mxu0 0.0
    %974 = vmatpush1.msra.mxu0 0.0
    %975 = vmatprep.subr.mxu0 0.0
    %976 = vmatpush1.msra.mxu0 0.0
    %977 = vmatprep.subr.mxu0 0.0
    %978 = vmatpush1.msra.mxu0 0.0
    %979 = vmatprep.subr.mxu0 0.0
    %980 = vmatpush1.msra.mxu0 0.0
    %981 = vmatprep.subr.mxu0 0.0
    %982 = vmatpush1.msra.mxu0 0.0
    %983 = vmatprep.subr.mxu0 0.0
    %984 = vmatpush1.msra.mxu0 0.0
    %985 = vmatprep.subr.mxu0 0.0
    %986 = vmatpush1.msra.mxu0 %v742
    %987 = vmatprep.subr.mxu0 0.0
    %988 = vmatpush1.msra.mxu0 %v741
    %989 = vmatprep.subr.mxu0 0.0
    %990 = vmatpush1.msra.mxu0 %v740
    %991 = vmatprep.subr.mxu0 0.0
    %992 = vmatpush1.msra.mxu0 %v739
    %993 = vmatprep.subr.mxu0 0.0
    %994 = vmatpush2.msra.mxu0 0.0
    %995 = vmatprep.subr.mxu0 0.0
    %996 = vmatpush2.msra.mxu0 0.0
    %997 = vmatprep.subr.mxu0 0.0
    %998 = vmatpush2.msra.mxu0 0.0
    %999 = vmatprep.subr.mxu0 0.0
    %1000 = vmatpush2.msra.mxu0 0.0
    %1001 = vmatprep.subr.mxu0 0.0
    %1002 = vmatpush2.msra.mxu0 0.0
    %1003 = vmatprep.subr.mxu0 0.0
    %1004 = vmatpush2.msra.mxu0 0.0
    %1005 = vmatprep.subr.mxu0 0.0
    %1006 = vmatpush2.msra.mxu0 0.0
    %1007 = vmatprep.subr.mxu0 0.0
    %1008 = vmatpush2.msra.mxu0 0.0
    %1009 = vmatprep.subr.mxu0 0.0
    %1010 = vmatpush2.msra.mxu0 0.0
    %1011 = vmatprep.subr.mxu0 0.0
    %1012 = vmatpush2.msra.mxu0 0.0
    %1013 = vmatprep.subr.mxu0 0.0
    %1014 = vmatpush2.msra.mxu0 0.0
    %1015 = vmatprep.subr.mxu0 0.0
    %1016 = vmatpush2.msra.mxu0 0.0
    %1017 = vmatprep.subr.mxu0 0.0
    %1018 = vmatpush2.msra.mxu0 0.0
    %1019 = vmatprep.subr.mxu0 0.0
    %1020 = vmatpush2.msra.mxu0 0.0
    %1021 = vmatprep.subr.mxu0 0.0
    %1022 = vmatpush2.msra.mxu0 0.0
    %1023 = vmatprep.subr.mxu0 0.0
    %1024 = vmatpush2.msra.mxu0 0.0
    %1025 = vmatprep.mubr.f32.mxu0 0.0
    %1026 = vmatmul.mubr.f32.gmra.mxu0 %v959
    %v1027 = vpop.f32.mrf.mxu0
    %v1028 = vadd.f32 0.0, %v1027
    %v1029 = vpop.f32.mrf.mxu0
    %1030 = vdwg.mxu0
    %v1032 = vrot.slane %v1028, 4
    %v1034 = vadd.f32 %v737, %v1032
    %v1035 = vxor.u32 %v1034, 2147483648
    %v1036 = vmul.f32 %v1035, 1.442695
    %v1037 = vpow.pop %v1036
    %v1038 = vadd.f32 %v1037, 1.0
    %v1039 = vrcp.pop %v1038
    %v1040 = vmul.f32 1.0, %v1039
    %v1041 = vtanh.pop %v1034
    %v1043 = vrot.slane %v943, 6
    %v1045 = vmul.f32 %v1040, %v1043
    %1047 = vrot.lane.b32.xlu0 %v1041, 64
    %v1048 = vpop.permute.xlu0 %1047
    %v1050 = vmul.f32 %v1040, %v1048
    %1052 = vrot.lane.b32.xlu0 %v1050, 32
    %v1053 = vpop.permute.xlu0 %1052
    %v1055 = vadd.f32 %v1045, %v1053
    %v1056 = vtanh.pop %v1055
    %1058 = vrot.lane.b32.xlu0 %v1056, 64
    %v1059 = vpop.permute.xlu0 %1058
    %v1061 = vmul.f32 %v1040, %v1059
    %1063 = vrot.lane.b32.xlu0 %v1061, 32
    %v1064 = vpop.permute.xlu0 %1063
    %vm1066 = vcmask 259076
    %1067 = vst.msk [vmem:[#allocation2] sm:$0x30] %vm1066, %v1064
    %v1068 = vrot.slane %v1061, 4
    %1069 = vrot.lane.b32.xlu0 %v1068, 32
    %v1070 = vpop.permute.xlu0 %1069
    %v1071 = vsel %vm74, %v1070, 0
    %1073 = vmatprep.subr.mxu0 0.0
    %1074 = vmatpush1.msra.mxu0 0.0
    %1075 = vmatprep.subr.mxu0 0.0
    %1076 = vmatpush1.msra.mxu0 0.0
    %1077 = vmatprep.subr.mxu0 0.0
    %1078 = vmatpush1.msra.mxu0 0.0
    %1079 = vmatprep.subr.mxu0 0.0
    %1080 = vmatpush1.msra.mxu0 0.0
    %1081 = vmatprep.subr.mxu0 0.0
    %1082 = vmatpush1.msra.mxu0 0.0
    %1083 = vmatprep.subr.mxu0 0.0
    %1084 = vmatpush1.msra.mxu0 0.0
    %1085 = vmatprep.subr.mxu0 0.0
    %1086 = vmatpush1.msra.mxu0 0.0
    %1087 = vmatprep.subr.mxu0 0.0
    %1088 = vmatpush1.msra.mxu0 0.0
    %1089 = vmatprep.subr.mxu0 0.0
    %1090 = vmatpush1.msra.mxu0 0.0
    %1091 = vmatprep.subr.mxu0 0.0
    %1092 = vmatpush1.msra.mxu0 0.0
    %1093 = vmatprep.subr.mxu0 0.0
    %1094 = vmatpush1.msra.mxu0 0.0
    %1095 = vmatprep.subr.mxu0 0.0
    %1096 = vmatpush1.msra.mxu0 0.0
    %1097 = vmatprep.subr.mxu0 0.0
    %1098 = vmatpush1.msra.mxu0 %v742
    %1099 = vmatprep.subr.mxu0 0.0
    %1100 = vmatpush1.msra.mxu0 %v741
    %1101 = vmatprep.subr.mxu0 0.0
    %1102 = vmatpush1.msra.mxu0 %v740
    %1103 = vmatprep.subr.mxu0 0.0
    %1104 = vmatpush1.msra.mxu0 %v739
    %1105 = vmatprep.subr.mxu0 0.0
    %1106 = vmatpush2.msra.mxu0 0.0
    %1107 = vmatprep.subr.mxu0 0.0
    %1108 = vmatpush2.msra.mxu0 0.0
    %1109 = vmatprep.subr.mxu0 0.0
    %1110 = vmatpush2.msra.mxu0 0.0
    %1111 = vmatprep.subr.mxu0 0.0
    %1112 = vmatpush2.msra.mxu0 0.0
    %1113 = vmatprep.subr.mxu0 0.0
    %1114 = vmatpush2.msra.mxu0 0.0
    %1115 = vmatprep.subr.mxu0 0.0
    %1116 = vmatpush2.msra.mxu0 0.0
    %1117 = vmatprep.subr.mxu0 0.0
    %1118 = vmatpush2.msra.mxu0 0.0
    %1119 = vmatprep.subr.mxu0 0.0
    %1120 = vmatpush2.msra.mxu0 0.0
    %1121 = vmatprep.subr.mxu0 0.0
    %1122 = vmatpush2.msra.mxu0 0.0
    %1123 = vmatprep.subr.mxu0 0.0
    %1124 = vmatpush2.msra.mxu0 0.0
    %1125 = vmatprep.subr.mxu0 0.0
    %1126 = vmatpush2.msra.mxu0 0.0
    %1127 = vmatprep.subr.mxu0 0.0
    %1128 = vmatpush2.msra.mxu0 0.0
    %1129 = vmatprep.subr.mxu0 0.0
    %1130 = vmatpush2.msra.mxu0 0.0
    %1131 = vmatprep.subr.mxu0 0.0
    %1132 = vmatpush2.msra.mxu0 0.0
    %1133 = vmatprep.subr.mxu0 0.0
    %1134 = vmatpush2.msra.mxu0 0.0
    %1135 = vmatprep.subr.mxu0 0.0
    %1136 = vmatpush2.msra.mxu0 0.0
    %1137 = vmatprep.mubr.f32.mxu0 0.0
    %1138 = vmatmul.mubr.f32.gmra.mxu0 %v1071
    %v1139 = vpop.f32.mrf.mxu0
    %v1140 = vadd.f32 0.0, %v1139
    %v1141 = vpop.f32.mrf.mxu0
    %1142 = vdwg.mxu0
    %v1144 = vrot.slane %v1140, 2
    %v1146 = vadd.f32 %v737, %v1144
    %v1147 = vxor.u32 %v1146, 2147483648
    %v1148 = vmul.f32 %v1147, 1.442695
    %v1149 = vpow.pop %v1148
    %v1150 = vadd.f32 %v1149, 1.0
    %v1151 = vrcp.pop %v1150
    %v1152 = vmul.f32 1.0, %v1151
    %v1153 = vtanh.pop %v1146
    %v1155 = vrot.slane %v1055, 6
    %v1157 = vmul.f32 %v1152, %v1155
    %1159 = vrot.lane.b32.xlu0 %v1153, 64
    %v1160 = vpop.permute.xlu0 %1159
    %v1162 = vmul.f32 %v1152, %v1160
    %1164 = vrot.lane.b32.xlu0 %v1162, 32
    %v1165 = vpop.permute.xlu0 %1164
    %v1167 = vadd.f32 %v1157, %v1165
    %v1168 = vtanh.pop %v1167
    %1170 = vrot.lane.b32.xlu0 %v1168, 64
    %v1171 = vpop.permute.xlu0 %1170
    %v1173 = vmul.f32 %v1152, %v1171
    %1175 = vrot.lane.b32.xlu0 %v1173, 32
    %v1176 = vpop.permute.xlu0 %1175
    %vm1178 = vcmask 261126
    %1179 = vst.msk [vmem:[#allocation2] sm:$0xc0] %vm1178, %v1176
    %v1180 = vrot.slane %v1173, 6
    %1181 = vrot.lane.b32.xlu0 %v1180, 32
    %v1182 = vpop.permute.xlu0 %1181
    %v1183 = vsel %vm74, %v1182, 0
    %1185 = vmatprep.subr.mxu0 0.0
    %1186 = vmatpush1.msra.mxu0 0.0
    %1187 = vmatprep.subr.mxu0 0.0
    %1188 = vmatpush1.msra.mxu0 0.0
    %1189 = vmatprep.subr.mxu0 0.0
    %1190 = vmatpush1.msra.mxu0 0.0
    %1191 = vmatprep.subr.mxu0 0.0
    %1192 = vmatpush1.msra.mxu0 0.0
    %1193 = vmatprep.subr.mxu0 0.0
    %1194 = vmatpush1.msra.mxu0 0.0
    %1195 = vmatprep.subr.mxu0 0.0
    %1196 = vmatpush1.msra.mxu0 0.0
    %1197 = vmatprep.subr.mxu0 0.0
    %1198 = vmatpush1.msra.mxu0 0.0
    %1199 = vmatprep.subr.mxu0 0.0
    %1200 = vmatpush1.msra.mxu0 0.0
    %1201 = vmatprep.subr.mxu0 0.0
    %1202 = vmatpush1.msra.mxu0 0.0
    %1203 = vmatprep.subr.mxu0 0.0
    %1204 = vmatpush1.msra.mxu0 0.0
    %1205 = vmatprep.subr.mxu0 0.0
    %1206 = vmatpush1.msra.mxu0 0.0
    %1207 = vmatprep.subr.mxu0 0.0
    %1208 = vmatpush1.msra.mxu0 0.0
    %1209 = vmatprep.subr.mxu0 0.0
    %1210 = vmatpush1.msra.mxu0 %v742
    %1211 = vmatprep.subr.mxu0 0.0
    %1212 = vmatpush1.msra.mxu0 %v741
    %1213 = vmatprep.subr.mxu0 0.0
    %1214 = vmatpush1.msra.mxu0 %v740
    %1215 = vmatprep.subr.mxu0 0.0
    %1216 = vmatpush1.msra.mxu0 %v739
    %1217 = vmatprep.subr.mxu0 0.0
    %1218 = vmatpush2.msra.mxu0 0.0
    %1219 = vmatprep.subr.mxu0 0.0
    %1220 = vmatpush2.msra.mxu0 0.0
    %1221 = vmatprep.subr.mxu0 0.0
    %1222 = vmatpush2.msra.mxu0 0.0
    %1223 = vmatprep.subr.mxu0 0.0
    %1224 = vmatpush2.msra.mxu0 0.0
    %1225 = vmatprep.subr.mxu0 0.0
    %1226 = vmatpush2.msra.mxu0 0.0
    %1227 = vmatprep.subr.mxu0 0.0
    %1228 = vmatpush2.msra.mxu0 0.0
    %1229 = vmatprep.subr.mxu0 0.0
    %1230 = vmatpush2.msra.mxu0 0.0
    %1231 = vmatprep.subr.mxu0 0.0
    %1232 = vmatpush2.msra.mxu0 0.0
    %1233 = vmatprep.subr.mxu0 0.0
    %1234 = vmatpush2.msra.mxu0 0.0
    %1235 = vmatprep.subr.mxu0 0.0
    %1236 = vmatpush2.msra.mxu0 0.0
    %1237 = vmatprep.subr.mxu0 0.0
    %1238 = vmatpush2.msra.mxu0 0.0
    %1239 = vmatprep.subr.mxu0 0.0
    %1240 = vmatpush2.msra.mxu0 0.0
    %1241 = vmatprep.subr.mxu0 0.0
    %1242 = vmatpush2.msra.mxu0 0.0
    %1243 = vmatprep.subr.mxu0 0.0
    %1244 = vmatpush2.msra.mxu0 0.0
    %1245 = vmatprep.subr.mxu0 0.0
    %1246 = vmatpush2.msra.mxu0 0.0
    %1247 = vmatprep.subr.mxu0 0.0
    %1248 = vmatpush2.msra.mxu0 0.0
    %1249 = vmatprep.mubr.f32.mxu0 0.0
    %1250 = vmatmul.mubr.f32.gmra.mxu0 %v1183
    %v1251 = vpop.f32.mrf.mxu0
    %v1252 = vadd.f32 0.0, %v1251
    %v1253 = vpop.f32.mrf.mxu0
    %1254 = vdwg.mxu0
    %v1255 = vadd.f32 %v738, %v1252
    %v1256 = vxor.u32 %v1255, 2147483648
    %v1257 = vmul.f32 %v1256, 1.442695
    %v1258 = vpow.pop %v1257
    %v1259 = vadd.f32 %v1258, 1.0
    %v1260 = vrcp.pop %v1259
    %v1261 = vmul.f32 1.0, %v1260
    %v1262 = vtanh.pop %v1255
    %v1264 = vrot.slane %v1167, 6
    %v1266 = vmul.f32 %v1261, %v1264
    %1268 = vrot.lane.b32.xlu0 %v1262, 64
    %v1269 = vpop.permute.xlu0 %1268
    %v1271 = vmul.f32 %v1261, %v1269
    %1273 = vrot.lane.b32.xlu0 %v1271, 32
    %v1274 = vpop.permute.xlu0 %1273
    %v1276 = vadd.f32 %v1266, %v1274
    %v1277 = vtanh.pop %v1276
    %1279 = vrot.lane.b32.xlu0 %v1277, 64
    %v1280 = vpop.permute.xlu0 %1279
    %v1282 = vmul.f32 %v1261, %v1280
    %1284 = vrot.lane.b32.xlu0 %v1282, 32
    %v1285 = vpop.permute.xlu0 %1284
    %1287 = vst.msk [vmem:[#allocation2 + $0x8] sm:$0x3] %vm845, %v1285
    %v1288 = vsel %vm74, %v1285, 0
    %1290 = vmatprep.subr.mxu0 0.0
    %1291 = vmatpush1.msra.mxu0 0.0
    %1292 = vmatprep.subr.mxu0 0.0
    %1293 = vmatpush1.msra.mxu0 0.0
    %1294 = vmatprep.subr.mxu0 0.0
    %1295 = vmatpush1.msra.mxu0 0.0
    %1296 = vmatprep.subr.mxu0 0.0
    %1297 = vmatpush1.msra.mxu0 0.0
    %1298 = vmatprep.subr.mxu0 0.0
    %1299 = vmatpush1.msra.mxu0 0.0
    %1300 = vmatprep.subr.mxu0 0.0
    %1301 = vmatpush1.msra.mxu0 0.0
    %1302 = vmatprep.subr.mxu0 0.0
    %1303 = vmatpush1.msra.mxu0 0.0
    %1304 = vmatprep.subr.mxu0 0.0
    %1305 = vmatpush1.msra.mxu0 0.0
    %1306 = vmatprep.subr.mxu0 0.0
    %1307 = vmatpush1.msra.mxu0 0.0
    %1308 = vmatprep.subr.mxu0 0.0
    %1309 = vmatpush1.msra.mxu0 0.0
    %1310 = vmatprep.subr.mxu0 0.0
    %1311 = vmatpush1.msra.mxu0 0.0
    %1312 = vmatprep.subr.mxu0 0.0
    %1313 = vmatpush1.msra.mxu0 0.0
    %1314 = vmatprep.subr.mxu0 0.0
    %1315 = vmatpush1.msra.mxu0 %v742
    %1316 = vmatprep.subr.mxu0 0.0
    %1317 = vmatpush1.msra.mxu0 %v741
    %1318 = vmatprep.subr.mxu0 0.0
    %1319 = vmatpush1.msra.mxu0 %v740
    %1320 = vmatprep.subr.mxu0 0.0
    %1321 = vmatpush1.msra.mxu0 %v739
    %1322 = vmatprep.subr.mxu0 0.0
    %1323 = vmatpush2.msra.mxu0 0.0
    %1324 = vmatprep.subr.mxu0 0.0
    %1325 = vmatpush2.msra.mxu0 0.0
    %1326 = vmatprep.subr.mxu0 0.0
    %1327 = vmatpush2.msra.mxu0 0.0
    %1328 = vmatprep.subr.mxu0 0.0
    %1329 = vmatpush2.msra.mxu0 0.0
    %1330 = vmatprep.subr.mxu0 0.0
    %1331 = vmatpush2.msra.mxu0 0.0
    %1332 = vmatprep.subr.mxu0 0.0
    %1333 = vmatpush2.msra.mxu0 0.0
    %1334 = vmatprep.subr.mxu0 0.0
    %1335 = vmatpush2.msra.mxu0 0.0
    %1336 = vmatprep.subr.mxu0 0.0
    %1337 = vmatpush2.msra.mxu0 0.0
    %1338 = vmatprep.subr.mxu0 0.0
    %1339 = vmatpush2.msra.mxu0 0.0
    %1340 = vmatprep.subr.mxu0 0.0
    %1341 = vmatpush2.msra.mxu0 0.0
    %1342 = vmatprep.subr.mxu0 0.0
    %1343 = vmatpush2.msra.mxu0 0.0
    %1344 = vmatprep.subr.mxu0 0.0
    %1345 = vmatpush2.msra.mxu0 0.0
    %1346 = vmatprep.subr.mxu0 0.0
    %1347 = vmatpush2.msra.mxu0 0.0
    %1348 = vmatprep.subr.mxu0 0.0
    %1349 = vmatpush2.msra.mxu0 0.0
    %1350 = vmatprep.subr.mxu0 0.0
    %1351 = vmatpush2.msra.mxu0 0.0
    %1352 = vmatprep.subr.mxu0 0.0
    %1353 = vmatpush2.msra.mxu0 0.0
    %1354 = vmatprep.mubr.f32.mxu0 0.0
    %1355 = vmatmul.mubr.f32.gmra.mxu0 %v1288
    %v1356 = vpop.f32.mrf.mxu0
    %v1357 = vadd.f32 0.0, %v1356
    %v1358 = vpop.f32.mrf.mxu0
    %1359 = vdwg.mxu0
    %v1361 = vrot.slane %v1357, 6
    %v1363 = vadd.f32 %v738, %v1361
    %v1364 = vxor.u32 %v1363, 2147483648
    %v1365 = vmul.f32 %v1364, 1.442695
    %v1366 = vpow.pop %v1365
    %v1367 = vadd.f32 %v1366, 1.0
    %v1368 = vrcp.pop %v1367
    %v1369 = vmul.f32 1.0, %v1368
    %v1370 = vtanh.pop %v1363
    %v1372 = vrot.slane %v1276, 6
    %v1374 = vmul.f32 %v1369, %v1372
    %1376 = vrot.lane.b32.xlu0 %v1370, 64
    %v1377 = vpop.permute.xlu0 %1376
    %v1379 = vmul.f32 %v1369, %v1377
    %1381 = vrot.lane.b32.xlu0 %v1379, 32
    %v1382 = vpop.permute.xlu0 %1381
    %v1384 = vadd.f32 %v1374, %v1382
    %v1385 = vtanh.pop %v1384
    %1387 = vrot.lane.b32.xlu0 %v1385, 64
    %v1388 = vpop.permute.xlu0 %1387
    %v1390 = vmul.f32 %v1369, %v1388
    %1392 = vrot.lane.b32.xlu0 %v1390, 32
    %v1393 = vpop.permute.xlu0 %1392
    %1395 = vst.msk [vmem:[#allocation2 + $0x8] sm:$0xc] %vm954, %v1393
    %v1396 = vrot.slane %v1390, 2
    %1397 = vrot.lane.b32.xlu0 %v1396, 32
    %v1398 = vpop.permute.xlu0 %1397
    %v1399 = vsel %vm74, %v1398, 0
    %1401 = vmatprep.subr.mxu0 0.0
    %1402 = vmatpush1.msra.mxu0 0.0
    %1403 = vmatprep.subr.mxu0 0.0
    %1404 = vmatpush1.msra.mxu0 0.0
    %1405 = vmatprep.subr.mxu0 0.0
    %1406 = vmatpush1.msra.mxu0 0.0
    %1407 = vmatprep.subr.mxu0 0.0
    %1408 = vmatpush1.msra.mxu0 0.0
    %1409 = vmatprep.subr.mxu0 0.0
    %1410 = vmatpush1.msra.mxu0 0.0
    %1411 = vmatprep.subr.mxu0 0.0
    %1412 = vmatpush1.msra.mxu0 0.0
    %1413 = vmatprep.subr.mxu0 0.0
    %1414 = vmatpush1.msra.mxu0 0.0
    %1415 = vmatprep.subr.mxu0 0.0
    %1416 = vmatpush1.msra.mxu0 0.0
    %1417 = vmatprep.subr.mxu0 0.0
    %1418 = vmatpush1.msra.mxu0 0.0
    %1419 = vmatprep.subr.mxu0 0.0
    %1420 = vmatpush1.msra.mxu0 0.0
    %1421 = vmatprep.subr.mxu0 0.0
    %1422 = vmatpush1.msra.mxu0 0.0
    %1423 = vmatprep.subr.mxu0 0.0
    %1424 = vmatpush1.msra.mxu0 0.0
    %1425 = vmatprep.subr.mxu0 0.0
    %1426 = vmatpush1.msra.mxu0 %v742
    %1427 = vmatprep.subr.mxu0 0.0
    %1428 = vmatpush1.msra.mxu0 %v741
    %1429 = vmatprep.subr.mxu0 0.0
    %1430 = vmatpush1.msra.mxu0 %v740
    %1431 = vmatprep.subr.mxu0 0.0
    %1432 = vmatpush1.msra.mxu0 %v739
    %1433 = vmatprep.subr.mxu0 0.0
    %1434 = vmatpush2.msra.mxu0 0.0
    %1435 = vmatprep.subr.mxu0 0.0
    %1436 = vmatpush2.msra.mxu0 0.0
    %1437 = vmatprep.subr.mxu0 0.0
    %1438 = vmatpush2.msra.mxu0 0.0
    %1439 = vmatprep.subr.mxu0 0.0
    %1440 = vmatpush2.msra.mxu0 0.0
    %1441 = vmatprep.subr.mxu0 0.0
    %1442 = vmatpush2.msra.mxu0 0.0
    %1443 = vmatprep.subr.mxu0 0.0
    %1444 = vmatpush2.msra.mxu0 0.0
    %1445 = vmatprep.subr.mxu0 0.0
    %1446 = vmatpush2.msra.mxu0 0.0
    %1447 = vmatprep.subr.mxu0 0.0
    %1448 = vmatpush2.msra.mxu0 0.0
    %1449 = vmatprep.subr.mxu0 0.0
    %1450 = vmatpush2.msra.mxu0 0.0
    %1451 = vmatprep.subr.mxu0 0.0
    %1452 = vmatpush2.msra.mxu0 0.0
    %1453 = vmatprep.subr.mxu0 0.0
    %1454 = vmatpush2.msra.mxu0 0.0
    %1455 = vmatprep.subr.mxu0 0.0
    %1456 = vmatpush2.msra.mxu0 0.0
    %1457 = vmatprep.subr.mxu0 0.0
    %1458 = vmatpush2.msra.mxu0 0.0
    %1459 = vmatprep.subr.mxu0 0.0
    %1460 = vmatpush2.msra.mxu0 0.0
    %1461 = vmatprep.subr.mxu0 0.0
    %1462 = vmatpush2.msra.mxu0 0.0
    %1463 = vmatprep.subr.mxu0 0.0
    %1464 = vmatpush2.msra.mxu0 0.0
    %1465 = vmatprep.mubr.f32.mxu0 0.0
    %1466 = vmatmul.mubr.f32.gmra.mxu0 %v1399
    %v1467 = vpop.f32.mrf.mxu0
    %v1468 = vadd.f32 0.0, %v1467
    %v1469 = vpop.f32.mrf.mxu0
    %1470 = vdwg.mxu0
    %v1472 = vrot.slane %v1468, 4
    %v1474 = vadd.f32 %v738, %v1472
    %v1475 = vxor.u32 %v1474, 2147483648
    %v1476 = vmul.f32 %v1475, 1.442695
    %v1477 = vpow.pop %v1476
    %v1478 = vadd.f32 %v1477, 1.0
    %v1479 = vrcp.pop %v1478
    %v1480 = vmul.f32 1.0, %v1479
    %v1481 = vtanh.pop %v1474
    %v1483 = vrot.slane %v1384, 6
    %v1485 = vmul.f32 %v1480, %v1483
    %1487 = vrot.lane.b32.xlu0 %v1481, 64
    %v1488 = vpop.permute.xlu0 %1487
    %v1490 = vmul.f32 %v1480, %v1488
    %1492 = vrot.lane.b32.xlu0 %v1490, 32
    %v1493 = vpop.permute.xlu0 %1492
    %v1495 = vadd.f32 %v1485, %v1493
    %v1496 = vtanh.pop %v1495
    %1498 = vrot.lane.b32.xlu0 %v1496, 64
    %v1499 = vpop.permute.xlu0 %1498
    %v1501 = vmul.f32 %v1480, %v1499
    %1503 = vrot.lane.b32.xlu0 %v1501, 32
    %v1504 = vpop.permute.xlu0 %1503
    %1506 = vst.msk [vmem:[#allocation2 + $0x8] sm:$0x30] %vm1066, %v1504
    %v1507 = vrot.slane %v1501, 4
    %1508 = vrot.lane.b32.xlu0 %v1507, 32
    %v1509 = vpop.permute.xlu0 %1508
    %v1510 = vsel %vm74, %v1509, 0
    %1512 = vmatprep.subr.mxu0 0.0
    %1513 = vmatpush1.msra.mxu0 0.0
    %1514 = vmatprep.subr.mxu0 0.0
    %1515 = vmatpush1.msra.mxu0 0.0
    %1516 = vmatprep.subr.mxu0 0.0
    %1517 = vmatpush1.msra.mxu0 0.0
    %1518 = vmatprep.subr.mxu0 0.0
    %1519 = vmatpush1.msra.mxu0 0.0
    %1520 = vmatprep.subr.mxu0 0.0
    %1521 = vmatpush1.msra.mxu0 0.0
    %1522 = vmatprep.subr.mxu0 0.0
    %1523 = vmatpush1.msra.mxu0 0.0
    %1524 = vmatprep.subr.mxu0 0.0
    %1525 = vmatpush1.msra.mxu0 0.0
    %1526 = vmatprep.subr.mxu0 0.0
    %1527 = vmatpush1.msra.mxu0 0.0
    %1528 = vmatprep.subr.mxu0 0.0
    %1529 = vmatpush1.msra.mxu0 0.0
    %1530 = vmatprep.subr.mxu0 0.0
    %1531 = vmatpush1.msra.mxu0 0.0
    %1532 = vmatprep.subr.mxu0 0.0
    %1533 = vmatpush1.msra.mxu0 0.0
    %1534 = vmatprep.subr.mxu0 0.0
    %1535 = vmatpush1.msra.mxu0 0.0
    %1536 = vmatprep.subr.mxu0 0.0
    %1537 = vmatpush1.msra.mxu0 %v742
    %1538 = vmatprep.subr.mxu0 0.0
    %1539 = vmatpush1.msra.mxu0 %v741
    %1540 = vmatprep.subr.mxu0 0.0
    %1541 = vmatpush1.msra.mxu0 %v740
    %1542 = vmatprep.subr.mxu0 0.0
    %1543 = vmatpush1.msra.mxu0 %v739
    %1544 = vmatprep.subr.mxu0 0.0
    %1545 = vmatpush2.msra.mxu0 0.0
    %1546 = vmatprep.subr.mxu0 0.0
    %1547 = vmatpush2.msra.mxu0 0.0
    %1548 = vmatprep.subr.mxu0 0.0
    %1549 = vmatpush2.msra.mxu0 0.0
    %1550 = vmatprep.subr.mxu0 0.0
    %1551 = vmatpush2.msra.mxu0 0.0
    %1552 = vmatprep.subr.mxu0 0.0
    %1553 = vmatpush2.msra.mxu0 0.0
    %1554 = vmatprep.subr.mxu0 0.0
    %1555 = vmatpush2.msra.mxu0 0.0
    %1556 = vmatprep.subr.mxu0 0.0
    %1557 = vmatpush2.msra.mxu0 0.0
    %1558 = vmatprep.subr.mxu0 0.0
    %1559 = vmatpush2.msra.mxu0 0.0
    %1560 = vmatprep.subr.mxu0 0.0
    %1561 = vmatpush2.msra.mxu0 0.0
    %1562 = vmatprep.subr.mxu0 0.0
    %1563 = vmatpush2.msra.mxu0 0.0
    %1564 = vmatprep.subr.mxu0 0.0
    %1565 = vmatpush2.msra.mxu0 0.0
    %1566 = vmatprep.subr.mxu0 0.0
    %1567 = vmatpush2.msra.mxu0 0.0
    %1568 = vmatprep.subr.mxu0 0.0
    %1569 = vmatpush2.msra.mxu0 0.0
    %1570 = vmatprep.subr.mxu0 0.0
    %1571 = vmatpush2.msra.mxu0 0.0
    %1572 = vmatprep.subr.mxu0 0.0
    %1573 = vmatpush2.msra.mxu0 0.0
    %1574 = vmatprep.subr.mxu0 0.0
    %1575 = vmatpush2.msra.mxu0 0.0
    %1576 = vmatprep.mubr.f32.mxu0 0.0
    %1577 = vmatmul.mubr.f32.gmra.mxu0 %v1510
    %v1578 = vpop.f32.mrf.mxu0
    %v1579 = vadd.f32 0.0, %v1578
    %v1580 = vpop.f32.mrf.mxu0
    %1581 = vdwg.mxu0
    %v1583 = vrot.slane %v1579, 2
    %v1585 = vadd.f32 %v738, %v1583
    %v1586 = vxor.u32 %v1585, 2147483648
    %v1587 = vmul.f32 %v1586, 1.442695
    %v1588 = vpow.pop %v1587
    %v1589 = vadd.f32 %v1588, 1.0
    %v1590 = vrcp.pop %v1589
    %v1591 = vmul.f32 1.0, %v1590
    %v1592 = vtanh.pop %v1585
    %v1594 = vrot.slane %v1495, 6
    %v1596 = vmul.f32 %v1591, %v1594
    %1598 = vrot.lane.b32.xlu0 %v1592, 64
    %v1599 = vpop.permute.xlu0 %1598
    %v1601 = vmul.f32 %v1591, %v1599
    %1603 = vrot.lane.b32.xlu0 %v1601, 32
    %v1604 = vpop.permute.xlu0 %1603
    %v1606 = vadd.f32 %v1596, %v1604
    %v1607 = vtanh.pop %v1606
    %1609 = vrot.lane.b32.xlu0 %v1607, 64
    %v1610 = vpop.permute.xlu0 %1609
    %v1612 = vmul.f32 %v1591, %v1610
    %1614 = vrot.lane.b32.xlu0 %v1612, 32
    %v1615 = vpop.permute.xlu0 %1614
    %1617 = vst.msk [vmem:[#allocation2 + $0x8] sm:$0xc0] %vm1178, %v1615
    %v1618 = vld [vmem:[#allocation2] sm:$0xff]
    %v1619 = vld [vmem:[#allocation2 + $0x8] sm:$0xff]
    %1620 = vst.msk [vmem:[#allocation5] sm:$0xff] %vm74, %v1618
    %1621 = vst.msk [vmem:[#allocation5 + $0x8] sm:$0xff] %vm74, %v1619
    // Predicated region
    $region66: #{srnn_forward.3} parent=1 // pred_check
      _
    $region67: #{srnn_forward.3} parent=1 // pred_check_branch
      %1623 = sbr.rel (0) target = $region69
    $region68: #{srnn_forward.3} parent=1 // pred_region
      _
    $region69: #{srnn_forward.3} parent=1 // pred_fallthru
      _
    // Predicated region
    $region70: #{srnn_forward.3} parent=1 // pred_check
      _
    $region71: #{srnn_forward.3} parent=1 // pred_check_branch
      %1625 = sbr.rel (0) target = $region73
    $region72: #{srnn_forward.3} parent=1 // pred_region
      _
    $region73: #{srnn_forward.3} parent=1 // pred_fallthru
      _
    // Predicated region
    $region74: #{srnn_forward.3} parent=1 // pred_check
      _
    $region75: #{srnn_forward.3} parent=1 // pred_check_branch
      %1627 = sbr.rel (0) target = $region77
    $region76: #{srnn_forward.3} parent=1 // pred_region
      %s1629 = ssub.s32 256, 256
      %1630 = vsyncadd [#allocation4], %s1629
      %s1631 = sshll.u32 [#allocation3], 4
      %s1632 = int_to_ptr.vmem [resolvable:$true] %s1631
      %1637 = dma.vmem_to_hbm [thread:$0]  %s1632, 256, %s18, [#allocation4], 128, 128, 8
    $region77: #{srnn_forward.3} parent=1 // pred_fallthru
      _
    // Predicated region
    $region78: #{srnn_forward.3} parent=1 // pred_check
      _
    $region79: #{srnn_forward.3} parent=1 // pred_check_branch
      %1639 = sbr.rel (0) target = $region81
    $region80: #{srnn_forward.3} parent=1 // pred_region
      %s1641 = ssub.s32 256, 256
      %1642 = vsyncadd [#allocation6], %s1641
      %s1643 = sshll.u32 [#allocation5], 4
      %s1644 = int_to_ptr.vmem [resolvable:$true] %s1643
      %1649 = dma.vmem_to_hbm [thread:$0]  %s1644, 256, %s19, [#allocation6], 128, 128, 8
    $region81: #{srnn_forward.3} parent=1 // pred_fallthru
      _
    // Predicated region
    $region82: #{srnn_forward.3} parent=1 // pred_check
      _
    $region83: #{srnn_forward.3} parent=1 // pred_check_branch
      %1651 = sbr.rel (0) target = $region85
    $region84: #{srnn_forward.3} parent=1 // pred_region
      _
    $region85: #{srnn_forward.3} parent=1 // pred_fallthru
      _
    // Predicated region
    $region86: #{srnn_forward.3} parent=1 // pred_check
      _
    $region87: #{srnn_forward.3} parent=1 // pred_check_branch
      %1653 = sbr.rel (0) target = $region89
    $region88: #{srnn_forward.3} parent=1 // pred_region
      _
    $region89: #{srnn_forward.3} parent=1 // pred_fallthru
      _
    // Predicated region
    $region90: #{srnn_forward.3} parent=1 // pred_check
      _
    $region91: #{srnn_forward.3} parent=1 // pred_check_branch
      %1655 = sbr.rel (0) target = $region93
    $region92: #{srnn_forward.3} parent=1 // pred_region
      %1656 = dma.done [#allocation4], 256
    $region93: #{srnn_forward.3} parent=1 // pred_fallthru
      _
    // Predicated region
    $region94: #{srnn_forward.3} parent=1 // pred_check
      _
    $region95: #{srnn_forward.3} parent=1 // pred_check_branch
      %1658 = sbr.rel (0) target = $region97
    $region96: #{srnn_forward.3} parent=1 // pred_region
      %1659 = dma.done [#allocation6], 256
    $region97: #{srnn_forward.3} parent=1 // pred_fallthru
      _
    %1660 = vsyncpa [#allocation4], 1
    %1661 = vsyncpa [#allocation6], 1

// kernel: srnn_forward.2
$region0: #{srnn_forward.2}
  #allocation0 [shape = 'u32[]', space=smem, size = 0x4, offset = 0x4, fixed_abs, tag = 'smem constant byte address 0x4 - core index']
  #allocation1 [shape = 'u32[144,128]{1,0:T(1,128)}', space=vmem, size = 0x12000, scoped, tag = 'internal scratch']
  #allocation2 [shape = 'f32[16,32]{1,0:T(8,128)}', space=vmem, size = 0x2000, scoped, tag = 'scratch operand']
  %s0 = inlined_call_operand.vmem [shape: f32[2,16,16], index: 0, kind: input, shape index: {}]
  %s1 = inlined_call_operand.hbm [shape: f32[16,16], index: 1, kind: input, shape index: {}]
  %s2 = inlined_call_operand.hbm [shape: f32[1,16], index: 2, kind: input, shape index: {}]
  %s3 = inlined_call_operand.hbm [shape: f32[2,16,128], index: 3, kind: input, shape index: {}]
  %s4 = inlined_call_operand.vmem [shape: f32[2,32,128], index: 4, kind: input, shape index: {}]
  %s5 = inlined_call_operand.vmem [shape: f32[2,1,128], index: 5, kind: input, shape index: {}]
  %s6 = inlined_call_operand.vmem [shape: f32[2,32,128], index: 6, kind: input, shape index: {}]
  %s7 = inlined_call_operand.hbm [shape: f32[2,32,128], index: 7, kind: input, shape index: {}]
  %s8 = inlined_call_operand.vmem [shape: f32[2,1,128], index: 8, kind: input, shape index: {}]
  %s9 = inlined_call_operand.vmem [shape: f32[2,16,32], index: 9, kind: output, shape index: {}]
  %s10 = sld [smem:[#allocation0]]
  $region85: #{srnn_forward.2} parent=0
    _
  %s12 = ssub.s32 1, %s10
  %s13 = scalar_select 0, %s12, %s10
  $region1: #{srnn_forward.2} parent=0
    #allocation3 [shape = 'u8[8192]{0}', space=vmem, size = 0x2000, scoped, tag = 'input window, operand 1, single buffered']
    #allocation4 [shape = 's32[2]{0}', space=sflag, size = 0x8, scoped, tag = 'scoped memory for srnn_forward.2']
    #allocation5 [shape = 'u8[512]{0}', space=vmem, size = 0x400, scoped, tag = 'input window, operand 2, single buffered']
    #allocation6 [shape = 's32[1]{0}', space=sflag, size = 0x4, scoped, tag = 'scoped memory for srnn_forward.2']
    #allocation7 [shape = 'u8[16384]{0}', space=vmem, size = 0x4000, scoped, tag = 'input window, operand 3']
    #allocation8 [shape = 'u8[32768]{0}', space=vmem, size = 0x8000, scoped, tag = 'input window, operand 7']
    %14 = vsyncpa [#allocation4], 0
    %15 = vsyncpa [#allocation6], 0
    loop: start=0, step=1, limit=4
    $region2: #{srnn_forward.2} parent=1 // loop_pre_header
      _
    $region3: #{srnn_forward.2} parent=1 // loop_header
      %s17 = sphi 0, %s21
      %p18 = scmp.ge.s32.totalorder %s17, 4
      %s27 = sphi 0, %s29
      %s30 = sphi 0, %s27
      %s31 = sphi 0, %s30
      %s47 = sphi 0, %s31
      %s51 = sphi 0, %s51
      %s53 = sphi 0, %s51
      %s54 = sphi 0, %s53
      %s68 = sphi 0, %s54
      %s72 = sphi 0, %s72
      %s74 = sphi 0, %s72
      %s75 = sphi 0, %s74
      %s89 = sphi 0, %s75
      %s95 = sphi 0, %s97
      %s98 = sphi 0, %s95
      %s99 = sphi 0, %s98
      %s115 = sphi 0, %s99
      %s121 = sphi 0, %s123
      %s124 = sphi 0, %s121
      %s125 = sphi 0, %s124
      %s141 = sphi 0, %s125
      %s147 = sphi 0, %s149
      %s150 = sphi 0, %s147
      %s151 = sphi 0, %s150
      %s167 = sphi 0, %s151
      %s173 = sphi 0, %s175
      %s176 = sphi 0, %s173
      %s177 = sphi 0, %s176
      %s193 = sphi 0, %s177
      %s199 = sphi 0, %s201
      %s202 = sphi 0, %s199
      %s203 = sphi 0, %s202
      %s219 = sphi 0, %s203
      %s225 = sphi 0, %s227
      %s228 = sphi 0, %s225
      %s229 = sphi 0, %s228
      %s245 = sphi 0, %s229
      %s251 = sphi 0, %s253
      %s254 = sphi 0, %s251
      %s255 = sphi 0, %s254
      %s271 = sphi 0, %s255
    $region4: #{srnn_forward.2} parent=1 // loop_header_branch
      %20 = sbr.rel (%p18) target = $region8
    $region5: #{srnn_forward.2} parent=1 // loop_body
      %s22 = ssub.s32 %s17, 1
      %s23 = ssub.s32 %s17, 2
      %s24 = sadd.s32 %s17, 1
      %s25 = ssub.s32 %s17, %s24
      %p26 = scmp.eq.s32.totalorder %s25, 0
      %s28 = sadd.s32 %s27, 1
      %s29 = scalar_select %p26, %s27, %s28
      %p32 = pneg %p26
      %p33 = scmp.eq.s32.totalorder %s17, 1
      %p34 = por %p32, %p33
      %p35 = scmp.ne.s32.totalorder %s27, %s30
      %p36 = scmp.eq.s32.totalorder %s17, 0
      %p37 = por %p35, %p36
      %p38 = scmp.ne.s32.totalorder %s27, %s30
      %p39 = scmp.eq.s32.totalorder %s22, 1
      %p40 = por %p38, %p39
      %p41 = scmp.ne.s32.totalorder %s30, %s31
      %p42 = scmp.eq.s32.totalorder %s22, 0
      %p43 = por %p41, %p42
      %p44 = scmp.ne.s32.totalorder %s30, %s31
      %p45 = scmp.eq.s32.totalorder %s23, 1
      %p46 = por %p44, %p45
      %p48 = scmp.ne.s32.totalorder %s31, %s47
      %p49 = scmp.eq.s32.totalorder %s23, 0
      %p50 = por %p48, %p49
      %s52 = sadd.s32 %s51, 1
      %p55 = scmp.eq.s32.totalorder %s17, 1
      %p56 = scmp.ne.s32.totalorder %s51, %s53
      %p57 = scmp.eq.s32.totalorder %s17, 0
      %p58 = por %p56, %p57
      %p59 = scmp.ne.s32.totalorder %s51, %s53
      %p60 = scmp.eq.s32.totalorder %s22, 1
      %p61 = por %p59, %p60
      %p62 = scmp.ne.s32.totalorder %s53, %s54
      %p63 = scmp.eq.s32.totalorder %s22, 0
      %p64 = por %p62, %p63
      %p65 = scmp.ne.s32.totalorder %s53, %s54
      %p66 = scmp.eq.s32.totalorder %s23, 1
      %p67 = por %p65, %p66
      %p69 = scmp.ne.s32.totalorder %s54, %s68
      %p70 = scmp.eq.s32.totalorder %s23, 0
      %p71 = por %p69, %p70
      %s73 = sadd.s32 %s72, 1
      %p76 = scmp.eq.s32.totalorder %s17, 1
      %p77 = scmp.ne.s32.totalorder %s72, %s74
      %p78 = scmp.eq.s32.totalorder %s17, 0
      %p79 = por %p77, %p78
      %p80 = scmp.ne.s32.totalorder %s72, %s74
      %p81 = scmp.eq.s32.totalorder %s22, 1
      %p82 = por %p80, %p81
      %p83 = scmp.ne.s32.totalorder %s74, %s75
      %p84 = scmp.eq.s32.totalorder %s22, 0
      %p85 = por %p83, %p84
      %p86 = scmp.ne.s32.totalorder %s74, %s75
      %p87 = scmp.eq.s32.totalorder %s23, 1
      %p88 = por %p86, %p87
      %p90 = scmp.ne.s32.totalorder %s75, %s89
      %p91 = scmp.eq.s32.totalorder %s23, 0
      %p92 = por %p90, %p91
      %s93 = ssub.s32 %s17, %s24
      %p94 = scmp.eq.s32.totalorder %s93, 0
      %s96 = sadd.s32 %s95, 1
      %s97 = scalar_select %p94, %s95, %s96
      %p100 = pneg %p94
      %p101 = scmp.eq.s32.totalorder %s17, 1
      %p102 = por %p100, %p101
      %p103 = scmp.ne.s32.totalorder %s95, %s98
      %p104 = scmp.eq.s32.totalorder %s17, 0
      %p105 = por %p103, %p104
      %p106 = scmp.ne.s32.totalorder %s95, %s98
      %p107 = scmp.eq.s32.totalorder %s22, 1
      %p108 = por %p106, %p107
      %p109 = scmp.ne.s32.totalorder %s98, %s99
      %p110 = scmp.eq.s32.totalorder %s22, 0
      %p111 = por %p109, %p110
      %p112 = scmp.ne.s32.totalorder %s98, %s99
      %p113 = scmp.eq.s32.totalorder %s23, 1
      %p114 = por %p112, %p113
      %p116 = scmp.ne.s32.totalorder %s99, %s115
      %p117 = scmp.eq.s32.totalorder %s23, 0
      %p118 = por %p116, %p117
      %s119 = ssub.s32 %s17, %s24
      %p120 = scmp.eq.s32.totalorder %s119, 0
      %s122 = sadd.s32 %s121, 1
      %s123 = scalar_select %p120, %s121, %s122
      %p126 = pneg %p120
      %p127 = scmp.eq.s32.totalorder %s17, 1
      %p128 = por %p126, %p127
      %p129 = scmp.ne.s32.totalorder %s121, %s124
      %p130 = scmp.eq.s32.totalorder %s17, 0
      %p131 = por %p129, %p130
      %p132 = scmp.ne.s32.totalorder %s121, %s124
      %p133 = scmp.eq.s32.totalorder %s22, 1
      %p134 = por %p132, %p133
      %p135 = scmp.ne.s32.totalorder %s124, %s125
      %p136 = scmp.eq.s32.totalorder %s22, 0
      %p137 = por %p135, %p136
      %p138 = scmp.ne.s32.totalorder %s124, %s125
      %p139 = scmp.eq.s32.totalorder %s23, 1
      %p140 = por %p138, %p139
      %p142 = scmp.ne.s32.totalorder %s125, %s141
      %p143 = scmp.eq.s32.totalorder %s23, 0
      %p144 = por %p142, %p143
      %s145 = ssub.s32 %s17, %s24
      %p146 = scmp.eq.s32.totalorder %s145, 0
      %s148 = sadd.s32 %s147, 1
      %s149 = scalar_select %p146, %s147, %s148
      %p152 = pneg %p146
      %p153 = scmp.eq.s32.totalorder %s17, 1
      %p154 = por %p152, %p153
      %p155 = scmp.ne.s32.totalorder %s147, %s150
      %p156 = scmp.eq.s32.totalorder %s17, 0
      %p157 = por %p155, %p156
      %p158 = scmp.ne.s32.totalorder %s147, %s150
      %p159 = scmp.eq.s32.totalorder %s22, 1
      %p160 = por %p158, %p159
      %p161 = scmp.ne.s32.totalorder %s150, %s151
      %p162 = scmp.eq.s32.totalorder %s22, 0
      %p163 = por %p161, %p162
      %p164 = scmp.ne.s32.totalorder %s150, %s151
      %p165 = scmp.eq.s32.totalorder %s23, 1
      %p166 = por %p164, %p165
      %p168 = scmp.ne.s32.totalorder %s151, %s167
      %p169 = scmp.eq.s32.totalorder %s23, 0
      %p170 = por %p168, %p169
      %s171 = ssub.s32 %s17, %s24
      %p172 = scmp.eq.s32.totalorder %s171, 0
      %s174 = sadd.s32 %s173, 1
      %s175 = scalar_select %p172, %s173, %s174
      %p178 = pneg %p172
      %p179 = scmp.eq.s32.totalorder %s17, 1
      %p180 = por %p178, %p179
      %p181 = scmp.ne.s32.totalorder %s173, %s176
      %p182 = scmp.eq.s32.totalorder %s17, 0
      %p183 = por %p181, %p182
      %p184 = scmp.ne.s32.totalorder %s173, %s176
      %p185 = scmp.eq.s32.totalorder %s22, 1
      %p186 = por %p184, %p185
      %p187 = scmp.ne.s32.totalorder %s176, %s177
      %p188 = scmp.eq.s32.totalorder %s22, 0
      %p189 = por %p187, %p188
      %p190 = scmp.ne.s32.totalorder %s176, %s177
      %p191 = scmp.eq.s32.totalorder %s23, 1
      %p192 = por %p190, %p191
      %p194 = scmp.ne.s32.totalorder %s177, %s193
      %p195 = scmp.eq.s32.totalorder %s23, 0
      %p196 = por %p194, %p195
      %s197 = ssub.s32 %s17, %s24
      %p198 = scmp.eq.s32.totalorder %s197, 0
      %s200 = sadd.s32 %s199, 1
      %s201 = scalar_select %p198, %s199, %s200
      %p204 = pneg %p198
      %p205 = scmp.eq.s32.totalorder %s17, 1
      %p206 = por %p204, %p205
      %p207 = scmp.ne.s32.totalorder %s199, %s202
      %p208 = scmp.eq.s32.totalorder %s17, 0
      %p209 = por %p207, %p208
      %p210 = scmp.ne.s32.totalorder %s199, %s202
      %p211 = scmp.eq.s32.totalorder %s22, 1
      %p212 = por %p210, %p211
      %p213 = scmp.ne.s32.totalorder %s202, %s203
      %p214 = scmp.eq.s32.totalorder %s22, 0
      %p215 = por %p213, %p214
      %p216 = scmp.ne.s32.totalorder %s202, %s203
      %p217 = scmp.eq.s32.totalorder %s23, 1
      %p218 = por %p216, %p217
      %p220 = scmp.ne.s32.totalorder %s203, %s219
      %p221 = scmp.eq.s32.totalorder %s23, 0
      %p222 = por %p220, %p221
      %s223 = ssub.s32 %s17, %s24
      %p224 = scmp.eq.s32.totalorder %s223, 0
      %s226 = sadd.s32 %s225, 1
      %s227 = scalar_select %p224, %s225, %s226
      %p230 = pneg %p224
      %p231 = scmp.eq.s32.totalorder %s17, 1
      %p232 = por %p230, %p231
      %p233 = scmp.ne.s32.totalorder %s225, %s228
      %p234 = scmp.eq.s32.totalorder %s17, 0
      %p235 = por %p233, %p234
      %p236 = scmp.ne.s32.totalorder %s225, %s228
      %p237 = scmp.eq.s32.totalorder %s22, 1
      %p238 = por %p236, %p237
      %p239 = scmp.ne.s32.totalorder %s228, %s229
      %p240 = scmp.eq.s32.totalorder %s22, 0
      %p241 = por %p239, %p240
      %p242 = scmp.ne.s32.totalorder %s228, %s229
      %p243 = scmp.eq.s32.totalorder %s23, 1
      %p244 = por %p242, %p243
      %p246 = scmp.ne.s32.totalorder %s229, %s245
      %p247 = scmp.eq.s32.totalorder %s23, 0
      %p248 = por %p246, %p247
      %s249 = ssub.s32 %s17, %s24
      %p250 = scmp.eq.s32.totalorder %s249, 0
      %s252 = sadd.s32 %s251, 1
      %s253 = scalar_select %p250, %s251, %s252
      %p256 = pneg %p250
      %p257 = scmp.eq.s32.totalorder %s17, 1
      %p258 = por %p256, %p257
      %p259 = scmp.ne.s32.totalorder %s251, %s254
      %p260 = scmp.eq.s32.totalorder %s17, 0
      %p261 = por %p259, %p260
      %p262 = scmp.ne.s32.totalorder %s251, %s254
      %p263 = scmp.eq.s32.totalorder %s22, 1
      %p264 = por %p262, %p263
      %p265 = scmp.ne.s32.totalorder %s254, %s255
      %p266 = scmp.eq.s32.totalorder %s22, 0
      %p267 = por %p265, %p266
      %p268 = scmp.ne.s32.totalorder %s254, %s255
      %p269 = scmp.eq.s32.totalorder %s23, 1
      %p270 = por %p268, %p269
      %p272 = scmp.ne.s32.totalorder %s255, %s271
      %p273 = scmp.eq.s32.totalorder %s23, 0
      %p274 = por %p272, %p273
      %p275 = scmp.le.s32.totalorder 1, %s17
      %p276 = scmp.lt.s32.totalorder %s17, 3
      %p277 = pnand %p275, %p276
      %p278 = pneg %p277
      // Predicated region
      $region9: #{srnn_forward.2} parent=5 // pred_check
        _
      $region10: #{srnn_forward.2} parent=5 // pred_check_branch
        %280 = sbr.rel (%p277) target = $region12
      $region11: #{srnn_forward.2} parent=5 // pred_region
        %s281 = ssub.s32 %s17, 1
        // Predicated region
        $region13: #{srnn_forward.2} parent=11 // pred_check
          %p282 = pneg %p64
        $region14: #{srnn_forward.2} parent=11 // pred_check_branch
          %284 = sbr.rel (%p282) target = $region16
        $region15: #{srnn_forward.2} parent=11 // pred_region
          %s286 = ssub.s32 256, 256
          %287 = vsyncadd [#allocation4], %s286
          %s288 = sshll.u32 [#allocation3], 4
          %s289 = int_to_ptr.vmem [resolvable:$true] %s288
          %294 = dma.hbm_to_vmem [thread:$0]  %s1, 256, %s289, [#allocation4], 128, 128, 8
        $region16: #{srnn_forward.2} parent=11 // pred_fallthru
          _
        // Predicated region
        $region17: #{srnn_forward.2} parent=11 // pred_check
          %p295 = pneg %p85
        $region18: #{srnn_forward.2} parent=11 // pred_check_branch
          %297 = sbr.rel (%p295) target = $region20
        $region19: #{srnn_forward.2} parent=11 // pred_region
          %s299 = ssub.s32 16, 16
          %300 = vsyncadd [#allocation6], %s299
          %s302 = sshll.u32 [#allocation5], 4
          %s303 = int_to_ptr.vmem [resolvable:$true] %s302
          %305 = dma.hbm_to_vmem [thread:$0]  %s2, 16, %s303, [#allocation6]
        $region20: #{srnn_forward.2} parent=11 // pred_fallthru
          _
      $region12: #{srnn_forward.2} parent=5 // pred_fallthru
        _
      %p306 = scmp.lt.s32.totalorder %s17, 2
      // Predicated region
      $region21: #{srnn_forward.2} parent=5 // pred_check
        %p307 = pneg %p306
      $region22: #{srnn_forward.2} parent=5 // pred_check_branch
        %309 = sbr.rel (%p307) target = $region24
      $region23: #{srnn_forward.2} parent=5 // pred_region
        // Predicated region
        $region25: #{srnn_forward.2} parent=23 // pred_check
          %p310 = pneg %p37
        $region26: #{srnn_forward.2} parent=23 // pred_check_branch
          %312 = sbr.rel (%p310) target = $region28
        $region27: #{srnn_forward.2} parent=23 // pred_region
          %p313 = scmp.lt.s32.totalorder %s17, 1
          %s314 = scalar_select %p313, %s17, 1
          %s315 = smul.addr %s314, 2
          %s316 = smul.addr %s315, 8
          %s317 = scalar_lea.vmem %s0, %s316
        $region28: #{srnn_forward.2} parent=23 // pred_fallthru
          _
        // Predicated region
        $region29: #{srnn_forward.2} parent=23 // pred_check
          %p318 = pneg %p105
        $region30: #{srnn_forward.2} parent=23 // pred_check_branch
          %320 = sbr.rel (%p318) target = $region32
        $region31: #{srnn_forward.2} parent=23 // pred_region
          %s321 = sand.u32 %s17, 1
          %s322 = scalar_lea.sflag [#allocation4], %s321
          %s323 = sand.u32 %s95, 1
          %s324 = smul.addr %s323, 16
          %s325 = scalar_lea.vmem [#allocation7], %s324
          %s327 = ssub.s32 256, 256
          %328 = vsyncadd %s322, %s327
          %s329 = smul.addr %s17, 2
          %s330 = smul.addr %s329, 128
          %s331 = scalar_lea.hbm %s3, %s330
          %s332 = sshll.u32 %s325, 4
          %s333 = int_to_ptr.vmem [resolvable:$true] %s332
          %338 = dma.hbm_to_vmem [thread:$0]  %s331, 256, %s333, %s322, 128, 128, 8
        $region32: #{srnn_forward.2} parent=23 // pred_fallthru
          _
        // Predicated region
        $region33: #{srnn_forward.2} parent=23 // pred_check
          %p339 = pneg %p131
        $region34: #{srnn_forward.2} parent=23 // pred_check_branch
          %341 = sbr.rel (%p339) target = $region36
        $region35: #{srnn_forward.2} parent=23 // pred_region
          %p342 = scmp.lt.s32.totalorder %s17, 1
          %s343 = scalar_select %p342, %s17, 1
          %s344 = smul.addr %s343, 4
          %s345 = smul.addr %s344, 8
          %s346 = scalar_lea.vmem %s4, %s345
        $region36: #{srnn_forward.2} parent=23 // pred_fallthru
          _
        // Predicated region
        $region37: #{srnn_forward.2} parent=23 // pred_check
          %p347 = pneg %p157
        $region38: #{srnn_forward.2} parent=23 // pred_check_branch
          %349 = sbr.rel (%p347) target = $region40
        $region39: #{srnn_forward.2} parent=23 // pred_region
          %p350 = scmp.lt.s32.totalorder %s17, 1
          %s351 = scalar_select %p350, %s17, 1
          %s352 = scalar_lea.vmem %s5, %s351
        $region40: #{srnn_forward.2} parent=23 // pred_fallthru
          _
        // Predicated region
        $region41: #{srnn_forward.2} parent=23 // pred_check
          %p353 = pneg %p183
        $region42: #{srnn_forward.2} parent=23 // pred_check_branch
          %355 = sbr.rel (%p353) target = $region44
        $region43: #{srnn_forward.2} parent=23 // pred_region
          %p356 = scmp.lt.s32.totalorder %s17, 1
          %s357 = scalar_select %p356, %s17, 1
          %s358 = smul.addr %s357, 4
          %s359 = smul.addr %s358, 8
          %s360 = scalar_lea.vmem %s6, %s359
        $region44: #{srnn_forward.2} parent=23 // pred_fallthru
          _
        // Predicated region
        $region45: #{srnn_forward.2} parent=23 // pred_check
          %p361 = pneg %p209
        $region46: #{srnn_forward.2} parent=23 // pred_check_branch
          %363 = sbr.rel (%p361) target = $region48
        $region47: #{srnn_forward.2} parent=23 // pred_region
          %s364 = sand.u32 %s17, 1
          %s365 = scalar_lea.sflag [#allocation4], %s364
          %s366 = sand.u32 %s199, 1
          %s367 = smul.addr %s366, 32
          %s368 = scalar_lea.vmem [#allocation8], %s367
          %s370 = ssub.s32 512, 512
          %371 = vsyncadd %s365, %s370
          %s372 = smul.addr %s17, 4
          %s373 = smul.addr %s372, 128
          %s374 = scalar_lea.hbm %s7, %s373
          %s375 = sshll.u32 %s368, 4
          %s376 = int_to_ptr.vmem [resolvable:$true] %s375
          %381 = dma.hbm_to_vmem [thread:$0]  %s374, 512, %s376, %s365, 128, 128, 8
        $region48: #{srnn_forward.2} parent=23 // pred_fallthru
          _
        // Predicated region
        $region49: #{srnn_forward.2} parent=23 // pred_check
          %p382 = pneg %p235
        $region50: #{srnn_forward.2} parent=23 // pred_check_branch
          %384 = sbr.rel (%p382) target = $region52
        $region51: #{srnn_forward.2} parent=23 // pred_region
          %p385 = scmp.lt.s32.totalorder %s17, 1
          %s386 = scalar_select %p385, %s17, 1
          %s387 = scalar_lea.vmem %s8, %s386
        $region52: #{srnn_forward.2} parent=23 // pred_fallthru
          _
      $region24: #{srnn_forward.2} parent=5 // pred_fallthru
        _
      %p388 = scmp.le.s32.totalorder 1, %s17
      %p389 = scmp.lt.s32.totalorder %s17, 3
      %p390 = pnand %p388, %p389
      %p391 = pneg %p390
      // Predicated region
      $region53: #{srnn_forward.2} parent=5 // pred_check
        _
      $region54: #{srnn_forward.2} parent=5 // pred_check_branch
        %393 = sbr.rel (%p390) target = $region56
      $region55: #{srnn_forward.2} parent=5 // pred_region
        %s394 = ssub.s32 %s17, 1
        // Predicated region
        $region57: #{srnn_forward.2} parent=55 // pred_check
          %p395 = pneg %p64
        $region58: #{srnn_forward.2} parent=55 // pred_check_branch
          %397 = sbr.rel (%p395) target = $region60
        $region59: #{srnn_forward.2} parent=55 // pred_region
          %398 = dma.done [#allocation4], 256
        $region60: #{srnn_forward.2} parent=55 // pred_fallthru
          _
        // Predicated region
        $region61: #{srnn_forward.2} parent=55 // pred_check
          %p399 = pneg %p85
        $region62: #{srnn_forward.2} parent=55 // pred_check_branch
          %401 = sbr.rel (%p399) target = $region64
        $region63: #{srnn_forward.2} parent=55 // pred_region
          %402 = dma.done [#allocation6], 16
        $region64: #{srnn_forward.2} parent=55 // pred_fallthru
          _
        %s403 = sand.u32 %s22, 1
        %s404 = scalar_lea.sflag [#allocation4], %s403
        %s405 = sand.u32 %s98, 1
        %s406 = smul.addr %s405, 16
        %s407 = scalar_lea.vmem [#allocation7], %s406
        // Predicated region
        $region65: #{srnn_forward.2} parent=55 // pred_check
          %p408 = pneg %p111
        $region66: #{srnn_forward.2} parent=55 // pred_check_branch
          %410 = sbr.rel (%p408) target = $region68
        $region67: #{srnn_forward.2} parent=55 // pred_region
          %411 = dma.done %s404, 256
        $region68: #{srnn_forward.2} parent=55 // pred_fallthru
          _
        %s412 = sand.u32 %s22, 1
        %s413 = scalar_lea.sflag [#allocation4], %s412
        %s414 = sand.u32 %s202, 1
        %s415 = smul.addr %s414, 32
        %s416 = scalar_lea.vmem [#allocation8], %s415
        // Predicated region
        $region69: #{srnn_forward.2} parent=55 // pred_check
          %p417 = pneg %p215
        $region70: #{srnn_forward.2} parent=55 // pred_check_branch
          %419 = sbr.rel (%p417) target = $region72
        $region71: #{srnn_forward.2} parent=55 // pred_region
          %420 = dma.done %s413, 512
        $region72: #{srnn_forward.2} parent=55 // pred_fallthru
          _
        %p421 = scmp.lt.s32.totalorder %s22, 1
        %s422 = scalar_select %p421, %s22, 1
        %s423 = smul.addr %s422, 2
        %s424 = smul.addr %s423, 8
        %s425 = scalar_lea.vmem %s0, %s424
        %p426 = pneg %p43
        %p427 = pneg %p40
        %p428 = pneg %p64
        %p429 = pneg %p61
        %p430 = pneg %p85
        %p431 = pneg %p82
        %s432 = sand.u32 %s22, 1
        %s433 = scalar_lea.sflag [#allocation4], %s432
        %s434 = sand.u32 %s98, 1
        %s435 = smul.addr %s434, 16
        %s436 = scalar_lea.vmem [#allocation7], %s435
        %p437 = pneg %p111
        %p438 = pneg %p108
        %p439 = scmp.lt.s32.totalorder %s22, 1
        %s440 = scalar_select %p439, %s22, 1
        %s441 = smul.addr %s440, 4
        %s442 = smul.addr %s441, 8
        %s443 = scalar_lea.vmem %s4, %s442
        %p444 = pneg %p137
        %p445 = pneg %p134
        %p446 = scmp.lt.s32.totalorder %s22, 1
        %s447 = scalar_select %p446, %s22, 1
        %s448 = scalar_lea.vmem %s5, %s447
        %p449 = pneg %p163
        %p450 = pneg %p160
        %p451 = scmp.lt.s32.totalorder %s22, 1
        %s452 = scalar_select %p451, %s22, 1
        %s453 = smul.addr %s452, 4
        %s454 = smul.addr %s453, 8
        %s455 = scalar_lea.vmem %s6, %s454
        %p456 = pneg %p189
        %p457 = pneg %p186
        %s458 = sand.u32 %s22, 1
        %s459 = scalar_lea.sflag [#allocation4], %s458
        %s460 = sand.u32 %s202, 1
        %s461 = smul.addr %s460, 32
        %s462 = scalar_lea.vmem [#allocation8], %s461
        %p463 = pneg %p215
        %p464 = pneg %p212
        %p465 = scmp.lt.s32.totalorder %s22, 1
        %s466 = scalar_select %p465, %s22, 1
        %s467 = scalar_lea.vmem %s8, %s466
        %p468 = pneg %p241
        %p469 = pneg %p238
        %p470 = pneg %p267
        %p471 = pneg %p264
        %p472 = scmp.lt.s32.totalorder %s22, 1
        %s473 = scalar_select %p472, %s22, 1
        %s474 = smul.addr %s473, 2
        %s475 = smul.addr %s474, 8
        %s476 = scalar_lea.vmem %s9, %s475
        %p477 = scmp.lt.s32.totalorder %s22, 1
        %s478 = scalar_select %p477, %s22, 1
        %s479 = smul.addr %s478, 2
        %s480 = smul.addr %s479, 8
        %s481 = scalar_lea.vmem %s0, %s480
        %p482 = scmp.lt.s32.totalorder %s22, 1
        %s483 = scalar_select %p482, %s22, 1
        %s484 = smul.addr %s483, 4
        %s485 = smul.addr %s484, 8
        %s486 = scalar_lea.vmem %s4, %s485
        %p487 = scmp.lt.s32.totalorder %s22, 1
        %s488 = scalar_select %p487, %s22, 1
        %s489 = scalar_lea.vmem %s5, %s488
        %p490 = scmp.lt.s32.totalorder %s22, 1
        %s491 = scalar_select %p490, %s22, 1
        %s492 = smul.addr %s491, 4
        %s493 = smul.addr %s492, 8
        %s494 = scalar_lea.vmem %s6, %s493
        %p495 = scmp.lt.s32.totalorder %s22, 1
        %s496 = scalar_select %p495, %s22, 1
        %s497 = scalar_lea.vmem %s8, %s496
        %p498 = scmp.lt.s32.totalorder %s22, 1
        %s499 = scalar_select %p498, %s22, 1
        %s500 = smul.addr %s499, 2
        %s501 = smul.addr %s500, 8
        %s502 = scalar_lea.vmem %s9, %s501
        %v503 = vld [vmem:[%s481] sm:$0xff]
        %v504 = vld [vmem:[%s481 + $0x8] sm:$0xff]
        %v505 = vld [vmem:[#allocation3] sm:$0xff]
        %v506 = vld [vmem:[#allocation3 + $0x8] sm:$0xff]
        %v507 = vld [vmem:[#allocation5] sm:$0x1]
        %v509 = vlaneseq
        %v510 = vshrl.u32 %v509, 7
        %v511 = vsub.s32 0, %v510
        %v512 = vrot.slane %v507, %v511
        %vm514 = vcmask 130048
        %v516 = vsel %vm514, %v503, 0
        %v519 = vsel %vm514, %v504, 0
        %521 = vmatprep.subr.mxu0 0.0
        %522 = vmatpush1.msra.mxu0 0.0
        %523 = vmatprep.subr.mxu0 0.0
        %524 = vmatpush1.msra.mxu0 0.0
        %525 = vmatprep.subr.mxu0 0.0
        %526 = vmatpush1.msra.mxu0 0.0
        %527 = vmatprep.subr.mxu0 0.0
        %528 = vmatpush1.msra.mxu0 0.0
        %529 = vmatprep.subr.mxu0 0.0
        %530 = vmatpush1.msra.mxu0 0.0
        %531 = vmatprep.subr.mxu0 0.0
        %532 = vmatpush1.msra.mxu0 0.0
        %533 = vmatprep.subr.mxu0 0.0
        %534 = vmatpush1.msra.mxu0 0.0
        %535 = vmatprep.subr.mxu0 0.0
        %536 = vmatpush1.msra.mxu0 0.0
        %537 = vmatprep.subr.mxu0 0.0
        %538 = vmatpush1.msra.mxu0 0.0
        %539 = vmatprep.subr.mxu0 0.0
        %540 = vmatpush1.msra.mxu0 0.0
        %541 = vmatprep.subr.mxu0 0.0
        %542 = vmatpush1.msra.mxu0 0.0
        %543 = vmatprep.subr.mxu0 0.0
        %544 = vmatpush1.msra.mxu0 0.0
        %545 = vmatprep.subr.mxu0 0.0
        %546 = vmatpush1.msra.mxu0 0.0
        %547 = vmatprep.subr.mxu0 0.0
        %548 = vmatpush1.msra.mxu0 0.0
        %549 = vmatprep.subr.mxu0 0.0
        %550 = vmatpush1.msra.mxu0 %v506
        %551 = vmatprep.subr.mxu0 0.0
        %552 = vmatpush1.msra.mxu0 %v505
        %553 = vmatprep.subr.mxu0 0.0
        %554 = vmatpush2.msra.mxu0 0.0
        %555 = vmatprep.subr.mxu0 0.0
        %556 = vmatpush2.msra.mxu0 0.0
        %557 = vmatprep.subr.mxu0 0.0
        %558 = vmatpush2.msra.mxu0 0.0
        %559 = vmatprep.subr.mxu0 0.0
        %560 = vmatpush2.msra.mxu0 0.0
        %561 = vmatprep.subr.mxu0 0.0
        %562 = vmatpush2.msra.mxu0 0.0
        %563 = vmatprep.subr.mxu0 0.0
        %564 = vmatpush2.msra.mxu0 0.0
        %565 = vmatprep.subr.mxu0 0.0
        %566 = vmatpush2.msra.mxu0 0.0
        %567 = vmatprep.subr.mxu0 0.0
        %568 = vmatpush2.msra.mxu0 0.0
        %569 = vmatprep.subr.mxu0 0.0
        %570 = vmatpush2.msra.mxu0 0.0
        %571 = vmatprep.subr.mxu0 0.0
        %572 = vmatpush2.msra.mxu0 0.0
        %573 = vmatprep.subr.mxu0 0.0
        %574 = vmatpush2.msra.mxu0 0.0
        %575 = vmatprep.subr.mxu0 0.0
        %576 = vmatpush2.msra.mxu0 0.0
        %577 = vmatprep.subr.mxu0 0.0
        %578 = vmatpush2.msra.mxu0 0.0
        %579 = vmatprep.subr.mxu0 0.0
        %580 = vmatpush2.msra.mxu0 0.0
        %581 = vmatprep.subr.mxu0 0.0
        %582 = vmatpush2.msra.mxu0 0.0
        %583 = vmatprep.subr.mxu0 0.0
        %584 = vmatpush2.msra.mxu0 0.0
        %585 = vmatprep.mubr.f32.mxu0 0.0
        %586 = vmatmul.mubr.f32.gmra.mxu0 %v516
        %v587 = vpop.f32.mrf.mxu0
        %v588 = vadd.f32 %v512, %v587
        %v589 = vpop.f32.mrf.mxu0
        %590 = vmatprep.mubr.f32.mxu0 0.0
        %591 = vmatmul.mubr.f32.gmra.mxu0 %v519
        %v592 = vpop.f32.mrf.mxu0
        %v593 = vadd.f32 %v512, %v592
        %v594 = vpop.f32.mrf.mxu0
        %595 = vdwg.mxu0
        %v596 = vld [vmem:[%s407] sm:$0xff]
        %v597 = vld [vmem:[%s407 + $0x8] sm:$0xff]
        %v598 = vld [vmem:[%s486] sm:$0xff]
        %v599 = vld [vmem:[%s486 + $0x8] sm:$0xff]
        %v600 = vld [vmem:[%s486 + $0x10] sm:$0xff]
        %v601 = vld [vmem:[%s486 + $0x18] sm:$0xff]
        %v602 = vld [vmem:[%s489] sm:$0x1]
        %v604 = vlaneseq
        %v605 = vshrl.u32 %v604, 7
        %v606 = vsub.s32 0, %v605
        %v607 = vrot.slane %v602, %v606
        %v610 = vsel %vm514, %v588, 0
        %v613 = vsel %vm514, %v593, 0
        %615 = vmatprep.subr.mxu0 0.0
        %616 = vmatpush1.msra.mxu0 0.0
        %617 = vmatprep.subr.mxu0 0.0
        %618 = vmatpush1.msra.mxu0 0.0
        %619 = vmatprep.subr.mxu0 0.0
        %620 = vmatpush1.msra.mxu0 0.0
        %621 = vmatprep.subr.mxu0 0.0
        %622 = vmatpush1.msra.mxu0 0.0
        %623 = vmatprep.subr.mxu0 0.0
        %624 = vmatpush1.msra.mxu0 0.0
        %625 = vmatprep.subr.mxu0 0.0
        %626 = vmatpush1.msra.mxu0 0.0
        %627 = vmatprep.subr.mxu0 0.0
        %628 = vmatpush1.msra.mxu0 0.0
        %629 = vmatprep.subr.mxu0 0.0
        %630 = vmatpush1.msra.mxu0 0.0
        %631 = vmatprep.subr.mxu0 0.0
        %632 = vmatpush1.msra.mxu0 0.0
        %633 = vmatprep.subr.mxu0 0.0
        %634 = vmatpush1.msra.mxu0 0.0
        %635 = vmatprep.subr.mxu0 0.0
        %636 = vmatpush1.msra.mxu0 0.0
        %637 = vmatprep.subr.mxu0 0.0
        %638 = vmatpush1.msra.mxu0 0.0
        %639 = vmatprep.subr.mxu0 0.0
        %640 = vmatpush1.msra.mxu0 0.0
        %641 = vmatprep.subr.mxu0 0.0
        %642 = vmatpush1.msra.mxu0 0.0
        %643 = vmatprep.subr.mxu0 0.0
        %644 = vmatpush1.msra.mxu0 %v597
        %645 = vmatprep.subr.mxu0 0.0
        %646 = vmatpush1.msra.mxu0 %v596
        %647 = vmatprep.subr.mxu0 0.0
        %648 = vmatpush2.msra.mxu0 0.0
        %649 = vmatprep.subr.mxu0 0.0
        %650 = vmatpush2.msra.mxu0 0.0
        %651 = vmatprep.subr.mxu0 0.0
        %652 = vmatpush2.msra.mxu0 0.0
        %653 = vmatprep.subr.mxu0 0.0
        %654 = vmatpush2.msra.mxu0 0.0
        %655 = vmatprep.subr.mxu0 0.0
        %656 = vmatpush2.msra.mxu0 0.0
        %657 = vmatprep.subr.mxu0 0.0
        %658 = vmatpush2.msra.mxu0 0.0
        %659 = vmatprep.subr.mxu0 0.0
        %660 = vmatpush2.msra.mxu0 0.0
        %661 = vmatprep.subr.mxu0 0.0
        %662 = vmatpush2.msra.mxu0 0.0
        %663 = vmatprep.subr.mxu0 0.0
        %664 = vmatpush2.msra.mxu0 0.0
        %665 = vmatprep.subr.mxu0 0.0
        %666 = vmatpush2.msra.mxu0 0.0
        %667 = vmatprep.subr.mxu0 0.0
        %668 = vmatpush2.msra.mxu0 0.0
        %669 = vmatprep.subr.mxu0 0.0
        %670 = vmatpush2.msra.mxu0 0.0
        %671 = vmatprep.subr.mxu0 0.0
        %672 = vmatpush2.msra.mxu0 0.0
        %673 = vmatprep.subr.mxu0 0.0
        %674 = vmatpush2.msra.mxu0 0.0
        %675 = vmatprep.subr.mxu0 0.0
        %676 = vmatpush2.msra.mxu0 0.0
        %677 = vmatprep.subr.mxu0 0.0
        %678 = vmatpush2.msra.mxu0 0.0
        %679 = vmatprep.mubr.f32.mxu0 0.0
        %680 = vmatmul.mubr.f32.gmra.mxu0 %v610
        %v681 = vpop.f32.mrf.mxu0
        %v682 = vadd.f32 %v607, %v681
        %v683 = vpop.f32.mrf.mxu0
        %684 = vmatprep.mubr.f32.mxu0 0.0
        %685 = vmatmul.mubr.f32.gmra.mxu0 %v613
        %v686 = vpop.f32.mrf.mxu0
        %v687 = vadd.f32 %v607, %v686
        %v688 = vpop.f32.mrf.mxu0
        %689 = vdwg.mxu0
        %vm690 = vcmask 261120
        %v692 = vsel %vm690, 0.0, 0
        %694 = vmatprep.subr.mxu0 0.0
        %695 = vmatpush1.msra.mxu0 0.0
        %696 = vmatprep.subr.mxu0 0.0
        %697 = vmatpush1.msra.mxu0 0.0
        %698 = vmatprep.subr.mxu0 0.0
        %699 = vmatpush1.msra.mxu0 0.0
        %700 = vmatprep.subr.mxu0 0.0
        %701 = vmatpush1.msra.mxu0 0.0
        %702 = vmatprep.subr.mxu0 0.0
        %703 = vmatpush1.msra.mxu0 0.0
        %704 = vmatprep.subr.mxu0 0.0
        %705 = vmatpush1.msra.mxu0 0.0
        %706 = vmatprep.subr.mxu0 0.0
        %707 = vmatpush1.msra.mxu0 0.0
        %708 = vmatprep.subr.mxu0 0.0
        %709 = vmatpush1.msra.mxu0 0.0
        %710 = vmatprep.subr.mxu0 0.0
        %711 = vmatpush1.msra.mxu0 0.0
        %712 = vmatprep.subr.mxu0 0.0
        %713 = vmatpush1.msra.mxu0 0.0
        %714 = vmatprep.subr.mxu0 0.0
        %715 = vmatpush1.msra.mxu0 0.0
        %716 = vmatprep.subr.mxu0 0.0
        %717 = vmatpush1.msra.mxu0 0.0
        %718 = vmatprep.subr.mxu0 0.0
        %719 = vmatpush1.msra.mxu0 %v601
        %720 = vmatprep.subr.mxu0 0.0
        %721 = vmatpush1.msra.mxu0 %v600
        %722 = vmatprep.subr.mxu0 0.0
        %723 = vmatpush1.msra.mxu0 %v599
        %724 = vmatprep.subr.mxu0 0.0
        %725 = vmatpush1.msra.mxu0 %v598
        %726 = vmatprep.subr.mxu0 0.0
        %727 = vmatpush2.msra.mxu0 0.0
        %728 = vmatprep.subr.mxu0 0.0
        %729 = vmatpush2.msra.mxu0 0.0
        %730 = vmatprep.subr.mxu0 0.0
        %731 = vmatpush2.msra.mxu0 0.0
        %732 = vmatprep.subr.mxu0 0.0
        %733 = vmatpush2.msra.mxu0 0.0
        %734 = vmatprep.subr.mxu0 0.0
        %735 = vmatpush2.msra.mxu0 0.0
        %736 = vmatprep.subr.mxu0 0.0
        %737 = vmatpush2.msra.mxu0 0.0
        %738 = vmatprep.subr.mxu0 0.0
        %739 = vmatpush2.msra.mxu0 0.0
        %740 = vmatprep.subr.mxu0 0.0
        %741 = vmatpush2.msra.mxu0 0.0
        %742 = vmatprep.subr.mxu0 0.0
        %743 = vmatpush2.msra.mxu0 0.0
        %744 = vmatprep.subr.mxu0 0.0
        %745 = vmatpush2.msra.mxu0 0.0
        %746 = vmatprep.subr.mxu0 0.0
        %747 = vmatpush2.msra.mxu0 0.0
        %748 = vmatprep.subr.mxu0 0.0
        %749 = vmatpush2.msra.mxu0 0.0
        %750 = vmatprep.subr.mxu0 0.0
        %751 = vmatpush2.msra.mxu0 0.0
        %752 = vmatprep.subr.mxu0 0.0
        %753 = vmatpush2.msra.mxu0 0.0
        %754 = vmatprep.subr.mxu0 0.0
        %755 = vmatpush2.msra.mxu0 0.0
        %756 = vmatprep.subr.mxu0 0.0
        %757 = vmatpush2.msra.mxu0 0.0
        %758 = vmatprep.mubr.f32.mxu0 0.0
        %759 = vmatmul.mubr.f32.gmra.mxu0 %v692
        %v760 = vpop.f32.mrf.mxu0
        %v761 = vadd.f32 0.0, %v760
        %v762 = vpop.f32.mrf.mxu0
        %763 = vdwg.mxu0
        %v764 = vadd.f32 %v682, %v761
        %v765 = vxor.u32 %v764, 2147483648
        %v766 = vmul.f32 %v765, 1.442695
        %v767 = vpow.pop %v766
        %v768 = vadd.f32 %v767, 1.0
        %v769 = vrcp.pop %v768
        %v770 = vmul.f32 1.0, %v769
        %v771 = vtanh.pop %v764
        %v772 = vmul.f32 %v770, 0.0
        %774 = vrot.lane.b32.xlu0 %v771, 64
        %v775 = vpop.permute.xlu0 %774
        %v777 = vmul.f32 %v770, %v775
        %779 = vrot.lane.b32.xlu0 %v777, 32
        %v780 = vpop.permute.xlu0 %779
        %v782 = vadd.f32 %v772, %v780
        %v783 = vtanh.pop %v782
        %785 = vrot.lane.b32.xlu0 %v783, 64
        %v786 = vpop.permute.xlu0 %785
        %v788 = vmul.f32 %v770, %v786
        %790 = vrot.lane.b32.xlu0 %v788, 32
        %v791 = vpop.permute.xlu0 %790
        %vm793 = vcmask 254976
        %794 = vst.msk [vmem:[#allocation2] sm:$0x3] %vm793, %v791
        %v795 = vsel %vm690, %v791, 0
        %797 = vmatprep.subr.mxu0 0.0
        %798 = vmatpush1.msra.mxu0 0.0
        %799 = vmatprep.subr.mxu0 0.0
        %800 = vmatpush1.msra.mxu0 0.0
        %801 = vmatprep.subr.mxu0 0.0
        %802 = vmatpush1.msra.mxu0 0.0
        %803 = vmatprep.subr.mxu0 0.0
        %804 = vmatpush1.msra.mxu0 0.0
        %805 = vmatprep.subr.mxu0 0.0
        %806 = vmatpush1.msra.mxu0 0.0
        %807 = vmatprep.subr.mxu0 0.0
        %808 = vmatpush1.msra.mxu0 0.0
        %809 = vmatprep.subr.mxu0 0.0
        %810 = vmatpush1.msra.mxu0 0.0
        %811 = vmatprep.subr.mxu0 0.0
        %812 = vmatpush1.msra.mxu0 0.0
        %813 = vmatprep.subr.mxu0 0.0
        %814 = vmatpush1.msra.mxu0 0.0
        %815 = vmatprep.subr.mxu0 0.0
        %816 = vmatpush1.msra.mxu0 0.0
        %817 = vmatprep.subr.mxu0 0.0
        %818 = vmatpush1.msra.mxu0 0.0
        %819 = vmatprep.subr.mxu0 0.0
        %820 = vmatpush1.msra.mxu0 0.0
        %821 = vmatprep.subr.mxu0 0.0
        %822 = vmatpush1.msra.mxu0 %v601
        %823 = vmatprep.subr.mxu0 0.0
        %824 = vmatpush1.msra.mxu0 %v600
        %825 = vmatprep.subr.mxu0 0.0
        %826 = vmatpush1.msra.mxu0 %v599
        %827 = vmatprep.subr.mxu0 0.0
        %828 = vmatpush1.msra.mxu0 %v598
        %829 = vmatprep.subr.mxu0 0.0
        %830 = vmatpush2.msra.mxu0 0.0
        %831 = vmatprep.subr.mxu0 0.0
        %832 = vmatpush2.msra.mxu0 0.0
        %833 = vmatprep.subr.mxu0 0.0
        %834 = vmatpush2.msra.mxu0 0.0
        %835 = vmatprep.subr.mxu0 0.0
        %836 = vmatpush2.msra.mxu0 0.0
        %837 = vmatprep.subr.mxu0 0.0
        %838 = vmatpush2.msra.mxu0 0.0
        %839 = vmatprep.subr.mxu0 0.0
        %840 = vmatpush2.msra.mxu0 0.0
        %841 = vmatprep.subr.mxu0 0.0
        %842 = vmatpush2.msra.mxu0 0.0
        %843 = vmatprep.subr.mxu0 0.0
        %844 = vmatpush2.msra.mxu0 0.0
        %845 = vmatprep.subr.mxu0 0.0
        %846 = vmatpush2.msra.mxu0 0.0
        %847 = vmatprep.subr.mxu0 0.0
        %848 = vmatpush2.msra.mxu0 0.0
        %849 = vmatprep.subr.mxu0 0.0
        %850 = vmatpush2.msra.mxu0 0.0
        %851 = vmatprep.subr.mxu0 0.0
        %852 = vmatpush2.msra.mxu0 0.0
        %853 = vmatprep.subr.mxu0 0.0
        %854 = vmatpush2.msra.mxu0 0.0
        %855 = vmatprep.subr.mxu0 0.0
        %856 = vmatpush2.msra.mxu0 0.0
        %857 = vmatprep.subr.mxu0 0.0
        %858 = vmatpush2.msra.mxu0 0.0
        %859 = vmatprep.subr.mxu0 0.0
        %860 = vmatpush2.msra.mxu0 0.0
        %861 = vmatprep.mubr.f32.mxu0 0.0
        %862 = vmatmul.mubr.f32.gmra.mxu0 %v795
        %v863 = vpop.f32.mrf.mxu0
        %v864 = vadd.f32 0.0, %v863
        %v865 = vpop.f32.mrf.mxu0
        %866 = vdwg.mxu0
        %v868 = vrot.slane %v864, 6
        %v870 = vadd.f32 %v682, %v868
        %v871 = vxor.u32 %v870, 2147483648
        %v872 = vmul.f32 %v871, 1.442695
        %v873 = vpow.pop %v872
        %v874 = vadd.f32 %v873, 1.0
        %v875 = vrcp.pop %v874
        %v876 = vmul.f32 1.0, %v875
        %v877 = vtanh.pop %v870
        %v879 = vrot.slane %v782, 6
        %v881 = vmul.f32 %v876, %v879
        %883 = vrot.lane.b32.xlu0 %v877, 64
        %v884 = vpop.permute.xlu0 %883
        %v886 = vmul.f32 %v876, %v884
        %888 = vrot.lane.b32.xlu0 %v886, 32
        %v889 = vpop.permute.xlu0 %888
        %v891 = vadd.f32 %v881, %v889
        %v892 = vtanh.pop %v891
        %894 = vrot.lane.b32.xlu0 %v892, 64
        %v895 = vpop.permute.xlu0 %894
        %v897 = vmul.f32 %v876, %v895
        %899 = vrot.lane.b32.xlu0 %v897, 32
        %v900 = vpop.permute.xlu0 %899
        %vm902 = vcmask 257026
        %903 = vst.msk [vmem:[#allocation2] sm:$0xc] %vm902, %v900
        %v904 = vrot.slane %v897, 2
        %905 = vrot.lane.b32.xlu0 %v904, 32
        %v906 = vpop.permute.xlu0 %905
        %v907 = vsel %vm690, %v906, 0
        %909 = vmatprep.subr.mxu0 0.0
        %910 = vmatpush1.msra.mxu0 0.0
        %911 = vmatprep.subr.mxu0 0.0
        %912 = vmatpush1.msra.mxu0 0.0
        %913 = vmatprep.subr.mxu0 0.0
        %914 = vmatpush1.msra.mxu0 0.0
        %915 = vmatprep.subr.mxu0 0.0
        %916 = vmatpush1.msra.mxu0 0.0
        %917 = vmatprep.subr.mxu0 0.0
        %918 = vmatpush1.msra.mxu0 0.0
        %919 = vmatprep.subr.mxu0 0.0
        %920 = vmatpush1.msra.mxu0 0.0
        %921 = vmatprep.subr.mxu0 0.0
        %922 = vmatpush1.msra.mxu0 0.0
        %923 = vmatprep.subr.mxu0 0.0
        %924 = vmatpush1.msra.mxu0 0.0
        %925 = vmatprep.subr.mxu0 0.0
        %926 = vmatpush1.msra.mxu0 0.0
        %927 = vmatprep.subr.mxu0 0.0
        %928 = vmatpush1.msra.mxu0 0.0
        %929 = vmatprep.subr.mxu0 0.0
        %930 = vmatpush1.msra.mxu0 0.0
        %931 = vmatprep.subr.mxu0 0.0
        %932 = vmatpush1.msra.mxu0 0.0
        %933 = vmatprep.subr.mxu0 0.0
        %934 = vmatpush1.msra.mxu0 %v601
        %935 = vmatprep.subr.mxu0 0.0
        %936 = vmatpush1.msra.mxu0 %v600
        %937 = vmatprep.subr.mxu0 0.0
        %938 = vmatpush1.msra.mxu0 %v599
        %939 = vmatprep.subr.mxu0 0.0
        %940 = vmatpush1.msra.mxu0 %v598
        %941 = vmatprep.subr.mxu0 0.0
        %942 = vmatpush2.msra.mxu0 0.0
        %943 = vmatprep.subr.mxu0 0.0
        %944 = vmatpush2.msra.mxu0 0.0
        %945 = vmatprep.subr.mxu0 0.0
        %946 = vmatpush2.msra.mxu0 0.0
        %947 = vmatprep.subr.mxu0 0.0
        %948 = vmatpush2.msra.mxu0 0.0
        %949 = vmatprep.subr.mxu0 0.0
        %950 = vmatpush2.msra.mxu0 0.0
        %951 = vmatprep.subr.mxu0 0.0
        %952 = vmatpush2.msra.mxu0 0.0
        %953 = vmatprep.subr.mxu0 0.0
        %954 = vmatpush2.msra.mxu0 0.0
        %955 = vmatprep.subr.mxu0 0.0
        %956 = vmatpush2.msra.mxu0 0.0
        %957 = vmatprep.subr.mxu0 0.0
        %958 = vmatpush2.msra.mxu0 0.0
        %959 = vmatprep.subr.mxu0 0.0
        %960 = vmatpush2.msra.mxu0 0.0
        %961 = vmatprep.subr.mxu0 0.0
        %962 = vmatpush2.msra.mxu0 0.0
        %963 = vmatprep.subr.mxu0 0.0
        %964 = vmatpush2.msra.mxu0 0.0
        %965 = vmatprep.subr.mxu0 0.0
        %966 = vmatpush2.msra.mxu0 0.0
        %967 = vmatprep.subr.mxu0 0.0
        %968 = vmatpush2.msra.mxu0 0.0
        %969 = vmatprep.subr.mxu0 0.0
        %970 = vmatpush2.msra.mxu0 0.0
        %971 = vmatprep.subr.mxu0 0.0
        %972 = vmatpush2.msra.mxu0 0.0
        %973 = vmatprep.mubr.f32.mxu0 0.0
        %974 = vmatmul.mubr.f32.gmra.mxu0 %v907
        %v975 = vpop.f32.mrf.mxu0
        %v976 = vadd.f32 0.0, %v975
        %v977 = vpop.f32.mrf.mxu0
        %978 = vdwg.mxu0
        %v980 = vrot.slane %v976, 4
        %v982 = vadd.f32 %v682, %v980
        %v983 = vxor.u32 %v982, 2147483648
        %v984 = vmul.f32 %v983, 1.442695
        %v985 = vpow.pop %v984
        %v986 = vadd.f32 %v985, 1.0
        %v987 = vrcp.pop %v986
        %v988 = vmul.f32 1.0, %v987
        %v989 = vtanh.pop %v982
        %v991 = vrot.slane %v891, 6
        %v993 = vmul.f32 %v988, %v991
        %995 = vrot.lane.b32.xlu0 %v989, 64
        %v996 = vpop.permute.xlu0 %995
        %v998 = vmul.f32 %v988, %v996
        %1000 = vrot.lane.b32.xlu0 %v998, 32
        %v1001 = vpop.permute.xlu0 %1000
        %v1003 = vadd.f32 %v993, %v1001
        %v1004 = vtanh.pop %v1003
        %1006 = vrot.lane.b32.xlu0 %v1004, 64
        %v1007 = vpop.permute.xlu0 %1006
        %v1009 = vmul.f32 %v988, %v1007
        %1011 = vrot.lane.b32.xlu0 %v1009, 32
        %v1012 = vpop.permute.xlu0 %1011
        %vm1014 = vcmask 259076
        %1015 = vst.msk [vmem:[#allocation2] sm:$0x30] %vm1014, %v1012
        %v1016 = vrot.slane %v1009, 4
        %1017 = vrot.lane.b32.xlu0 %v1016, 32
        %v1018 = vpop.permute.xlu0 %1017
        %v1019 = vsel %vm690, %v1018, 0
        %1021 = vmatprep.subr.mxu0 0.0
        %1022 = vmatpush1.msra.mxu0 0.0
        %1023 = vmatprep.subr.mxu0 0.0
        %1024 = vmatpush1.msra.mxu0 0.0
        %1025 = vmatprep.subr.mxu0 0.0
        %1026 = vmatpush1.msra.mxu0 0.0
        %1027 = vmatprep.subr.mxu0 0.0
        %1028 = vmatpush1.msra.mxu0 0.0
        %1029 = vmatprep.subr.mxu0 0.0
        %1030 = vmatpush1.msra.mxu0 0.0
        %1031 = vmatprep.subr.mxu0 0.0
        %1032 = vmatpush1.msra.mxu0 0.0
        %1033 = vmatprep.subr.mxu0 0.0
        %1034 = vmatpush1.msra.mxu0 0.0
        %1035 = vmatprep.subr.mxu0 0.0
        %1036 = vmatpush1.msra.mxu0 0.0
        %1037 = vmatprep.subr.mxu0 0.0
        %1038 = vmatpush1.msra.mxu0 0.0
        %1039 = vmatprep.subr.mxu0 0.0
        %1040 = vmatpush1.msra.mxu0 0.0
        %1041 = vmatprep.subr.mxu0 0.0
        %1042 = vmatpush1.msra.mxu0 0.0
        %1043 = vmatprep.subr.mxu0 0.0
        %1044 = vmatpush1.msra.mxu0 0.0
        %1045 = vmatprep.subr.mxu0 0.0
        %1046 = vmatpush1.msra.mxu0 %v601
        %1047 = vmatprep.subr.mxu0 0.0
        %1048 = vmatpush1.msra.mxu0 %v600
        %1049 = vmatprep.subr.mxu0 0.0
        %1050 = vmatpush1.msra.mxu0 %v599
        %1051 = vmatprep.subr.mxu0 0.0
        %1052 = vmatpush1.msra.mxu0 %v598
        %1053 = vmatprep.subr.mxu0 0.0
        %1054 = vmatpush2.msra.mxu0 0.0
        %1055 = vmatprep.subr.mxu0 0.0
        %1056 = vmatpush2.msra.mxu0 0.0
        %1057 = vmatprep.subr.mxu0 0.0
        %1058 = vmatpush2.msra.mxu0 0.0
        %1059 = vmatprep.subr.mxu0 0.0
        %1060 = vmatpush2.msra.mxu0 0.0
        %1061 = vmatprep.subr.mxu0 0.0
        %1062 = vmatpush2.msra.mxu0 0.0
        %1063 = vmatprep.subr.mxu0 0.0
        %1064 = vmatpush2.msra.mxu0 0.0
        %1065 = vmatprep.subr.mxu0 0.0
        %1066 = vmatpush2.msra.mxu0 0.0
        %1067 = vmatprep.subr.mxu0 0.0
        %1068 = vmatpush2.msra.mxu0 0.0
        %1069 = vmatprep.subr.mxu0 0.0
        %1070 = vmatpush2.msra.mxu0 0.0
        %1071 = vmatprep.subr.mxu0 0.0
        %1072 = vmatpush2.msra.mxu0 0.0
        %1073 = vmatprep.subr.mxu0 0.0
        %1074 = vmatpush2.msra.mxu0 0.0
        %1075 = vmatprep.subr.mxu0 0.0
        %1076 = vmatpush2.msra.mxu0 0.0
        %1077 = vmatprep.subr.mxu0 0.0
        %1078 = vmatpush2.msra.mxu0 0.0
        %1079 = vmatprep.subr.mxu0 0.0
        %1080 = vmatpush2.msra.mxu0 0.0
        %1081 = vmatprep.subr.mxu0 0.0
        %1082 = vmatpush2.msra.mxu0 0.0
        %1083 = vmatprep.subr.mxu0 0.0
        %1084 = vmatpush2.msra.mxu0 0.0
        %1085 = vmatprep.mubr.f32.mxu0 0.0
        %1086 = vmatmul.mubr.f32.gmra.mxu0 %v1019
        %v1087 = vpop.f32.mrf.mxu0
        %v1088 = vadd.f32 0.0, %v1087
        %v1089 = vpop.f32.mrf.mxu0
        %1090 = vdwg.mxu0
        %v1092 = vrot.slane %v1088, 2
        %v1094 = vadd.f32 %v682, %v1092
        %v1095 = vxor.u32 %v1094, 2147483648
        %v1096 = vmul.f32 %v1095, 1.442695
        %v1097 = vpow.pop %v1096
        %v1098 = vadd.f32 %v1097, 1.0
        %v1099 = vrcp.pop %v1098
        %v1100 = vmul.f32 1.0, %v1099
        %v1101 = vtanh.pop %v1094
        %v1103 = vrot.slane %v1003, 6
        %v1105 = vmul.f32 %v1100, %v1103
        %1107 = vrot.lane.b32.xlu0 %v1101, 64
        %v1108 = vpop.permute.xlu0 %1107
        %v1110 = vmul.f32 %v1100, %v1108
        %1112 = vrot.lane.b32.xlu0 %v1110, 32
        %v1113 = vpop.permute.xlu0 %1112
        %v1115 = vadd.f32 %v1105, %v1113
        %v1116 = vtanh.pop %v1115
        %1118 = vrot.lane.b32.xlu0 %v1116, 64
        %v1119 = vpop.permute.xlu0 %1118
        %v1121 = vmul.f32 %v1100, %v1119
        %1123 = vrot.lane.b32.xlu0 %v1121, 32
        %v1124 = vpop.permute.xlu0 %1123
        %vm1126 = vcmask 261126
        %1127 = vst.msk [vmem:[#allocation2] sm:$0xc0] %vm1126, %v1124
        %v1128 = vrot.slane %v1121, 6
        %1129 = vrot.lane.b32.xlu0 %v1128, 32
        %v1130 = vpop.permute.xlu0 %1129
        %v1131 = vsel %vm690, %v1130, 0
        %1133 = vmatprep.subr.mxu0 0.0
        %1134 = vmatpush1.msra.mxu0 0.0
        %1135 = vmatprep.subr.mxu0 0.0
        %1136 = vmatpush1.msra.mxu0 0.0
        %1137 = vmatprep.subr.mxu0 0.0
        %1138 = vmatpush1.msra.mxu0 0.0
        %1139 = vmatprep.subr.mxu0 0.0
        %1140 = vmatpush1.msra.mxu0 0.0
        %1141 = vmatprep.subr.mxu0 0.0
        %1142 = vmatpush1.msra.mxu0 0.0
        %1143 = vmatprep.subr.mxu0 0.0
        %1144 = vmatpush1.msra.mxu0 0.0
        %1145 = vmatprep.subr.mxu0 0.0
        %1146 = vmatpush1.msra.mxu0 0.0
        %1147 = vmatprep.subr.mxu0 0.0
        %1148 = vmatpush1.msra.mxu0 0.0
        %1149 = vmatprep.subr.mxu0 0.0
        %1150 = vmatpush1.msra.mxu0 0.0
        %1151 = vmatprep.subr.mxu0 0.0
        %1152 = vmatpush1.msra.mxu0 0.0
        %1153 = vmatprep.subr.mxu0 0.0
        %1154 = vmatpush1.msra.mxu0 0.0
        %1155 = vmatprep.subr.mxu0 0.0
        %1156 = vmatpush1.msra.mxu0 0.0
        %1157 = vmatprep.subr.mxu0 0.0
        %1158 = vmatpush1.msra.mxu0 %v601
        %1159 = vmatprep.subr.mxu0 0.0
        %1160 = vmatpush1.msra.mxu0 %v600
        %1161 = vmatprep.subr.mxu0 0.0
        %1162 = vmatpush1.msra.mxu0 %v599
        %1163 = vmatprep.subr.mxu0 0.0
        %1164 = vmatpush1.msra.mxu0 %v598
        %1165 = vmatprep.subr.mxu0 0.0
        %1166 = vmatpush2.msra.mxu0 0.0
        %1167 = vmatprep.subr.mxu0 0.0
        %1168 = vmatpush2.msra.mxu0 0.0
        %1169 = vmatprep.subr.mxu0 0.0
        %1170 = vmatpush2.msra.mxu0 0.0
        %1171 = vmatprep.subr.mxu0 0.0
        %1172 = vmatpush2.msra.mxu0 0.0
        %1173 = vmatprep.subr.mxu0 0.0
        %1174 = vmatpush2.msra.mxu0 0.0
        %1175 = vmatprep.subr.mxu0 0.0
        %1176 = vmatpush2.msra.mxu0 0.0
        %1177 = vmatprep.subr.mxu0 0.0
        %1178 = vmatpush2.msra.mxu0 0.0
        %1179 = vmatprep.subr.mxu0 0.0
        %1180 = vmatpush2.msra.mxu0 0.0
        %1181 = vmatprep.subr.mxu0 0.0
        %1182 = vmatpush2.msra.mxu0 0.0
        %1183 = vmatprep.subr.mxu0 0.0
        %1184 = vmatpush2.msra.mxu0 0.0
        %1185 = vmatprep.subr.mxu0 0.0
        %1186 = vmatpush2.msra.mxu0 0.0
        %1187 = vmatprep.subr.mxu0 0.0
        %1188 = vmatpush2.msra.mxu0 0.0
        %1189 = vmatprep.subr.mxu0 0.0
        %1190 = vmatpush2.msra.mxu0 0.0
        %1191 = vmatprep.subr.mxu0 0.0
        %1192 = vmatpush2.msra.mxu0 0.0
        %1193 = vmatprep.subr.mxu0 0.0
        %1194 = vmatpush2.msra.mxu0 0.0
        %1195 = vmatprep.subr.mxu0 0.0
        %1196 = vmatpush2.msra.mxu0 0.0
        %1197 = vmatprep.mubr.f32.mxu0 0.0
        %1198 = vmatmul.mubr.f32.gmra.mxu0 %v1131
        %v1199 = vpop.f32.mrf.mxu0
        %v1200 = vadd.f32 0.0, %v1199
        %v1201 = vpop.f32.mrf.mxu0
        %1202 = vdwg.mxu0
        %v1203 = vadd.f32 %v687, %v1200
        %v1204 = vxor.u32 %v1203, 2147483648
        %v1205 = vmul.f32 %v1204, 1.442695
        %v1206 = vpow.pop %v1205
        %v1207 = vadd.f32 %v1206, 1.0
        %v1208 = vrcp.pop %v1207
        %v1209 = vmul.f32 1.0, %v1208
        %v1210 = vtanh.pop %v1203
        %v1212 = vrot.slane %v1115, 6
        %v1214 = vmul.f32 %v1209, %v1212
        %1216 = vrot.lane.b32.xlu0 %v1210, 64
        %v1217 = vpop.permute.xlu0 %1216
        %v1219 = vmul.f32 %v1209, %v1217
        %1221 = vrot.lane.b32.xlu0 %v1219, 32
        %v1222 = vpop.permute.xlu0 %1221
        %v1224 = vadd.f32 %v1214, %v1222
        %v1225 = vtanh.pop %v1224
        %1227 = vrot.lane.b32.xlu0 %v1225, 64
        %v1228 = vpop.permute.xlu0 %1227
        %v1230 = vmul.f32 %v1209, %v1228
        %1232 = vrot.lane.b32.xlu0 %v1230, 32
        %v1233 = vpop.permute.xlu0 %1232
        %1235 = vst.msk [vmem:[#allocation2 + $0x8] sm:$0x3] %vm793, %v1233
        %v1236 = vsel %vm690, %v1233, 0
        %1238 = vmatprep.subr.mxu0 0.0
        %1239 = vmatpush1.msra.mxu0 0.0
        %1240 = vmatprep.subr.mxu0 0.0
        %1241 = vmatpush1.msra.mxu0 0.0
        %1242 = vmatprep.subr.mxu0 0.0
        %1243 = vmatpush1.msra.mxu0 0.0
        %1244 = vmatprep.subr.mxu0 0.0
        %1245 = vmatpush1.msra.mxu0 0.0
        %1246 = vmatprep.subr.mxu0 0.0
        %1247 = vmatpush1.msra.mxu0 0.0
        %1248 = vmatprep.subr.mxu0 0.0
        %1249 = vmatpush1.msra.mxu0 0.0
        %1250 = vmatprep.subr.mxu0 0.0
        %1251 = vmatpush1.msra.mxu0 0.0
        %1252 = vmatprep.subr.mxu0 0.0
        %1253 = vmatpush1.msra.mxu0 0.0
        %1254 = vmatprep.subr.mxu0 0.0
        %1255 = vmatpush1.msra.mxu0 0.0
        %1256 = vmatprep.subr.mxu0 0.0
        %1257 = vmatpush1.msra.mxu0 0.0
        %1258 = vmatprep.subr.mxu0 0.0
        %1259 = vmatpush1.msra.mxu0 0.0
        %1260 = vmatprep.subr.mxu0 0.0
        %1261 = vmatpush1.msra.mxu0 0.0
        %1262 = vmatprep.subr.mxu0 0.0
        %1263 = vmatpush1.msra.mxu0 %v601
        %1264 = vmatprep.subr.mxu0 0.0
        %1265 = vmatpush1.msra.mxu0 %v600
        %1266 = vmatprep.subr.mxu0 0.0
        %1267 = vmatpush1.msra.mxu0 %v599
        %1268 = vmatprep.subr.mxu0 0.0
        %1269 = vmatpush1.msra.mxu0 %v598
        %1270 = vmatprep.subr.mxu0 0.0
        %1271 = vmatpush2.msra.mxu0 0.0
        %1272 = vmatprep.subr.mxu0 0.0
        %1273 = vmatpush2.msra.mxu0 0.0
        %1274 = vmatprep.subr.mxu0 0.0
        %1275 = vmatpush2.msra.mxu0 0.0
        %1276 = vmatprep.subr.mxu0 0.0
        %1277 = vmatpush2.msra.mxu0 0.0
        %1278 = vmatprep.subr.mxu0 0.0
        %1279 = vmatpush2.msra.mxu0 0.0
        %1280 = vmatprep.subr.mxu0 0.0
        %1281 = vmatpush2.msra.mxu0 0.0
        %1282 = vmatprep.subr.mxu0 0.0
        %1283 = vmatpush2.msra.mxu0 0.0
        %1284 = vmatprep.subr.mxu0 0.0
        %1285 = vmatpush2.msra.mxu0 0.0
        %1286 = vmatprep.subr.mxu0 0.0
        %1287 = vmatpush2.msra.mxu0 0.0
        %1288 = vmatprep.subr.mxu0 0.0
        %1289 = vmatpush2.msra.mxu0 0.0
        %1290 = vmatprep.subr.mxu0 0.0
        %1291 = vmatpush2.msra.mxu0 0.0
        %1292 = vmatprep.subr.mxu0 0.0
        %1293 = vmatpush2.msra.mxu0 0.0
        %1294 = vmatprep.subr.mxu0 0.0
        %1295 = vmatpush2.msra.mxu0 0.0
        %1296 = vmatprep.subr.mxu0 0.0
        %1297 = vmatpush2.msra.mxu0 0.0
        %1298 = vmatprep.subr.mxu0 0.0
        %1299 = vmatpush2.msra.mxu0 0.0
        %1300 = vmatprep.subr.mxu0 0.0
        %1301 = vmatpush2.msra.mxu0 0.0
        %1302 = vmatprep.mubr.f32.mxu0 0.0
        %1303 = vmatmul.mubr.f32.gmra.mxu0 %v1236
        %v1304 = vpop.f32.mrf.mxu0
        %v1305 = vadd.f32 0.0, %v1304
        %v1306 = vpop.f32.mrf.mxu0
        %1307 = vdwg.mxu0
        %v1309 = vrot.slane %v1305, 6
        %v1311 = vadd.f32 %v687, %v1309
        %v1312 = vxor.u32 %v1311, 2147483648
        %v1313 = vmul.f32 %v1312, 1.442695
        %v1314 = vpow.pop %v1313
        %v1315 = vadd.f32 %v1314, 1.0
        %v1316 = vrcp.pop %v1315
        %v1317 = vmul.f32 1.0, %v1316
        %v1318 = vtanh.pop %v1311
        %v1320 = vrot.slane %v1224, 6
        %v1322 = vmul.f32 %v1317, %v1320
        %1324 = vrot.lane.b32.xlu0 %v1318, 64
        %v1325 = vpop.permute.xlu0 %1324
        %v1327 = vmul.f32 %v1317, %v1325
        %1329 = vrot.lane.b32.xlu0 %v1327, 32
        %v1330 = vpop.permute.xlu0 %1329
        %v1332 = vadd.f32 %v1322, %v1330
        %v1333 = vtanh.pop %v1332
        %1335 = vrot.lane.b32.xlu0 %v1333, 64
        %v1336 = vpop.permute.xlu0 %1335
        %v1338 = vmul.f32 %v1317, %v1336
        %1340 = vrot.lane.b32.xlu0 %v1338, 32
        %v1341 = vpop.permute.xlu0 %1340
        %1343 = vst.msk [vmem:[#allocation2 + $0x8] sm:$0xc] %vm902, %v1341
        %v1344 = vrot.slane %v1338, 2
        %1345 = vrot.lane.b32.xlu0 %v1344, 32
        %v1346 = vpop.permute.xlu0 %1345
        %v1347 = vsel %vm690, %v1346, 0
        %1349 = vmatprep.subr.mxu0 0.0
        %1350 = vmatpush1.msra.mxu0 0.0
        %1351 = vmatprep.subr.mxu0 0.0
        %1352 = vmatpush1.msra.mxu0 0.0
        %1353 = vmatprep.subr.mxu0 0.0
        %1354 = vmatpush1.msra.mxu0 0.0
        %1355 = vmatprep.subr.mxu0 0.0
        %1356 = vmatpush1.msra.mxu0 0.0
        %1357 = vmatprep.subr.mxu0 0.0
        %1358 = vmatpush1.msra.mxu0 0.0
        %1359 = vmatprep.subr.mxu0 0.0
        %1360 = vmatpush1.msra.mxu0 0.0
        %1361 = vmatprep.subr.mxu0 0.0
        %1362 = vmatpush1.msra.mxu0 0.0
        %1363 = vmatprep.subr.mxu0 0.0
        %1364 = vmatpush1.msra.mxu0 0.0
        %1365 = vmatprep.subr.mxu0 0.0
        %1366 = vmatpush1.msra.mxu0 0.0
        %1367 = vmatprep.subr.mxu0 0.0
        %1368 = vmatpush1.msra.mxu0 0.0
        %1369 = vmatprep.subr.mxu0 0.0
        %1370 = vmatpush1.msra.mxu0 0.0
        %1371 = vmatprep.subr.mxu0 0.0
        %1372 = vmatpush1.msra.mxu0 0.0
        %1373 = vmatprep.subr.mxu0 0.0
        %1374 = vmatpush1.msra.mxu0 %v601
        %1375 = vmatprep.subr.mxu0 0.0
        %1376 = vmatpush1.msra.mxu0 %v600
        %1377 = vmatprep.subr.mxu0 0.0
        %1378 = vmatpush1.msra.mxu0 %v599
        %1379 = vmatprep.subr.mxu0 0.0
        %1380 = vmatpush1.msra.mxu0 %v598
        %1381 = vmatprep.subr.mxu0 0.0
        %1382 = vmatpush2.msra.mxu0 0.0
        %1383 = vmatprep.subr.mxu0 0.0
        %1384 = vmatpush2.msra.mxu0 0.0
        %1385 = vmatprep.subr.mxu0 0.0
        %1386 = vmatpush2.msra.mxu0 0.0
        %1387 = vmatprep.subr.mxu0 0.0
        %1388 = vmatpush2.msra.mxu0 0.0
        %1389 = vmatprep.subr.mxu0 0.0
        %1390 = vmatpush2.msra.mxu0 0.0
        %1391 = vmatprep.subr.mxu0 0.0
        %1392 = vmatpush2.msra.mxu0 0.0
        %1393 = vmatprep.subr.mxu0 0.0
        %1394 = vmatpush2.msra.mxu0 0.0
        %1395 = vmatprep.subr.mxu0 0.0
        %1396 = vmatpush2.msra.mxu0 0.0
        %1397 = vmatprep.subr.mxu0 0.0
        %1398 = vmatpush2.msra.mxu0 0.0
        %1399 = vmatprep.subr.mxu0 0.0
        %1400 = vmatpush2.msra.mxu0 0.0
        %1401 = vmatprep.subr.mxu0 0.0
        %1402 = vmatpush2.msra.mxu0 0.0
        %1403 = vmatprep.subr.mxu0 0.0
        %1404 = vmatpush2.msra.mxu0 0.0
        %1405 = vmatprep.subr.mxu0 0.0
        %1406 = vmatpush2.msra.mxu0 0.0
        %1407 = vmatprep.subr.mxu0 0.0
        %1408 = vmatpush2.msra.mxu0 0.0
        %1409 = vmatprep.subr.mxu0 0.0
        %1410 = vmatpush2.msra.mxu0 0.0
        %1411 = vmatprep.subr.mxu0 0.0
        %1412 = vmatpush2.msra.mxu0 0.0
        %1413 = vmatprep.mubr.f32.mxu0 0.0
        %1414 = vmatmul.mubr.f32.gmra.mxu0 %v1347
        %v1415 = vpop.f32.mrf.mxu0
        %v1416 = vadd.f32 0.0, %v1415
        %v1417 = vpop.f32.mrf.mxu0
        %1418 = vdwg.mxu0
        %v1420 = vrot.slane %v1416, 4
        %v1422 = vadd.f32 %v687, %v1420
        %v1423 = vxor.u32 %v1422, 2147483648
        %v1424 = vmul.f32 %v1423, 1.442695
        %v1425 = vpow.pop %v1424
        %v1426 = vadd.f32 %v1425, 1.0
        %v1427 = vrcp.pop %v1426
        %v1428 = vmul.f32 1.0, %v1427
        %v1429 = vtanh.pop %v1422
        %v1431 = vrot.slane %v1332, 6
        %v1433 = vmul.f32 %v1428, %v1431
        %1435 = vrot.lane.b32.xlu0 %v1429, 64
        %v1436 = vpop.permute.xlu0 %1435
        %v1438 = vmul.f32 %v1428, %v1436
        %1440 = vrot.lane.b32.xlu0 %v1438, 32
        %v1441 = vpop.permute.xlu0 %1440
        %v1443 = vadd.f32 %v1433, %v1441
        %v1444 = vtanh.pop %v1443
        %1446 = vrot.lane.b32.xlu0 %v1444, 64
        %v1447 = vpop.permute.xlu0 %1446
        %v1449 = vmul.f32 %v1428, %v1447
        %1451 = vrot.lane.b32.xlu0 %v1449, 32
        %v1452 = vpop.permute.xlu0 %1451
        %1454 = vst.msk [vmem:[#allocation2 + $0x8] sm:$0x30] %vm1014, %v1452
        %v1455 = vrot.slane %v1449, 4
        %1456 = vrot.lane.b32.xlu0 %v1455, 32
        %v1457 = vpop.permute.xlu0 %1456
        %v1458 = vsel %vm690, %v1457, 0
        %1460 = vmatprep.subr.mxu0 0.0
        %1461 = vmatpush1.msra.mxu0 0.0
        %1462 = vmatprep.subr.mxu0 0.0
        %1463 = vmatpush1.msra.mxu0 0.0
        %1464 = vmatprep.subr.mxu0 0.0
        %1465 = vmatpush1.msra.mxu0 0.0
        %1466 = vmatprep.subr.mxu0 0.0
        %1467 = vmatpush1.msra.mxu0 0.0
        %1468 = vmatprep.subr.mxu0 0.0
        %1469 = vmatpush1.msra.mxu0 0.0
        %1470 = vmatprep.subr.mxu0 0.0
        %1471 = vmatpush1.msra.mxu0 0.0
        %1472 = vmatprep.subr.mxu0 0.0
        %1473 = vmatpush1.msra.mxu0 0.0
        %1474 = vmatprep.subr.mxu0 0.0
        %1475 = vmatpush1.msra.mxu0 0.0
        %1476 = vmatprep.subr.mxu0 0.0
        %1477 = vmatpush1.msra.mxu0 0.0
        %1478 = vmatprep.subr.mxu0 0.0
        %1479 = vmatpush1.msra.mxu0 0.0
        %1480 = vmatprep.subr.mxu0 0.0
        %1481 = vmatpush1.msra.mxu0 0.0
        %1482 = vmatprep.subr.mxu0 0.0
        %1483 = vmatpush1.msra.mxu0 0.0
        %1484 = vmatprep.subr.mxu0 0.0
        %1485 = vmatpush1.msra.mxu0 %v601
        %1486 = vmatprep.subr.mxu0 0.0
        %1487 = vmatpush1.msra.mxu0 %v600
        %1488 = vmatprep.subr.mxu0 0.0
        %1489 = vmatpush1.msra.mxu0 %v599
        %1490 = vmatprep.subr.mxu0 0.0
        %1491 = vmatpush1.msra.mxu0 %v598
        %1492 = vmatprep.subr.mxu0 0.0
        %1493 = vmatpush2.msra.mxu0 0.0
        %1494 = vmatprep.subr.mxu0 0.0
        %1495 = vmatpush2.msra.mxu0 0.0
        %1496 = vmatprep.subr.mxu0 0.0
        %1497 = vmatpush2.msra.mxu0 0.0
        %1498 = vmatprep.subr.mxu0 0.0
        %1499 = vmatpush2.msra.mxu0 0.0
        %1500 = vmatprep.subr.mxu0 0.0
        %1501 = vmatpush2.msra.mxu0 0.0
        %1502 = vmatprep.subr.mxu0 0.0
        %1503 = vmatpush2.msra.mxu0 0.0
        %1504 = vmatprep.subr.mxu0 0.0
        %1505 = vmatpush2.msra.mxu0 0.0
        %1506 = vmatprep.subr.mxu0 0.0
        %1507 = vmatpush2.msra.mxu0 0.0
        %1508 = vmatprep.subr.mxu0 0.0
        %1509 = vmatpush2.msra.mxu0 0.0
        %1510 = vmatprep.subr.mxu0 0.0
        %1511 = vmatpush2.msra.mxu0 0.0
        %1512 = vmatprep.subr.mxu0 0.0
        %1513 = vmatpush2.msra.mxu0 0.0
        %1514 = vmatprep.subr.mxu0 0.0
        %1515 = vmatpush2.msra.mxu0 0.0
        %1516 = vmatprep.subr.mxu0 0.0
        %1517 = vmatpush2.msra.mxu0 0.0
        %1518 = vmatprep.subr.mxu0 0.0
        %1519 = vmatpush2.msra.mxu0 0.0
        %1520 = vmatprep.subr.mxu0 0.0
        %1521 = vmatpush2.msra.mxu0 0.0
        %1522 = vmatprep.subr.mxu0 0.0
        %1523 = vmatpush2.msra.mxu0 0.0
        %1524 = vmatprep.mubr.f32.mxu0 0.0
        %1525 = vmatmul.mubr.f32.gmra.mxu0 %v1458
        %v1526 = vpop.f32.mrf.mxu0
        %v1527 = vadd.f32 0.0, %v1526
        %v1528 = vpop.f32.mrf.mxu0
        %1529 = vdwg.mxu0
        %v1531 = vrot.slane %v1527, 2
        %v1533 = vadd.f32 %v687, %v1531
        %v1534 = vxor.u32 %v1533, 2147483648
        %v1535 = vmul.f32 %v1534, 1.442695
        %v1536 = vpow.pop %v1535
        %v1537 = vadd.f32 %v1536, 1.0
        %v1538 = vrcp.pop %v1537
        %v1539 = vmul.f32 1.0, %v1538
        %v1540 = vtanh.pop %v1533
        %v1542 = vrot.slane %v1443, 6
        %v1544 = vmul.f32 %v1539, %v1542
        %1546 = vrot.lane.b32.xlu0 %v1540, 64
        %v1547 = vpop.permute.xlu0 %1546
        %v1549 = vmul.f32 %v1539, %v1547
        %1551 = vrot.lane.b32.xlu0 %v1549, 32
        %v1552 = vpop.permute.xlu0 %1551
        %v1554 = vadd.f32 %v1544, %v1552
        %v1555 = vtanh.pop %v1554
        %1557 = vrot.lane.b32.xlu0 %v1555, 64
        %v1558 = vpop.permute.xlu0 %1557
        %v1560 = vmul.f32 %v1539, %v1558
        %1562 = vrot.lane.b32.xlu0 %v1560, 32
        %v1563 = vpop.permute.xlu0 %1562
        %1565 = vst.msk [vmem:[#allocation2 + $0x8] sm:$0xc0] %vm1126, %v1563
        %v1566 = vld [vmem:[#allocation2] sm:$0xff]
        %v1567 = vld [vmem:[#allocation2 + $0x8] sm:$0xff]
        %v1568 = vld [vmem:[%s494] sm:$0xff]
        %v1569 = vld [vmem:[%s494 + $0x8] sm:$0xff]
        %v1570 = vld [vmem:[%s494 + $0x10] sm:$0xff]
        %v1571 = vld [vmem:[%s494 + $0x18] sm:$0xff]
        %v1572 = vld [vmem:[%s416] sm:$0xff]
        %v1573 = vld [vmem:[%s416 + $0x8] sm:$0xff]
        %v1574 = vld [vmem:[%s416 + $0x10] sm:$0xff]
        %v1575 = vld [vmem:[%s416 + $0x18] sm:$0xff]
        %v1576 = vld [vmem:[%s497] sm:$0x1]
        %v1578 = vlaneseq
        %v1579 = vshrl.u32 %v1578, 7
        %v1580 = vsub.s32 0, %v1579
        %v1581 = vrot.slane %v1576, %v1580
        %v1584 = vsel %vm690, %v1566, 0
        %v1587 = vsel %vm690, %v1567, 0
        %1589 = vmatprep.subr.mxu0 0.0
        %1590 = vmatpush1.msra.mxu0 0.0
        %1591 = vmatprep.subr.mxu0 0.0
        %1592 = vmatpush1.msra.mxu0 0.0
        %1593 = vmatprep.subr.mxu0 0.0
        %1594 = vmatpush1.msra.mxu0 0.0
        %1595 = vmatprep.subr.mxu0 0.0
        %1596 = vmatpush1.msra.mxu0 0.0
        %1597 = vmatprep.subr.mxu0 0.0
        %1598 = vmatpush1.msra.mxu0 0.0
        %1599 = vmatprep.subr.mxu0 0.0
        %1600 = vmatpush1.msra.mxu0 0.0
        %1601 = vmatprep.subr.mxu0 0.0
        %1602 = vmatpush1.msra.mxu0 0.0
        %1603 = vmatprep.subr.mxu0 0.0
        %1604 = vmatpush1.msra.mxu0 0.0
        %1605 = vmatprep.subr.mxu0 0.0
        %1606 = vmatpush1.msra.mxu0 0.0
        %1607 = vmatprep.subr.mxu0 0.0
        %1608 = vmatpush1.msra.mxu0 0.0
        %1609 = vmatprep.subr.mxu0 0.0
        %1610 = vmatpush1.msra.mxu0 0.0
        %1611 = vmatprep.subr.mxu0 0.0
        %1612 = vmatpush1.msra.mxu0 0.0
        %1613 = vmatprep.subr.mxu0 0.0
        %1614 = vmatpush1.msra.mxu0 %v1571
        %1615 = vmatprep.subr.mxu0 0.0
        %1616 = vmatpush1.msra.mxu0 %v1570
        %1617 = vmatprep.subr.mxu0 0.0
        %1618 = vmatpush1.msra.mxu0 %v1569
        %1619 = vmatprep.subr.mxu0 0.0
        %1620 = vmatpush1.msra.mxu0 %v1568
        %1621 = vmatprep.subr.mxu0 0.0
        %1622 = vmatpush2.msra.mxu0 0.0
        %1623 = vmatprep.subr.mxu0 0.0
        %1624 = vmatpush2.msra.mxu0 0.0
        %1625 = vmatprep.subr.mxu0 0.0
        %1626 = vmatpush2.msra.mxu0 0.0
        %1627 = vmatprep.subr.mxu0 0.0
        %1628 = vmatpush2.msra.mxu0 0.0
        %1629 = vmatprep.subr.mxu0 0.0
        %1630 = vmatpush2.msra.mxu0 0.0
        %1631 = vmatprep.subr.mxu0 0.0
        %1632 = vmatpush2.msra.mxu0 0.0
        %1633 = vmatprep.subr.mxu0 0.0
        %1634 = vmatpush2.msra.mxu0 0.0
        %1635 = vmatprep.subr.mxu0 0.0
        %1636 = vmatpush2.msra.mxu0 0.0
        %1637 = vmatprep.subr.mxu0 0.0
        %1638 = vmatpush2.msra.mxu0 0.0
        %1639 = vmatprep.subr.mxu0 0.0
        %1640 = vmatpush2.msra.mxu0 0.0
        %1641 = vmatprep.subr.mxu0 0.0
        %1642 = vmatpush2.msra.mxu0 0.0
        %1643 = vmatprep.subr.mxu0 0.0
        %1644 = vmatpush2.msra.mxu0 0.0
        %1645 = vmatprep.subr.mxu0 0.0
        %1646 = vmatpush2.msra.mxu0 0.0
        %1647 = vmatprep.subr.mxu0 0.0
        %1648 = vmatpush2.msra.mxu0 0.0
        %1649 = vmatprep.subr.mxu0 0.0
        %1650 = vmatpush2.msra.mxu0 0.0
        %1651 = vmatprep.subr.mxu0 0.0
        %1652 = vmatpush2.msra.mxu0 0.0
        %1653 = vmatprep.mubr.f32.mxu0 0.0
        %1654 = vmatmul.mubr.f32.gmra.mxu0 %v1584
        %v1655 = vpop.f32.mrf.mxu0
        %v1656 = vadd.f32 %v1581, %v1655
        %v1657 = vpop.f32.mrf.mxu0
        %1658 = vmatprep.mubr.f32.mxu0 0.0
        %1659 = vmatmul.mubr.f32.gmra.mxu0 %v1587
        %v1660 = vpop.f32.mrf.mxu0
        %v1661 = vadd.f32 %v1581, %v1660
        %v1662 = vpop.f32.mrf.mxu0
        %1663 = vdwg.mxu0
        %1664 = vmatprep.subr.mxu0 0.0
        %1665 = vmatpush1.msra.mxu0 0.0
        %1666 = vmatprep.subr.mxu0 0.0
        %1667 = vmatpush1.msra.mxu0 0.0
        %1668 = vmatprep.subr.mxu0 0.0
        %1669 = vmatpush1.msra.mxu0 0.0
        %1670 = vmatprep.subr.mxu0 0.0
        %1671 = vmatpush1.msra.mxu0 0.0
        %1672 = vmatprep.subr.mxu0 0.0
        %1673 = vmatpush1.msra.mxu0 0.0
        %1674 = vmatprep.subr.mxu0 0.0
        %1675 = vmatpush1.msra.mxu0 0.0
        %1676 = vmatprep.subr.mxu0 0.0
        %1677 = vmatpush1.msra.mxu0 0.0
        %1678 = vmatprep.subr.mxu0 0.0
        %1679 = vmatpush1.msra.mxu0 0.0
        %1680 = vmatprep.subr.mxu0 0.0
        %1681 = vmatpush1.msra.mxu0 0.0
        %1682 = vmatprep.subr.mxu0 0.0
        %1683 = vmatpush1.msra.mxu0 0.0
        %1684 = vmatprep.subr.mxu0 0.0
        %1685 = vmatpush1.msra.mxu0 0.0
        %1686 = vmatprep.subr.mxu0 0.0
        %1687 = vmatpush1.msra.mxu0 0.0
        %1688 = vmatprep.subr.mxu0 0.0
        %1689 = vmatpush1.msra.mxu0 %v1575
        %1690 = vmatprep.subr.mxu0 0.0
        %1691 = vmatpush1.msra.mxu0 %v1574
        %1692 = vmatprep.subr.mxu0 0.0
        %1693 = vmatpush1.msra.mxu0 %v1573
        %1694 = vmatprep.subr.mxu0 0.0
        %1695 = vmatpush1.msra.mxu0 %v1572
        %1696 = vmatprep.subr.mxu0 0.0
        %1697 = vmatpush2.msra.mxu0 0.0
        %1698 = vmatprep.subr.mxu0 0.0
        %1699 = vmatpush2.msra.mxu0 0.0
        %1700 = vmatprep.subr.mxu0 0.0
        %1701 = vmatpush2.msra.mxu0 0.0
        %1702 = vmatprep.subr.mxu0 0.0
        %1703 = vmatpush2.msra.mxu0 0.0
        %1704 = vmatprep.subr.mxu0 0.0
        %1705 = vmatpush2.msra.mxu0 0.0
        %1706 = vmatprep.subr.mxu0 0.0
        %1707 = vmatpush2.msra.mxu0 0.0
        %1708 = vmatprep.subr.mxu0 0.0
        %1709 = vmatpush2.msra.mxu0 0.0
        %1710 = vmatprep.subr.mxu0 0.0
        %1711 = vmatpush2.msra.mxu0 0.0
        %1712 = vmatprep.subr.mxu0 0.0
        %1713 = vmatpush2.msra.mxu0 0.0
        %1714 = vmatprep.subr.mxu0 0.0
        %1715 = vmatpush2.msra.mxu0 0.0
        %1716 = vmatprep.subr.mxu0 0.0
        %1717 = vmatpush2.msra.mxu0 0.0
        %1718 = vmatprep.subr.mxu0 0.0
        %1719 = vmatpush2.msra.mxu0 0.0
        %1720 = vmatprep.subr.mxu0 0.0
        %1721 = vmatpush2.msra.mxu0 0.0
        %1722 = vmatprep.subr.mxu0 0.0
        %1723 = vmatpush2.msra.mxu0 0.0
        %1724 = vmatprep.subr.mxu0 0.0
        %1725 = vmatpush2.msra.mxu0 0.0
        %1726 = vmatprep.subr.mxu0 0.0
        %1727 = vmatpush2.msra.mxu0 0.0
        %1728 = vmatprep.mubr.f32.mxu0 0.0
        %1729 = vmatmul.mubr.f32.gmra.mxu0 %v692
        %v1730 = vpop.f32.mrf.mxu0
        %v1731 = vadd.f32 0.0, %v1730
        %v1732 = vpop.f32.mrf.mxu0
        %1733 = vdwg.mxu0
        %v1734 = vadd.f32 %v1656, %v1731
        %v1735 = vxor.u32 %v1734, 2147483648
        %v1736 = vmul.f32 %v1735, 1.442695
        %v1737 = vpow.pop %v1736
        %v1738 = vadd.f32 %v1737, 1.0
        %v1739 = vrcp.pop %v1738
        %v1740 = vmul.f32 1.0, %v1739
        %v1741 = vtanh.pop %v1734
        %v1742 = vmul.f32 %v1740, 0.0
        %1744 = vrot.lane.b32.xlu0 %v1741, 64
        %v1745 = vpop.permute.xlu0 %1744
        %v1747 = vmul.f32 %v1740, %v1745
        %1749 = vrot.lane.b32.xlu0 %v1747, 32
        %v1750 = vpop.permute.xlu0 %1749
        %v1752 = vadd.f32 %v1742, %v1750
        %v1753 = vtanh.pop %v1752
        %1755 = vrot.lane.b32.xlu0 %v1753, 64
        %v1756 = vpop.permute.xlu0 %1755
        %v1758 = vmul.f32 %v1740, %v1756
        %1760 = vrot.lane.b32.xlu0 %v1758, 32
        %v1761 = vpop.permute.xlu0 %1760
        %1763 = vst.msk [vmem:[#allocation2] sm:$0x3] %vm793, %v1761
        %v1764 = vsel %vm690, %v1761, 0
        %1766 = vmatprep.subr.mxu0 0.0
        %1767 = vmatpush1.msra.mxu0 0.0
        %1768 = vmatprep.subr.mxu0 0.0
        %1769 = vmatpush1.msra.mxu0 0.0
        %1770 = vmatprep.subr.mxu0 0.0
        %1771 = vmatpush1.msra.mxu0 0.0
        %1772 = vmatprep.subr.mxu0 0.0
        %1773 = vmatpush1.msra.mxu0 0.0
        %1774 = vmatprep.subr.mxu0 0.0
        %1775 = vmatpush1.msra.mxu0 0.0
        %1776 = vmatprep.subr.mxu0 0.0
        %1777 = vmatpush1.msra.mxu0 0.0
        %1778 = vmatprep.subr.mxu0 0.0
        %1779 = vmatpush1.msra.mxu0 0.0
        %1780 = vmatprep.subr.mxu0 0.0
        %1781 = vmatpush1.msra.mxu0 0.0
        %1782 = vmatprep.subr.mxu0 0.0
        %1783 = vmatpush1.msra.mxu0 0.0
        %1784 = vmatprep.subr.mxu0 0.0
        %1785 = vmatpush1.msra.mxu0 0.0
        %1786 = vmatprep.subr.mxu0 0.0
        %1787 = vmatpush1.msra.mxu0 0.0
        %1788 = vmatprep.subr.mxu0 0.0
        %1789 = vmatpush1.msra.mxu0 0.0
        %1790 = vmatprep.subr.mxu0 0.0
        %1791 = vmatpush1.msra.mxu0 %v1575
        %1792 = vmatprep.subr.mxu0 0.0
        %1793 = vmatpush1.msra.mxu0 %v1574
        %1794 = vmatprep.subr.mxu0 0.0
        %1795 = vmatpush1.msra.mxu0 %v1573
        %1796 = vmatprep.subr.mxu0 0.0
        %1797 = vmatpush1.msra.mxu0 %v1572
        %1798 = vmatprep.subr.mxu0 0.0
        %1799 = vmatpush2.msra.mxu0 0.0
        %1800 = vmatprep.subr.mxu0 0.0
        %1801 = vmatpush2.msra.mxu0 0.0
        %1802 = vmatprep.subr.mxu0 0.0
        %1803 = vmatpush2.msra.mxu0 0.0
        %1804 = vmatprep.subr.mxu0 0.0
        %1805 = vmatpush2.msra.mxu0 0.0
        %1806 = vmatprep.subr.mxu0 0.0
        %1807 = vmatpush2.msra.mxu0 0.0
        %1808 = vmatprep.subr.mxu0 0.0
        %1809 = vmatpush2.msra.mxu0 0.0
        %1810 = vmatprep.subr.mxu0 0.0
        %1811 = vmatpush2.msra.mxu0 0.0
        %1812 = vmatprep.subr.mxu0 0.0
        %1813 = vmatpush2.msra.mxu0 0.0
        %1814 = vmatprep.subr.mxu0 0.0
        %1815 = vmatpush2.msra.mxu0 0.0
        %1816 = vmatprep.subr.mxu0 0.0
        %1817 = vmatpush2.msra.mxu0 0.0
        %1818 = vmatprep.subr.mxu0 0.0
        %1819 = vmatpush2.msra.mxu0 0.0
        %1820 = vmatprep.subr.mxu0 0.0
        %1821 = vmatpush2.msra.mxu0 0.0
        %1822 = vmatprep.subr.mxu0 0.0
        %1823 = vmatpush2.msra.mxu0 0.0
        %1824 = vmatprep.subr.mxu0 0.0
        %1825 = vmatpush2.msra.mxu0 0.0
        %1826 = vmatprep.subr.mxu0 0.0
        %1827 = vmatpush2.msra.mxu0 0.0
        %1828 = vmatprep.subr.mxu0 0.0
        %1829 = vmatpush2.msra.mxu0 0.0
        %1830 = vmatprep.mubr.f32.mxu0 0.0
        %1831 = vmatmul.mubr.f32.gmra.mxu0 %v1764
        %v1832 = vpop.f32.mrf.mxu0
        %v1833 = vadd.f32 0.0, %v1832
        %v1834 = vpop.f32.mrf.mxu0
        %1835 = vdwg.mxu0
        %v1837 = vrot.slane %v1833, 6
        %v1839 = vadd.f32 %v1656, %v1837
        %v1840 = vxor.u32 %v1839, 2147483648
        %v1841 = vmul.f32 %v1840, 1.442695
        %v1842 = vpow.pop %v1841
        %v1843 = vadd.f32 %v1842, 1.0
        %v1844 = vrcp.pop %v1843
        %v1845 = vmul.f32 1.0, %v1844
        %v1846 = vtanh.pop %v1839
        %v1848 = vrot.slane %v1752, 6
        %v1850 = vmul.f32 %v1845, %v1848
        %1852 = vrot.lane.b32.xlu0 %v1846, 64
        %v1853 = vpop.permute.xlu0 %1852
        %v1855 = vmul.f32 %v1845, %v1853
        %1857 = vrot.lane.b32.xlu0 %v1855, 32
        %v1858 = vpop.permute.xlu0 %1857
        %v1860 = vadd.f32 %v1850, %v1858
        %v1861 = vtanh.pop %v1860
        %1863 = vrot.lane.b32.xlu0 %v1861, 64
        %v1864 = vpop.permute.xlu0 %1863
        %v1866 = vmul.f32 %v1845, %v1864
        %1868 = vrot.lane.b32.xlu0 %v1866, 32
        %v1869 = vpop.permute.xlu0 %1868
        %1871 = vst.msk [vmem:[#allocation2] sm:$0xc] %vm902, %v1869
        %v1872 = vrot.slane %v1866, 2
        %1873 = vrot.lane.b32.xlu0 %v1872, 32
        %v1874 = vpop.permute.xlu0 %1873
        %v1875 = vsel %vm690, %v1874, 0
        %1877 = vmatprep.subr.mxu0 0.0
        %1878 = vmatpush1.msra.mxu0 0.0
        %1879 = vmatprep.subr.mxu0 0.0
        %1880 = vmatpush1.msra.mxu0 0.0
        %1881 = vmatprep.subr.mxu0 0.0
        %1882 = vmatpush1.msra.mxu0 0.0
        %1883 = vmatprep.subr.mxu0 0.0
        %1884 = vmatpush1.msra.mxu0 0.0
        %1885 = vmatprep.subr.mxu0 0.0
        %1886 = vmatpush1.msra.mxu0 0.0
        %1887 = vmatprep.subr.mxu0 0.0
        %1888 = vmatpush1.msra.mxu0 0.0
        %1889 = vmatprep.subr.mxu0 0.0
        %1890 = vmatpush1.msra.mxu0 0.0
        %1891 = vmatprep.subr.mxu0 0.0
        %1892 = vmatpush1.msra.mxu0 0.0
        %1893 = vmatprep.subr.mxu0 0.0
        %1894 = vmatpush1.msra.mxu0 0.0
        %1895 = vmatprep.subr.mxu0 0.0
        %1896 = vmatpush1.msra.mxu0 0.0
        %1897 = vmatprep.subr.mxu0 0.0
        %1898 = vmatpush1.msra.mxu0 0.0
        %1899 = vmatprep.subr.mxu0 0.0
        %1900 = vmatpush1.msra.mxu0 0.0
        %1901 = vmatprep.subr.mxu0 0.0
        %1902 = vmatpush1.msra.mxu0 %v1575
        %1903 = vmatprep.subr.mxu0 0.0
        %1904 = vmatpush1.msra.mxu0 %v1574
        %1905 = vmatprep.subr.mxu0 0.0
        %1906 = vmatpush1.msra.mxu0 %v1573
        %1907 = vmatprep.subr.mxu0 0.0
        %1908 = vmatpush1.msra.mxu0 %v1572
        %1909 = vmatprep.subr.mxu0 0.0
        %1910 = vmatpush2.msra.mxu0 0.0
        %1911 = vmatprep.subr.mxu0 0.0
        %1912 = vmatpush2.msra.mxu0 0.0
        %1913 = vmatprep.subr.mxu0 0.0
        %1914 = vmatpush2.msra.mxu0 0.0
        %1915 = vmatprep.subr.mxu0 0.0
        %1916 = vmatpush2.msra.mxu0 0.0
        %1917 = vmatprep.subr.mxu0 0.0
        %1918 = vmatpush2.msra.mxu0 0.0
        %1919 = vmatprep.subr.mxu0 0.0
        %1920 = vmatpush2.msra.mxu0 0.0
        %1921 = vmatprep.subr.mxu0 0.0
        %1922 = vmatpush2.msra.mxu0 0.0
        %1923 = vmatprep.subr.mxu0 0.0
        %1924 = vmatpush2.msra.mxu0 0.0
        %1925 = vmatprep.subr.mxu0 0.0
        %1926 = vmatpush2.msra.mxu0 0.0
        %1927 = vmatprep.subr.mxu0 0.0
        %1928 = vmatpush2.msra.mxu0 0.0
        %1929 = vmatprep.subr.mxu0 0.0
        %1930 = vmatpush2.msra.mxu0 0.0
        %1931 = vmatprep.subr.mxu0 0.0
        %1932 = vmatpush2.msra.mxu0 0.0
        %1933 = vmatprep.subr.mxu0 0.0
        %1934 = vmatpush2.msra.mxu0 0.0
        %1935 = vmatprep.subr.mxu0 0.0
        %1936 = vmatpush2.msra.mxu0 0.0
        %1937 = vmatprep.subr.mxu0 0.0
        %1938 = vmatpush2.msra.mxu0 0.0
        %1939 = vmatprep.subr.mxu0 0.0
        %1940 = vmatpush2.msra.mxu0 0.0
        %1941 = vmatprep.mubr.f32.mxu0 0.0
        %1942 = vmatmul.mubr.f32.gmra.mxu0 %v1875
        %v1943 = vpop.f32.mrf.mxu0
        %v1944 = vadd.f32 0.0, %v1943
        %v1945 = vpop.f32.mrf.mxu0
        %1946 = vdwg.mxu0
        %v1948 = vrot.slane %v1944, 4
        %v1950 = vadd.f32 %v1656, %v1948
        %v1951 = vxor.u32 %v1950, 2147483648
        %v1952 = vmul.f32 %v1951, 1.442695
        %v1953 = vpow.pop %v1952
        %v1954 = vadd.f32 %v1953, 1.0
        %v1955 = vrcp.pop %v1954
        %v1956 = vmul.f32 1.0, %v1955
        %v1957 = vtanh.pop %v1950
        %v1959 = vrot.slane %v1860, 6
        %v1961 = vmul.f32 %v1956, %v1959
        %1963 = vrot.lane.b32.xlu0 %v1957, 64
        %v1964 = vpop.permute.xlu0 %1963
        %v1966 = vmul.f32 %v1956, %v1964
        %1968 = vrot.lane.b32.xlu0 %v1966, 32
        %v1969 = vpop.permute.xlu0 %1968
        %v1971 = vadd.f32 %v1961, %v1969
        %v1972 = vtanh.pop %v1971
        %1974 = vrot.lane.b32.xlu0 %v1972, 64
        %v1975 = vpop.permute.xlu0 %1974
        %v1977 = vmul.f32 %v1956, %v1975
        %1979 = vrot.lane.b32.xlu0 %v1977, 32
        %v1980 = vpop.permute.xlu0 %1979
        %1982 = vst.msk [vmem:[#allocation2] sm:$0x30] %vm1014, %v1980
        %v1983 = vrot.slane %v1977, 4
        %1984 = vrot.lane.b32.xlu0 %v1983, 32
        %v1985 = vpop.permute.xlu0 %1984
        %v1986 = vsel %vm690, %v1985, 0
        %1988 = vmatprep.subr.mxu0 0.0
        %1989 = vmatpush1.msra.mxu0 0.0
        %1990 = vmatprep.subr.mxu0 0.0
        %1991 = vmatpush1.msra.mxu0 0.0
        %1992 = vmatprep.subr.mxu0 0.0
        %1993 = vmatpush1.msra.mxu0 0.0
        %1994 = vmatprep.subr.mxu0 0.0
        %1995 = vmatpush1.msra.mxu0 0.0
        %1996 = vmatprep.subr.mxu0 0.0
        %1997 = vmatpush1.msra.mxu0 0.0
        %1998 = vmatprep.subr.mxu0 0.0
        %1999 = vmatpush1.msra.mxu0 0.0
        %2000 = vmatprep.subr.mxu0 0.0
        %2001 = vmatpush1.msra.mxu0 0.0
        %2002 = vmatprep.subr.mxu0 0.0
        %2003 = vmatpush1.msra.mxu0 0.0
        %2004 = vmatprep.subr.mxu0 0.0
        %2005 = vmatpush1.msra.mxu0 0.0
        %2006 = vmatprep.subr.mxu0 0.0
        %2007 = vmatpush1.msra.mxu0 0.0
        %2008 = vmatprep.subr.mxu0 0.0
        %2009 = vmatpush1.msra.mxu0 0.0
        %2010 = vmatprep.subr.mxu0 0.0
        %2011 = vmatpush1.msra.mxu0 0.0
        %2012 = vmatprep.subr.mxu0 0.0
        %2013 = vmatpush1.msra.mxu0 %v1575
        %2014 = vmatprep.subr.mxu0 0.0
        %2015 = vmatpush1.msra.mxu0 %v1574
        %2016 = vmatprep.subr.mxu0 0.0
        %2017 = vmatpush1.msra.mxu0 %v1573
        %2018 = vmatprep.subr.mxu0 0.0
        %2019 = vmatpush1.msra.mxu0 %v1572
        %2020 = vmatprep.subr.mxu0 0.0
        %2021 = vmatpush2.msra.mxu0 0.0
        %2022 = vmatprep.subr.mxu0 0.0
        %2023 = vmatpush2.msra.mxu0 0.0
        %2024 = vmatprep.subr.mxu0 0.0
        %2025 = vmatpush2.msra.mxu0 0.0
        %2026 = vmatprep.subr.mxu0 0.0
        %2027 = vmatpush2.msra.mxu0 0.0
        %2028 = vmatprep.subr.mxu0 0.0
        %2029 = vmatpush2.msra.mxu0 0.0
        %2030 = vmatprep.subr.mxu0 0.0
        %2031 = vmatpush2.msra.mxu0 0.0
        %2032 = vmatprep.subr.mxu0 0.0
        %2033 = vmatpush2.msra.mxu0 0.0
        %2034 = vmatprep.subr.mxu0 0.0
        %2035 = vmatpush2.msra.mxu0 0.0
        %2036 = vmatprep.subr.mxu0 0.0
        %2037 = vmatpush2.msra.mxu0 0.0
        %2038 = vmatprep.subr.mxu0 0.0
        %2039 = vmatpush2.msra.mxu0 0.0
        %2040 = vmatprep.subr.mxu0 0.0
        %2041 = vmatpush2.msra.mxu0 0.0
        %2042 = vmatprep.subr.mxu0 0.0
        %2043 = vmatpush2.msra.mxu0 0.0
        %2044 = vmatprep.subr.mxu0 0.0
        %2045 = vmatpush2.msra.mxu0 0.0
        %2046 = vmatprep.subr.mxu0 0.0
        %2047 = vmatpush2.msra.mxu0 0.0
        %2048 = vmatprep.subr.mxu0 0.0
        %2049 = vmatpush2.msra.mxu0 0.0
        %2050 = vmatprep.subr.mxu0 0.0
        %2051 = vmatpush2.msra.mxu0 0.0
        %2052 = vmatprep.mubr.f32.mxu0 0.0
        %2053 = vmatmul.mubr.f32.gmra.mxu0 %v1986
        %v2054 = vpop.f32.mrf.mxu0
        %v2055 = vadd.f32 0.0, %v2054
        %v2056 = vpop.f32.mrf.mxu0
        %2057 = vdwg.mxu0
        %v2059 = vrot.slane %v2055, 2
        %v2061 = vadd.f32 %v1656, %v2059
        %v2062 = vxor.u32 %v2061, 2147483648
        %v2063 = vmul.f32 %v2062, 1.442695
        %v2064 = vpow.pop %v2063
        %v2065 = vadd.f32 %v2064, 1.0
        %v2066 = vrcp.pop %v2065
        %v2067 = vmul.f32 1.0, %v2066
        %v2068 = vtanh.pop %v2061
        %v2070 = vrot.slane %v1971, 6
        %v2072 = vmul.f32 %v2067, %v2070
        %2074 = vrot.lane.b32.xlu0 %v2068, 64
        %v2075 = vpop.permute.xlu0 %2074
        %v2077 = vmul.f32 %v2067, %v2075
        %2079 = vrot.lane.b32.xlu0 %v2077, 32
        %v2080 = vpop.permute.xlu0 %2079
        %v2082 = vadd.f32 %v2072, %v2080
        %v2083 = vtanh.pop %v2082
        %2085 = vrot.lane.b32.xlu0 %v2083, 64
        %v2086 = vpop.permute.xlu0 %2085
        %v2088 = vmul.f32 %v2067, %v2086
        %2090 = vrot.lane.b32.xlu0 %v2088, 32
        %v2091 = vpop.permute.xlu0 %2090
        %2093 = vst.msk [vmem:[#allocation2] sm:$0xc0] %vm1126, %v2091
        %v2094 = vrot.slane %v2088, 6
        %2095 = vrot.lane.b32.xlu0 %v2094, 32
        %v2096 = vpop.permute.xlu0 %2095
        %v2097 = vsel %vm690, %v2096, 0
        %2099 = vmatprep.subr.mxu0 0.0
        %2100 = vmatpush1.msra.mxu0 0.0
        %2101 = vmatprep.subr.mxu0 0.0
        %2102 = vmatpush1.msra.mxu0 0.0
        %2103 = vmatprep.subr.mxu0 0.0
        %2104 = vmatpush1.msra.mxu0 0.0
        %2105 = vmatprep.subr.mxu0 0.0
        %2106 = vmatpush1.msra.mxu0 0.0
        %2107 = vmatprep.subr.mxu0 0.0
        %2108 = vmatpush1.msra.mxu0 0.0
        %2109 = vmatprep.subr.mxu0 0.0
        %2110 = vmatpush1.msra.mxu0 0.0
        %2111 = vmatprep.subr.mxu0 0.0
        %2112 = vmatpush1.msra.mxu0 0.0
        %2113 = vmatprep.subr.mxu0 0.0
        %2114 = vmatpush1.msra.mxu0 0.0
        %2115 = vmatprep.subr.mxu0 0.0
        %2116 = vmatpush1.msra.mxu0 0.0
        %2117 = vmatprep.subr.mxu0 0.0
        %2118 = vmatpush1.msra.mxu0 0.0
        %2119 = vmatprep.subr.mxu0 0.0
        %2120 = vmatpush1.msra.mxu0 0.0
        %2121 = vmatprep.subr.mxu0 0.0
        %2122 = vmatpush1.msra.mxu0 0.0
        %2123 = vmatprep.subr.mxu0 0.0
        %2124 = vmatpush1.msra.mxu0 %v1575
        %2125 = vmatprep.subr.mxu0 0.0
        %2126 = vmatpush1.msra.mxu0 %v1574
        %2127 = vmatprep.subr.mxu0 0.0
        %2128 = vmatpush1.msra.mxu0 %v1573
        %2129 = vmatprep.subr.mxu0 0.0
        %2130 = vmatpush1.msra.mxu0 %v1572
        %2131 = vmatprep.subr.mxu0 0.0
        %2132 = vmatpush2.msra.mxu0 0.0
        %2133 = vmatprep.subr.mxu0 0.0
        %2134 = vmatpush2.msra.mxu0 0.0
        %2135 = vmatprep.subr.mxu0 0.0
        %2136 = vmatpush2.msra.mxu0 0.0
        %2137 = vmatprep.subr.mxu0 0.0
        %2138 = vmatpush2.msra.mxu0 0.0
        %2139 = vmatprep.subr.mxu0 0.0
        %2140 = vmatpush2.msra.mxu0 0.0
        %2141 = vmatprep.subr.mxu0 0.0
        %2142 = vmatpush2.msra.mxu0 0.0
        %2143 = vmatprep.subr.mxu0 0.0
        %2144 = vmatpush2.msra.mxu0 0.0
        %2145 = vmatprep.subr.mxu0 0.0
        %2146 = vmatpush2.msra.mxu0 0.0
        %2147 = vmatprep.subr.mxu0 0.0
        %2148 = vmatpush2.msra.mxu0 0.0
        %2149 = vmatprep.subr.mxu0 0.0
        %2150 = vmatpush2.msra.mxu0 0.0
        %2151 = vmatprep.subr.mxu0 0.0
        %2152 = vmatpush2.msra.mxu0 0.0
        %2153 = vmatprep.subr.mxu0 0.0
        %2154 = vmatpush2.msra.mxu0 0.0
        %2155 = vmatprep.subr.mxu0 0.0
        %2156 = vmatpush2.msra.mxu0 0.0
        %2157 = vmatprep.subr.mxu0 0.0
        %2158 = vmatpush2.msra.mxu0 0.0
        %2159 = vmatprep.subr.mxu0 0.0
        %2160 = vmatpush2.msra.mxu0 0.0
        %2161 = vmatprep.subr.mxu0 0.0
        %2162 = vmatpush2.msra.mxu0 0.0
        %2163 = vmatprep.mubr.f32.mxu0 0.0
        %2164 = vmatmul.mubr.f32.gmra.mxu0 %v2097
        %v2165 = vpop.f32.mrf.mxu0
        %v2166 = vadd.f32 0.0, %v2165
        %v2167 = vpop.f32.mrf.mxu0
        %2168 = vdwg.mxu0
        %v2169 = vadd.f32 %v1661, %v2166
        %v2170 = vxor.u32 %v2169, 2147483648
        %v2171 = vmul.f32 %v2170, 1.442695
        %v2172 = vpow.pop %v2171
        %v2173 = vadd.f32 %v2172, 1.0
        %v2174 = vrcp.pop %v2173
        %v2175 = vmul.f32 1.0, %v2174
        %v2176 = vtanh.pop %v2169
        %v2178 = vrot.slane %v2082, 6
        %v2180 = vmul.f32 %v2175, %v2178
        %2182 = vrot.lane.b32.xlu0 %v2176, 64
        %v2183 = vpop.permute.xlu0 %2182
        %v2185 = vmul.f32 %v2175, %v2183
        %2187 = vrot.lane.b32.xlu0 %v2185, 32
        %v2188 = vpop.permute.xlu0 %2187
        %v2190 = vadd.f32 %v2180, %v2188
        %v2191 = vtanh.pop %v2190
        %2193 = vrot.lane.b32.xlu0 %v2191, 64
        %v2194 = vpop.permute.xlu0 %2193
        %v2196 = vmul.f32 %v2175, %v2194
        %2198 = vrot.lane.b32.xlu0 %v2196, 32
        %v2199 = vpop.permute.xlu0 %2198
        %2201 = vst.msk [vmem:[#allocation2 + $0x8] sm:$0x3] %vm793, %v2199
        %v2202 = vsel %vm690, %v2199, 0
        %2204 = vmatprep.subr.mxu0 0.0
        %2205 = vmatpush1.msra.mxu0 0.0
        %2206 = vmatprep.subr.mxu0 0.0
        %2207 = vmatpush1.msra.mxu0 0.0
        %2208 = vmatprep.subr.mxu0 0.0
        %2209 = vmatpush1.msra.mxu0 0.0
        %2210 = vmatprep.subr.mxu0 0.0
        %2211 = vmatpush1.msra.mxu0 0.0
        %2212 = vmatprep.subr.mxu0 0.0
        %2213 = vmatpush1.msra.mxu0 0.0
        %2214 = vmatprep.subr.mxu0 0.0
        %2215 = vmatpush1.msra.mxu0 0.0
        %2216 = vmatprep.subr.mxu0 0.0
        %2217 = vmatpush1.msra.mxu0 0.0
        %2218 = vmatprep.subr.mxu0 0.0
        %2219 = vmatpush1.msra.mxu0 0.0
        %2220 = vmatprep.subr.mxu0 0.0
        %2221 = vmatpush1.msra.mxu0 0.0
        %2222 = vmatprep.subr.mxu0 0.0
        %2223 = vmatpush1.msra.mxu0 0.0
        %2224 = vmatprep.subr.mxu0 0.0
        %2225 = vmatpush1.msra.mxu0 0.0
        %2226 = vmatprep.subr.mxu0 0.0
        %2227 = vmatpush1.msra.mxu0 0.0
        %2228 = vmatprep.subr.mxu0 0.0
        %2229 = vmatpush1.msra.mxu0 %v1575
        %2230 = vmatprep.subr.mxu0 0.0
        %2231 = vmatpush1.msra.mxu0 %v1574
        %2232 = vmatprep.subr.mxu0 0.0
        %2233 = vmatpush1.msra.mxu0 %v1573
        %2234 = vmatprep.subr.mxu0 0.0
        %2235 = vmatpush1.msra.mxu0 %v1572
        %2236 = vmatprep.subr.mxu0 0.0
        %2237 = vmatpush2.msra.mxu0 0.0
        %2238 = vmatprep.subr.mxu0 0.0
        %2239 = vmatpush2.msra.mxu0 0.0
        %2240 = vmatprep.subr.mxu0 0.0
        %2241 = vmatpush2.msra.mxu0 0.0
        %2242 = vmatprep.subr.mxu0 0.0
        %2243 = vmatpush2.msra.mxu0 0.0
        %2244 = vmatprep.subr.mxu0 0.0
        %2245 = vmatpush2.msra.mxu0 0.0
        %2246 = vmatprep.subr.mxu0 0.0
        %2247 = vmatpush2.msra.mxu0 0.0
        %2248 = vmatprep.subr.mxu0 0.0
        %2249 = vmatpush2.msra.mxu0 0.0
        %2250 = vmatprep.subr.mxu0 0.0
        %2251 = vmatpush2.msra.mxu0 0.0
        %2252 = vmatprep.subr.mxu0 0.0
        %2253 = vmatpush2.msra.mxu0 0.0
        %2254 = vmatprep.subr.mxu0 0.0
        %2255 = vmatpush2.msra.mxu0 0.0
        %2256 = vmatprep.subr.mxu0 0.0
        %2257 = vmatpush2.msra.mxu0 0.0
        %2258 = vmatprep.subr.mxu0 0.0
        %2259 = vmatpush2.msra.mxu0 0.0
        %2260 = vmatprep.subr.mxu0 0.0
        %2261 = vmatpush2.msra.mxu0 0.0
        %2262 = vmatprep.subr.mxu0 0.0
        %2263 = vmatpush2.msra.mxu0 0.0
        %2264 = vmatprep.subr.mxu0 0.0
        %2265 = vmatpush2.msra.mxu0 0.0
        %2266 = vmatprep.subr.mxu0 0.0
        %2267 = vmatpush2.msra.mxu0 0.0
        %2268 = vmatprep.mubr.f32.mxu0 0.0
        %2269 = vmatmul.mubr.f32.gmra.mxu0 %v2202
        %v2270 = vpop.f32.mrf.mxu0
        %v2271 = vadd.f32 0.0, %v2270
        %v2272 = vpop.f32.mrf.mxu0
        %2273 = vdwg.mxu0
        %v2275 = vrot.slane %v2271, 6
        %v2277 = vadd.f32 %v1661, %v2275
        %v2278 = vxor.u32 %v2277, 2147483648
        %v2279 = vmul.f32 %v2278, 1.442695
        %v2280 = vpow.pop %v2279
        %v2281 = vadd.f32 %v2280, 1.0
        %v2282 = vrcp.pop %v2281
        %v2283 = vmul.f32 1.0, %v2282
        %v2284 = vtanh.pop %v2277
        %v2286 = vrot.slane %v2190, 6
        %v2288 = vmul.f32 %v2283, %v2286
        %2290 = vrot.lane.b32.xlu0 %v2284, 64
        %v2291 = vpop.permute.xlu0 %2290
        %v2293 = vmul.f32 %v2283, %v2291
        %2295 = vrot.lane.b32.xlu0 %v2293, 32
        %v2296 = vpop.permute.xlu0 %2295
        %v2298 = vadd.f32 %v2288, %v2296
        %v2299 = vtanh.pop %v2298
        %2301 = vrot.lane.b32.xlu0 %v2299, 64
        %v2302 = vpop.permute.xlu0 %2301
        %v2304 = vmul.f32 %v2283, %v2302
        %2306 = vrot.lane.b32.xlu0 %v2304, 32
        %v2307 = vpop.permute.xlu0 %2306
        %2309 = vst.msk [vmem:[#allocation2 + $0x8] sm:$0xc] %vm902, %v2307
        %v2310 = vrot.slane %v2304, 2
        %2311 = vrot.lane.b32.xlu0 %v2310, 32
        %v2312 = vpop.permute.xlu0 %2311
        %v2313 = vsel %vm690, %v2312, 0
        %2315 = vmatprep.subr.mxu0 0.0
        %2316 = vmatpush1.msra.mxu0 0.0
        %2317 = vmatprep.subr.mxu0 0.0
        %2318 = vmatpush1.msra.mxu0 0.0
        %2319 = vmatprep.subr.mxu0 0.0
        %2320 = vmatpush1.msra.mxu0 0.0
        %2321 = vmatprep.subr.mxu0 0.0
        %2322 = vmatpush1.msra.mxu0 0.0
        %2323 = vmatprep.subr.mxu0 0.0
        %2324 = vmatpush1.msra.mxu0 0.0
        %2325 = vmatprep.subr.mxu0 0.0
        %2326 = vmatpush1.msra.mxu0 0.0
        %2327 = vmatprep.subr.mxu0 0.0
        %2328 = vmatpush1.msra.mxu0 0.0
        %2329 = vmatprep.subr.mxu0 0.0
        %2330 = vmatpush1.msra.mxu0 0.0
        %2331 = vmatprep.subr.mxu0 0.0
        %2332 = vmatpush1.msra.mxu0 0.0
        %2333 = vmatprep.subr.mxu0 0.0
        %2334 = vmatpush1.msra.mxu0 0.0
        %2335 = vmatprep.subr.mxu0 0.0
        %2336 = vmatpush1.msra.mxu0 0.0
        %2337 = vmatprep.subr.mxu0 0.0
        %2338 = vmatpush1.msra.mxu0 0.0
        %2339 = vmatprep.subr.mxu0 0.0
        %2340 = vmatpush1.msra.mxu0 %v1575
        %2341 = vmatprep.subr.mxu0 0.0
        %2342 = vmatpush1.msra.mxu0 %v1574
        %2343 = vmatprep.subr.mxu0 0.0
        %2344 = vmatpush1.msra.mxu0 %v1573
        %2345 = vmatprep.subr.mxu0 0.0
        %2346 = vmatpush1.msra.mxu0 %v1572
        %2347 = vmatprep.subr.mxu0 0.0
        %2348 = vmatpush2.msra.mxu0 0.0
        %2349 = vmatprep.subr.mxu0 0.0
        %2350 = vmatpush2.msra.mxu0 0.0
        %2351 = vmatprep.subr.mxu0 0.0
        %2352 = vmatpush2.msra.mxu0 0.0
        %2353 = vmatprep.subr.mxu0 0.0
        %2354 = vmatpush2.msra.mxu0 0.0
        %2355 = vmatprep.subr.mxu0 0.0
        %2356 = vmatpush2.msra.mxu0 0.0
        %2357 = vmatprep.subr.mxu0 0.0
        %2358 = vmatpush2.msra.mxu0 0.0
        %2359 = vmatprep.subr.mxu0 0.0
        %2360 = vmatpush2.msra.mxu0 0.0
        %2361 = vmatprep.subr.mxu0 0.0
        %2362 = vmatpush2.msra.mxu0 0.0
        %2363 = vmatprep.subr.mxu0 0.0
        %2364 = vmatpush2.msra.mxu0 0.0
        %2365 = vmatprep.subr.mxu0 0.0
        %2366 = vmatpush2.msra.mxu0 0.0
        %2367 = vmatprep.subr.mxu0 0.0
        %2368 = vmatpush2.msra.mxu0 0.0
        %2369 = vmatprep.subr.mxu0 0.0
        %2370 = vmatpush2.msra.mxu0 0.0
        %2371 = vmatprep.subr.mxu0 0.0
        %2372 = vmatpush2.msra.mxu0 0.0
        %2373 = vmatprep.subr.mxu0 0.0
        %2374 = vmatpush2.msra.mxu0 0.0
        %2375 = vmatprep.subr.mxu0 0.0
        %2376 = vmatpush2.msra.mxu0 0.0
        %2377 = vmatprep.subr.mxu0 0.0
        %2378 = vmatpush2.msra.mxu0 0.0
        %2379 = vmatprep.mubr.f32.mxu0 0.0
        %2380 = vmatmul.mubr.f32.gmra.mxu0 %v2313
        %v2381 = vpop.f32.mrf.mxu0
        %v2382 = vadd.f32 0.0, %v2381
        %v2383 = vpop.f32.mrf.mxu0
        %2384 = vdwg.mxu0
        %v2386 = vrot.slane %v2382, 4
        %v2388 = vadd.f32 %v1661, %v2386
        %v2389 = vxor.u32 %v2388, 2147483648
        %v2390 = vmul.f32 %v2389, 1.442695
        %v2391 = vpow.pop %v2390
        %v2392 = vadd.f32 %v2391, 1.0
        %v2393 = vrcp.pop %v2392
        %v2394 = vmul.f32 1.0, %v2393
        %v2395 = vtanh.pop %v2388
        %v2397 = vrot.slane %v2298, 6
        %v2399 = vmul.f32 %v2394, %v2397
        %2401 = vrot.lane.b32.xlu0 %v2395, 64
        %v2402 = vpop.permute.xlu0 %2401
        %v2404 = vmul.f32 %v2394, %v2402
        %2406 = vrot.lane.b32.xlu0 %v2404, 32
        %v2407 = vpop.permute.xlu0 %2406
        %v2409 = vadd.f32 %v2399, %v2407
        %v2410 = vtanh.pop %v2409
        %2412 = vrot.lane.b32.xlu0 %v2410, 64
        %v2413 = vpop.permute.xlu0 %2412
        %v2415 = vmul.f32 %v2394, %v2413
        %2417 = vrot.lane.b32.xlu0 %v2415, 32
        %v2418 = vpop.permute.xlu0 %2417
        %2420 = vst.msk [vmem:[#allocation2 + $0x8] sm:$0x30] %vm1014, %v2418
        %v2421 = vrot.slane %v2415, 4
        %2422 = vrot.lane.b32.xlu0 %v2421, 32
        %v2423 = vpop.permute.xlu0 %2422
        %v2424 = vsel %vm690, %v2423, 0
        %2426 = vmatprep.subr.mxu0 0.0
        %2427 = vmatpush1.msra.mxu0 0.0
        %2428 = vmatprep.subr.mxu0 0.0
        %2429 = vmatpush1.msra.mxu0 0.0
        %2430 = vmatprep.subr.mxu0 0.0
        %2431 = vmatpush1.msra.mxu0 0.0
        %2432 = vmatprep.subr.mxu0 0.0
        %2433 = vmatpush1.msra.mxu0 0.0
        %2434 = vmatprep.subr.mxu0 0.0
        %2435 = vmatpush1.msra.mxu0 0.0
        %2436 = vmatprep.subr.mxu0 0.0
        %2437 = vmatpush1.msra.mxu0 0.0
        %2438 = vmatprep.subr.mxu0 0.0
        %2439 = vmatpush1.msra.mxu0 0.0
        %2440 = vmatprep.subr.mxu0 0.0
        %2441 = vmatpush1.msra.mxu0 0.0
        %2442 = vmatprep.subr.mxu0 0.0
        %2443 = vmatpush1.msra.mxu0 0.0
        %2444 = vmatprep.subr.mxu0 0.0
        %2445 = vmatpush1.msra.mxu0 0.0
        %2446 = vmatprep.subr.mxu0 0.0
        %2447 = vmatpush1.msra.mxu0 0.0
        %2448 = vmatprep.subr.mxu0 0.0
        %2449 = vmatpush1.msra.mxu0 0.0
        %2450 = vmatprep.subr.mxu0 0.0
        %2451 = vmatpush1.msra.mxu0 %v1575
        %2452 = vmatprep.subr.mxu0 0.0
        %2453 = vmatpush1.msra.mxu0 %v1574
        %2454 = vmatprep.subr.mxu0 0.0
        %2455 = vmatpush1.msra.mxu0 %v1573
        %2456 = vmatprep.subr.mxu0 0.0
        %2457 = vmatpush1.msra.mxu0 %v1572
        %2458 = vmatprep.subr.mxu0 0.0
        %2459 = vmatpush2.msra.mxu0 0.0
        %2460 = vmatprep.subr.mxu0 0.0
        %2461 = vmatpush2.msra.mxu0 0.0
        %2462 = vmatprep.subr.mxu0 0.0
        %2463 = vmatpush2.msra.mxu0 0.0
        %2464 = vmatprep.subr.mxu0 0.0
        %2465 = vmatpush2.msra.mxu0 0.0
        %2466 = vmatprep.subr.mxu0 0.0
        %2467 = vmatpush2.msra.mxu0 0.0
        %2468 = vmatprep.subr.mxu0 0.0
        %2469 = vmatpush2.msra.mxu0 0.0
        %2470 = vmatprep.subr.mxu0 0.0
        %2471 = vmatpush2.msra.mxu0 0.0
        %2472 = vmatprep.subr.mxu0 0.0
        %2473 = vmatpush2.msra.mxu0 0.0
        %2474 = vmatprep.subr.mxu0 0.0
        %2475 = vmatpush2.msra.mxu0 0.0
        %2476 = vmatprep.subr.mxu0 0.0
        %2477 = vmatpush2.msra.mxu0 0.0
        %2478 = vmatprep.subr.mxu0 0.0
        %2479 = vmatpush2.msra.mxu0 0.0
        %2480 = vmatprep.subr.mxu0 0.0
        %2481 = vmatpush2.msra.mxu0 0.0
        %2482 = vmatprep.subr.mxu0 0.0
        %2483 = vmatpush2.msra.mxu0 0.0
        %2484 = vmatprep.subr.mxu0 0.0
        %2485 = vmatpush2.msra.mxu0 0.0
        %2486 = vmatprep.subr.mxu0 0.0
        %2487 = vmatpush2.msra.mxu0 0.0
        %2488 = vmatprep.subr.mxu0 0.0
        %2489 = vmatpush2.msra.mxu0 0.0
        %2490 = vmatprep.mubr.f32.mxu0 0.0
        %2491 = vmatmul.mubr.f32.gmra.mxu0 %v2424
        %v2492 = vpop.f32.mrf.mxu0
        %v2493 = vadd.f32 0.0, %v2492
        %v2494 = vpop.f32.mrf.mxu0
        %2495 = vdwg.mxu0
        %v2497 = vrot.slane %v2493, 2
        %v2499 = vadd.f32 %v1661, %v2497
        %v2500 = vxor.u32 %v2499, 2147483648
        %v2501 = vmul.f32 %v2500, 1.442695
        %v2502 = vpow.pop %v2501
        %v2503 = vadd.f32 %v2502, 1.0
        %v2504 = vrcp.pop %v2503
        %v2505 = vmul.f32 1.0, %v2504
        %v2506 = vtanh.pop %v2499
        %v2508 = vrot.slane %v2409, 6
        %v2510 = vmul.f32 %v2505, %v2508
        %2512 = vrot.lane.b32.xlu0 %v2506, 64
        %v2513 = vpop.permute.xlu0 %2512
        %v2515 = vmul.f32 %v2505, %v2513
        %2517 = vrot.lane.b32.xlu0 %v2515, 32
        %v2518 = vpop.permute.xlu0 %2517
        %v2520 = vadd.f32 %v2510, %v2518
        %v2521 = vtanh.pop %v2520
        %2523 = vrot.lane.b32.xlu0 %v2521, 64
        %v2524 = vpop.permute.xlu0 %2523
        %v2526 = vmul.f32 %v2505, %v2524
        %2528 = vrot.lane.b32.xlu0 %v2526, 32
        %v2529 = vpop.permute.xlu0 %2528
        %2531 = vst.msk [vmem:[#allocation2 + $0x8] sm:$0xc0] %vm1126, %v2529
        %v2532 = vld [vmem:[#allocation2] sm:$0xff]
        %v2533 = vld [vmem:[#allocation2 + $0x8] sm:$0xff]
        %2534 = vst.msk [vmem:[%s502] sm:$0xff] %vm690, %v2532
        %2535 = vst.msk [vmem:[%s502 + $0x8] sm:$0xff] %vm690, %v2533
        %p2536 = scmp.lt.s32.totalorder %s22, 1
        %s2537 = scalar_select %p2536, %s22, 1
        %s2538 = smul.addr %s2537, 2
        %s2539 = smul.addr %s2538, 8
        %s2540 = scalar_lea.vmem %s9, %s2539
        // Predicated region
        $region73: #{srnn_forward.2} parent=55 // pred_check
          %p2541 = pneg %p264
        $region74: #{srnn_forward.2} parent=55 // pred_check_branch
          %2543 = sbr.rel (%p2541) target = $region76
        $region75: #{srnn_forward.2} parent=55 // pred_region
          _
        $region76: #{srnn_forward.2} parent=55 // pred_fallthru
          _
      $region56: #{srnn_forward.2} parent=5 // pred_fallthru
        _
      %p2544 = scmp.le.s32.totalorder 2, %s17
      // Predicated region
      $region77: #{srnn_forward.2} parent=5 // pred_check
        %p2545 = pneg %p2544
      $region78: #{srnn_forward.2} parent=5 // pred_check_branch
        %2547 = sbr.rel (%p2545) target = $region80
      $region79: #{srnn_forward.2} parent=5 // pred_region
        %s2548 = ssub.s32 %s17, 2
        // Predicated region
        $region81: #{srnn_forward.2} parent=79 // pred_check
          %p2549 = pneg %p270
        $region82: #{srnn_forward.2} parent=79 // pred_check_branch
          %2551 = sbr.rel (%p2549) target = $region84
        $region83: #{srnn_forward.2} parent=79 // pred_region
          %p2552 = scmp.lt.s32.totalorder %s23, 1
          %s2553 = scalar_select %p2552, %s23, 1
          %s2554 = smul.addr %s2553, 2
          %s2555 = smul.addr %s2554, 8
          %s2556 = scalar_lea.vmem %s9, %s2555
        $region84: #{srnn_forward.2} parent=79 // pred_fallthru
          _
      $region80: #{srnn_forward.2} parent=5 // pred_fallthru
        _
    $region6: #{srnn_forward.2} parent=1 // loop_footer
      %s21 = sadd.s32 1, %s17
    $region7: #{srnn_forward.2} parent=1 // loop_footer_branch
      %16 = sbr.rel target = $region3
    $region8: #{srnn_forward.2} parent=1 // loop_exit
      _
    %2557 = vsyncpa [#allocation4], 1
    %s2558 = scalar_lea.sflag [#allocation4], 1
    %2559 = vsyncpa %s2558, 1
    %2560 = vsyncpa [#allocation6], 1

</llo_original>
